<compile_context>
chip_gen: v5e
topology: v5e:2x2
jax: 0.10.0
libtpu: 0.0.40
codegen_flags: <defaults>
</compile_context>

<pallas_src>
import functools

import numpy as np
import jax
import jax.numpy as jnp
from jax.experimental import pallas as pl
from jax.experimental.pallas import tpu as pltpu

LANE = 128


# ---------------------------------------------------------------------------
# Kernel
# ---------------------------------------------------------------------------
def _gen_coaction_kernel(x_ref, mlp_ref, out_ref, *, orders, layers):
    """One grid step = one batch tile, batch on the lane axis.

    x_ref   : (D, T, TB)   input, feature-major so x_ref[d] is one aligned
                           (T, TB) vreg tile
    mlp_ref : (P, TB)      packed per-sample weights (row = layer/d/o index)
    out_ref : (OUT_P, TB)  sum over orders and seq of every layer output,
                           rows ordered (layer0 outs..., layer1 outs..., pad)
    """
    f32 = jnp.float32
    D, T, TB = x_ref.shape
    L = len(layers)

    # Per-feature x slices: each load is one contiguous, lane-dense (T, TB) tile.
    xs = [x_ref[d].astype(f32) for d in range(D)]

    # Weight rows (1, TB): per-sample scalars on the lane axis.  Loaded once,
    # reused by every order (the module uses the same weights for all orders).
    w = []
    row = 0
    for (fin, fout) in layers:
        wj = [[mlp_ref[pl.ds(row + d * fout + oi, 1), :].astype(f32)
               for oi in range(fout)]
              for d in range(fin)]
        w.append(wj)
        row += fin * fout

    # accs[j][oi]: running sum over (orders, seq) of layer-j output feature oi.
    accs = [[jnp.zeros((1, TB), f32) for _ in range(fout)]
            for (_, fout) in layers]

    hp = xs
    for o in range(orders):                      # static unroll over orders
        if o > 0:
            hp = [hp[d] * xs[d] for d in range(D)]   # input ** (o + 1), VPU
        h = hp                                        # list of (T, TB)
        for j, (fin, fout) in enumerate(layers):      # static unroll over layers
            wj = w[j]
            if j < L - 1:
                new_h = []
                for oi in range(fout):
                    s = h[0] * wj[0][oi]
                    for d in range(1, fin):           # unrolled MAC over d (VPU)
                        s = s + h[d] * wj[d][oi]
                    s = jnp.tanh(s)                   # EUP
                    new_h.append(s)
                    accs[j][oi] = accs[j][oi] + jnp.sum(s, axis=0, keepdims=True)
                h = new_h
            else:
                # Last layer: no tanh -> fuse the seq reduction before the
                # contraction (sum_t first), cutting its MACs by T.
                hs = [jnp.sum(h[d], axis=0, keepdims=True) for d in range(fin)]
                for oi in range(fout):
                    s = hs[0] * wj[0][oi]
                    for d in range(1, fin):
                        s = s + hs[d] * wj[d][oi]
                    accs[j][oi] = accs[j][oi] + s

    # Single lane-dense, unmasked store.
    flat = [a for accj in accs for a in accj]
    pad_rows = out_ref.shape[0] - len(flat)
    if pad_rows:
        flat.append(jnp.zeros((pad_rows, TB), f32))
    out_ref[...] = jnp.concatenate(flat, axis=0).astype(out_ref.dtype)


# ---------------------------------------------------------------------------
# Wrapper
# ---------------------------------------------------------------------------
def gen_coaction_forward(x, mlp, weight_emb_w, orders=2):
    """Equivalent of Gen_Coaction.forward(input, mlp) -> (B, sum_j out_j)."""
    B, T, D = x.shape
    layers = tuple((int(fin), int(fout)) for (fin, fout) in weight_emb_w)
    assert D == layers[0][0], "input feature dim must match first layer"
    P = sum(fin * fout for (fin, fout) in layers)
    assert mlp.shape[0] == B and mlp.shape[1] >= P
    sum_out = sum(fout for (_, fout) in layers)
    sum_out_p = -(-sum_out // 8) * 8                 # sublane-aligned output slab

    # ---- batch tiling: batch on the lane axis, multiples of 128 ----
    B_pad = -(-B // LANE) * LANE
    if B_pad >= 2 * LANE:
        TB = min(1024, (B_pad // 2 // LANE) * LANE)  # >=2 grid steps (v7x megacore)
        B_pad = -(-B_pad // TB) * TB
    else:
        TB = B_pad
    grid = (B_pad // TB,)

    # ---- layout plumbing: batch last (lane-dense), packed weights ----
    x_t = jnp.transpose(x, (2, 1, 0))                # (D, T, B)
    mlp_t = jnp.transpose(mlp[:, :P], (1, 0))        # (P, B)
    if B_pad != B:
        x_t = jnp.pad(x_t, ((0, 0), (0, 0), (0, B_pad - B)))
        mlp_t = jnp.pad(mlp_t, ((0, 0), (0, B_pad - B)))

    out_t = pl.pallas_call(
        functools.partial(_gen_coaction_kernel, orders=orders, layers=layers),
        out_shape=jax.ShapeDtypeStruct((sum_out_p, B_pad), x.dtype),
        grid_spec=pltpu.PrefetchScalarGridSpec(
            num_scalar_prefetch=0,
            grid=grid,
            in_specs=[
                pl.BlockSpec((D, T, TB), lambda b: (0, 0, b)),
                pl.BlockSpec((P, TB), lambda b: (0, b)),
            ],
            out_specs=pl.BlockSpec((sum_out_p, TB), lambda b: (0, b)),
        ),
        compiler_params=pltpu.CompilerParams(
            dimension_semantics=("parallel",),       # independent batch tiles
        ),
    )(x_t, mlp_t)

    # Unpad + transpose back (layout plumbing only).
    return jnp.transpose(out_t[:sum_out, :B], (1, 0))


# ---------------------------------------------------------------------------
# Pure-JAX reference (same math as the PyTorch forward)
# ---------------------------------------------------------------------------
def gen_coaction_ref(x, mlp, weight_emb_w, orders=2):
    B, T, D = x.shape
    ws = []
    idx = 0
    for (fin, fout) in weight_emb_w:
        ws.append(mlp[:, idx:idx + fin * fout].reshape(B, fin, fout))
        idx += fin * fout
    out_seq = []
    for o in range(orders):
        h = x ** (o + 1)
        h_order = []
        for j, w in enumerate(ws):
            h = jnp.einsum("btd,bdo->bto", h, w)
            if j != len(ws) - 1:
                h = jnp.tanh(h)
            h_order.append(h)
        out_seq.append(jnp.concatenate(h_order, axis=2))
    return jnp.sum(jnp.concatenate(out_seq, axis=1), axis=1)


if __name__ == "__main__":
    # CAN-style config: weight_emb_w = [[16, 8], [8, 4]] -> 160 params per row.
    weight_emb_w = [[16, 8], [8, 4]]
    orders = 2
    B, T, D = 2, 8, 16
    P = sum(fin * fout for (fin, fout) in weight_emb_w)      # 160

    key = jax.random.PRNGKey(0)
    kx, km = jax.random.split(key)
    x = jax.random.normal(kx, (B, T, D), dtype=jnp.float32)
    mlp = 0.1 * jax.random.normal(km, (B, P), dtype=jnp.float32)

    out = gen_coaction_forward(x, mlp, weight_emb_w, orders=orders)
    out = jax.block_until_ready(out)

    ref = gen_coaction_ref(x, mlp, weight_emb_w, orders=orders)
    np.testing.assert_allclose(np.asarray(out), np.asarray(ref),
                               rtol=2e-2, atol=2e-2)
    assert out.shape == (B, sum(fout for (_, fout) in weight_emb_w))

    print("KERNEL_OK")
</pallas_src>

<mosaic_0001>
module attributes {stable_mosaic.version = 11 : i64} {
  func.func @_gen_coaction_kernel(%arg0: i32, %arg1: memref<16x8x128xf32, #tpu.memory_space<vmem>>, %arg2: memref<160x128xf32, #tpu.memory_space<vmem>>, %arg3: memref<16x128xf32, #tpu.memory_space<vmem>>) attributes {dimension_semantics = [#tpu.dimension_semantics<parallel>], iteration_bounds = array<i64: 1>, scalar_prefetch = 0 : i64, scratch_operands = 0 : i64, tpu.core_type = #tpu.core_type<tc>, window_params = [{transform_indices = @transform_0, window_bounds = array<i64: 16, 8, 128>}, {transform_indices = @transform_1, window_bounds = array<i64: 160, 128>}, {transform_indices = @transform_2, window_bounds = array<i64: 16, 128>}]} {
    %c0 = arith.constant 0 : index
    %c0_0 = arith.constant 0 : index
    %c0_1 = arith.constant 0 : index
    %0 = vector.load %arg1[%c0, %c0_0, %c0_1] : memref<16x8x128xf32, #tpu.memory_space<vmem>>, vector<1x8x128xf32>
    %1 = vector.shape_cast %0 : vector<1x8x128xf32> to vector<8x128xf32>
    %c1 = arith.constant 1 : index
    %c0_2 = arith.constant 0 : index
    %c0_3 = arith.constant 0 : index
    %2 = vector.load %arg1[%c1, %c0_2, %c0_3] : memref<16x8x128xf32, #tpu.memory_space<vmem>>, vector<1x8x128xf32>
    %3 = vector.shape_cast %2 : vector<1x8x128xf32> to vector<8x128xf32>
    %c2 = arith.constant 2 : index
    %c0_4 = arith.constant 0 : index
    %c0_5 = arith.constant 0 : index
    %4 = vector.load %arg1[%c2, %c0_4, %c0_5] : memref<16x8x128xf32, #tpu.memory_space<vmem>>, vector<1x8x128xf32>
    %5 = vector.shape_cast %4 : vector<1x8x128xf32> to vector<8x128xf32>
    %c3 = arith.constant 3 : index
    %c0_6 = arith.constant 0 : index
    %c0_7 = arith.constant 0 : index
    %6 = vector.load %arg1[%c3, %c0_6, %c0_7] : memref<16x8x128xf32, #tpu.memory_space<vmem>>, vector<1x8x128xf32>
    %7 = vector.shape_cast %6 : vector<1x8x128xf32> to vector<8x128xf32>
    %c4 = arith.constant 4 : index
    %c0_8 = arith.constant 0 : index
    %c0_9 = arith.constant 0 : index
    %8 = vector.load %arg1[%c4, %c0_8, %c0_9] : memref<16x8x128xf32, #tpu.memory_space<vmem>>, vector<1x8x128xf32>
    %9 = vector.shape_cast %8 : vector<1x8x128xf32> to vector<8x128xf32>
    %c5 = arith.constant 5 : index
    %c0_10 = arith.constant 0 : index
    %c0_11 = arith.constant 0 : index
    %10 = vector.load %arg1[%c5, %c0_10, %c0_11] : memref<16x8x128xf32, #tpu.memory_space<vmem>>, vector<1x8x128xf32>
    %11 = vector.shape_cast %10 : vector<1x8x128xf32> to vector<8x128xf32>
    %c6 = arith.constant 6 : index
    %c0_12 = arith.constant 0 : index
    %c0_13 = arith.constant 0 : index
    %12 = vector.load %arg1[%c6, %c0_12, %c0_13] : memref<16x8x128xf32, #tpu.memory_space<vmem>>, vector<1x8x128xf32>
    %13 = vector.shape_cast %12 : vector<1x8x128xf32> to vector<8x128xf32>
    %c7 = arith.constant 7 : index
    %c0_14 = arith.constant 0 : index
    %c0_15 = arith.constant 0 : index
    %14 = vector.load %arg1[%c7, %c0_14, %c0_15] : memref<16x8x128xf32, #tpu.memory_space<vmem>>, vector<1x8x128xf32>
    %15 = vector.shape_cast %14 : vector<1x8x128xf32> to vector<8x128xf32>
    %c8 = arith.constant 8 : index
    %c0_16 = arith.constant 0 : index
    %c0_17 = arith.constant 0 : index
    %16 = vector.load %arg1[%c8, %c0_16, %c0_17] : memref<16x8x128xf32, #tpu.memory_space<vmem>>, vector<1x8x128xf32>
    %17 = vector.shape_cast %16 : vector<1x8x128xf32> to vector<8x128xf32>
    %c9 = arith.constant 9 : index
    %c0_18 = arith.constant 0 : index
    %c0_19 = arith.constant 0 : index
    %18 = vector.load %arg1[%c9, %c0_18, %c0_19] : memref<16x8x128xf32, #tpu.memory_space<vmem>>, vector<1x8x128xf32>
    %19 = vector.shape_cast %18 : vector<1x8x128xf32> to vector<8x128xf32>
    %c10 = arith.constant 10 : index
    %c0_20 = arith.constant 0 : index
    %c0_21 = arith.constant 0 : index
    %20 = vector.load %arg1[%c10, %c0_20, %c0_21] : memref<16x8x128xf32, #tpu.memory_space<vmem>>, vector<1x8x128xf32>
    %21 = vector.shape_cast %20 : vector<1x8x128xf32> to vector<8x128xf32>
    %c11 = arith.constant 11 : index
    %c0_22 = arith.constant 0 : index
    %c0_23 = arith.constant 0 : index
    %22 = vector.load %arg1[%c11, %c0_22, %c0_23] : memref<16x8x128xf32, #tpu.memory_space<vmem>>, vector<1x8x128xf32>
    %23 = vector.shape_cast %22 : vector<1x8x128xf32> to vector<8x128xf32>
    %c12 = arith.constant 12 : index
    %c0_24 = arith.constant 0 : index
    %c0_25 = arith.constant 0 : index
    %24 = vector.load %arg1[%c12, %c0_24, %c0_25] : memref<16x8x128xf32, #tpu.memory_space<vmem>>, vector<1x8x128xf32>
    %25 = vector.shape_cast %24 : vector<1x8x128xf32> to vector<8x128xf32>
    %c13 = arith.constant 13 : index
    %c0_26 = arith.constant 0 : index
    %c0_27 = arith.constant 0 : index
    %26 = vector.load %arg1[%c13, %c0_26, %c0_27] : memref<16x8x128xf32, #tpu.memory_space<vmem>>, vector<1x8x128xf32>
    %27 = vector.shape_cast %26 : vector<1x8x128xf32> to vector<8x128xf32>
    %c14 = arith.constant 14 : index
    %c0_28 = arith.constant 0 : index
    %c0_29 = arith.constant 0 : index
    %28 = vector.load %arg1[%c14, %c0_28, %c0_29] : memref<16x8x128xf32, #tpu.memory_space<vmem>>, vector<1x8x128xf32>
    %29 = vector.shape_cast %28 : vector<1x8x128xf32> to vector<8x128xf32>
    %c15 = arith.constant 15 : index
    %c0_30 = arith.constant 0 : index
    %c0_31 = arith.constant 0 : index
    %30 = vector.load %arg1[%c15, %c0_30, %c0_31] : memref<16x8x128xf32, #tpu.memory_space<vmem>>, vector<1x8x128xf32>
    %31 = vector.shape_cast %30 : vector<1x8x128xf32> to vector<8x128xf32>
    %c0_32 = arith.constant 0 : index
    %c0_33 = arith.constant 0 : index
    %32 = vector.load %arg2[%c0_32, %c0_33] : memref<160x128xf32, #tpu.memory_space<vmem>>, vector<1x128xf32>
    %c1_34 = arith.constant 1 : index
    %c0_35 = arith.constant 0 : index
    %33 = vector.load %arg2[%c1_34, %c0_35] : memref<160x128xf32, #tpu.memory_space<vmem>>, vector<1x128xf32>
    %c2_36 = arith.constant 2 : index
    %c0_37 = arith.constant 0 : index
    %34 = vector.load %arg2[%c2_36, %c0_37] : memref<160x128xf32, #tpu.memory_space<vmem>>, vector<1x128xf32>
    %c3_38 = arith.constant 3 : index
    %c0_39 = arith.constant 0 : index
    %35 = vector.load %arg2[%c3_38, %c0_39] : memref<160x128xf32, #tpu.memory_space<vmem>>, vector<1x128xf32>
    %c4_40 = arith.constant 4 : index
    %c0_41 = arith.constant 0 : index
    %36 = vector.load %arg2[%c4_40, %c0_41] : memref<160x128xf32, #tpu.memory_space<vmem>>, vector<1x128xf32>
    %c5_42 = arith.constant 5 : index
    %c0_43 = arith.constant 0 : index
    %37 = vector.load %arg2[%c5_42, %c0_43] : memref<160x128xf32, #tpu.memory_space<vmem>>, vector<1x128xf32>
    %c6_44 = arith.constant 6 : index
    %c0_45 = arith.constant 0 : index
    %38 = vector.load %arg2[%c6_44, %c0_45] : memref<160x128xf32, #tpu.memory_space<vmem>>, vector<1x128xf32>
    %c7_46 = arith.constant 7 : index
    %c0_47 = arith.constant 0 : index
    %39 = vector.load %arg2[%c7_46, %c0_47] : memref<160x128xf32, #tpu.memory_space<vmem>>, vector<1x128xf32>
    %c8_48 = arith.constant 8 : index
    %c0_49 = arith.constant 0 : index
    %40 = vector.load %arg2[%c8_48, %c0_49] : memref<160x128xf32, #tpu.memory_space<vmem>>, vector<1x128xf32>
    %c9_50 = arith.constant 9 : index
    %c0_51 = arith.constant 0 : index
    %41 = vector.load %arg2[%c9_50, %c0_51] : memref<160x128xf32, #tpu.memory_space<vmem>>, vector<1x128xf32>
    %c10_52 = arith.constant 10 : index
    %c0_53 = arith.constant 0 : index
    %42 = vector.load %arg2[%c10_52, %c0_53] : memref<160x128xf32, #tpu.memory_space<vmem>>, vector<1x128xf32>
    %c11_54 = arith.constant 11 : index
    %c0_55 = arith.constant 0 : index
    %43 = vector.load %arg2[%c11_54, %c0_55] : memref<160x128xf32, #tpu.memory_space<vmem>>, vector<1x128xf32>
    %c12_56 = arith.constant 12 : index
    %c0_57 = arith.constant 0 : index
    %44 = vector.load %arg2[%c12_56, %c0_57] : memref<160x128xf32, #tpu.memory_space<vmem>>, vector<1x128xf32>
    %c13_58 = arith.constant 13 : index
    %c0_59 = arith.constant 0 : index
    %45 = vector.load %arg2[%c13_58, %c0_59] : memref<160x128xf32, #tpu.memory_space<vmem>>, vector<1x128xf32>
    %c14_60 = arith.constant 14 : index
    %c0_61 = arith.constant 0 : index
    %46 = vector.load %arg2[%c14_60, %c0_61] : memref<160x128xf32, #tpu.memory_space<vmem>>, vector<1x128xf32>
    %c15_62 = arith.constant 15 : index
    %c0_63 = arith.constant 0 : index
    %47 = vector.load %arg2[%c15_62, %c0_63] : memref<160x128xf32, #tpu.memory_space<vmem>>, vector<1x128xf32>
    %c16 = arith.constant 16 : index
    %c0_64 = arith.constant 0 : index
    %48 = vector.load %arg2[%c16, %c0_64] : memref<160x128xf32, #tpu.memory_space<vmem>>, vector<1x128xf32>
    %c17 = arith.constant 17 : index
    %c0_65 = arith.constant 0 : index
    %49 = vector.load %arg2[%c17, %c0_65] : memref<160x128xf32, #tpu.memory_space<vmem>>, vector<1x128xf32>
    %c18 = arith.constant 18 : index
    %c0_66 = arith.constant 0 : index
    %50 = vector.load %arg2[%c18, %c0_66] : memref<160x128xf32, #tpu.memory_space<vmem>>, vector<1x128xf32>
    %c19 = arith.constant 19 : index
    %c0_67 = arith.constant 0 : index
    %51 = vector.load %arg2[%c19, %c0_67] : memref<160x128xf32, #tpu.memory_space<vmem>>, vector<1x128xf32>
    %c20 = arith.constant 20 : index
    %c0_68 = arith.constant 0 : index
    %52 = vector.load %arg2[%c20, %c0_68] : memref<160x128xf32, #tpu.memory_space<vmem>>, vector<1x128xf32>
    %c21 = arith.constant 21 : index
    %c0_69 = arith.constant 0 : index
    %53 = vector.load %arg2[%c21, %c0_69] : memref<160x128xf32, #tpu.memory_space<vmem>>, vector<1x128xf32>
    %c22 = arith.constant 22 : index
    %c0_70 = arith.constant 0 : index
    %54 = vector.load %arg2[%c22, %c0_70] : memref<160x128xf32, #tpu.memory_space<vmem>>, vector<1x128xf32>
    %c23 = arith.constant 23 : index
    %c0_71 = arith.constant 0 : index
    %55 = vector.load %arg2[%c23, %c0_71] : memref<160x128xf32, #tpu.memory_space<vmem>>, vector<1x128xf32>
    %c24 = arith.constant 24 : index
    %c0_72 = arith.constant 0 : index
    %56 = vector.load %arg2[%c24, %c0_72] : memref<160x128xf32, #tpu.memory_space<vmem>>, vector<1x128xf32>
    %c25 = arith.constant 25 : index
    %c0_73 = arith.constant 0 : index
    %57 = vector.load %arg2[%c25, %c0_73] : memref<160x128xf32, #tpu.memory_space<vmem>>, vector<1x128xf32>
    %c26 = arith.constant 26 : index
    %c0_74 = arith.constant 0 : index
    %58 = vector.load %arg2[%c26, %c0_74] : memref<160x128xf32, #tpu.memory_space<vmem>>, vector<1x128xf32>
    %c27 = arith.constant 27 : index
    %c0_75 = arith.constant 0 : index
    %59 = vector.load %arg2[%c27, %c0_75] : memref<160x128xf32, #tpu.memory_space<vmem>>, vector<1x128xf32>
    %c28 = arith.constant 28 : index
    %c0_76 = arith.constant 0 : index
    %60 = vector.load %arg2[%c28, %c0_76] : memref<160x128xf32, #tpu.memory_space<vmem>>, vector<1x128xf32>
    %c29 = arith.constant 29 : index
    %c0_77 = arith.constant 0 : index
    %61 = vector.load %arg2[%c29, %c0_77] : memref<160x128xf32, #tpu.memory_space<vmem>>, vector<1x128xf32>
    %c30 = arith.constant 30 : index
    %c0_78 = arith.constant 0 : index
    %62 = vector.load %arg2[%c30, %c0_78] : memref<160x128xf32, #tpu.memory_space<vmem>>, vector<1x128xf32>
    %c31 = arith.constant 31 : index
    %c0_79 = arith.constant 0 : index
    %63 = vector.load %arg2[%c31, %c0_79] : memref<160x128xf32, #tpu.memory_space<vmem>>, vector<1x128xf32>
    %c32 = arith.constant 32 : index
    %c0_80 = arith.constant 0 : index
    %64 = vector.load %arg2[%c32, %c0_80] : memref<160x128xf32, #tpu.memory_space<vmem>>, vector<1x128xf32>
    %c33 = arith.constant 33 : index
    %c0_81 = arith.constant 0 : index
    %65 = vector.load %arg2[%c33, %c0_81] : memref<160x128xf32, #tpu.memory_space<vmem>>, vector<1x128xf32>
    %c34 = arith.constant 34 : index
    %c0_82 = arith.constant 0 : index
    %66 = vector.load %arg2[%c34, %c0_82] : memref<160x128xf32, #tpu.memory_space<vmem>>, vector<1x128xf32>
    %c35 = arith.constant 35 : index
    %c0_83 = arith.constant 0 : index
    %67 = vector.load %arg2[%c35, %c0_83] : memref<160x128xf32, #tpu.memory_space<vmem>>, vector<1x128xf32>
    %c36 = arith.constant 36 : index
    %c0_84 = arith.constant 0 : index
    %68 = vector.load %arg2[%c36, %c0_84] : memref<160x128xf32, #tpu.memory_space<vmem>>, vector<1x128xf32>
    %c37 = arith.constant 37 : index
    %c0_85 = arith.constant 0 : index
    %69 = vector.load %arg2[%c37, %c0_85] : memref<160x128xf32, #tpu.memory_space<vmem>>, vector<1x128xf32>
    %c38 = arith.constant 38 : index
    %c0_86 = arith.constant 0 : index
    %70 = vector.load %arg2[%c38, %c0_86] : memref<160x128xf32, #tpu.memory_space<vmem>>, vector<1x128xf32>
    %c39 = arith.constant 39 : index
    %c0_87 = arith.constant 0 : index
    %71 = vector.load %arg2[%c39, %c0_87] : memref<160x128xf32, #tpu.memory_space<vmem>>, vector<1x128xf32>
    %c40 = arith.constant 40 : index
    %c0_88 = arith.constant 0 : index
    %72 = vector.load %arg2[%c40, %c0_88] : memref<160x128xf32, #tpu.memory_space<vmem>>, vector<1x128xf32>
    %c41 = arith.constant 41 : index
    %c0_89 = arith.constant 0 : index
    %73 = vector.load %arg2[%c41, %c0_89] : memref<160x128xf32, #tpu.memory_space<vmem>>, vector<1x128xf32>
    %c42 = arith.constant 42 : index
    %c0_90 = arith.constant 0 : index
    %74 = vector.load %arg2[%c42, %c0_90] : memref<160x128xf32, #tpu.memory_space<vmem>>, vector<1x128xf32>
    %c43 = arith.constant 43 : index
    %c0_91 = arith.constant 0 : index
    %75 = vector.load %arg2[%c43, %c0_91] : memref<160x128xf32, #tpu.memory_space<vmem>>, vector<1x128xf32>
    %c44 = arith.constant 44 : index
    %c0_92 = arith.constant 0 : index
    %76 = vector.load %arg2[%c44, %c0_92] : memref<160x128xf32, #tpu.memory_space<vmem>>, vector<1x128xf32>
    %c45 = arith.constant 45 : index
    %c0_93 = arith.constant 0 : index
    %77 = vector.load %arg2[%c45, %c0_93] : memref<160x128xf32, #tpu.memory_space<vmem>>, vector<1x128xf32>
    %c46 = arith.constant 46 : index
    %c0_94 = arith.constant 0 : index
    %78 = vector.load %arg2[%c46, %c0_94] : memref<160x128xf32, #tpu.memory_space<vmem>>, vector<1x128xf32>
    %c47 = arith.constant 47 : index
    %c0_95 = arith.constant 0 : index
    %79 = vector.load %arg2[%c47, %c0_95] : memref<160x128xf32, #tpu.memory_space<vmem>>, vector<1x128xf32>
    %c48 = arith.constant 48 : index
    %c0_96 = arith.constant 0 : index
    %80 = vector.load %arg2[%c48, %c0_96] : memref<160x128xf32, #tpu.memory_space<vmem>>, vector<1x128xf32>
    %c49 = arith.constant 49 : index
    %c0_97 = arith.constant 0 : index
    %81 = vector.load %arg2[%c49, %c0_97] : memref<160x128xf32, #tpu.memory_space<vmem>>, vector<1x128xf32>
    %c50 = arith.constant 50 : index
    %c0_98 = arith.constant 0 : index
    %82 = vector.load %arg2[%c50, %c0_98] : memref<160x128xf32, #tpu.memory_space<vmem>>, vector<1x128xf32>
    %c51 = arith.constant 51 : index
    %c0_99 = arith.constant 0 : index
    %83 = vector.load %arg2[%c51, %c0_99] : memref<160x128xf32, #tpu.memory_space<vmem>>, vector<1x128xf32>
    %c52 = arith.constant 52 : index
    %c0_100 = arith.constant 0 : index
    %84 = vector.load %arg2[%c52, %c0_100] : memref<160x128xf32, #tpu.memory_space<vmem>>, vector<1x128xf32>
    %c53 = arith.constant 53 : index
    %c0_101 = arith.constant 0 : index
    %85 = vector.load %arg2[%c53, %c0_101] : memref<160x128xf32, #tpu.memory_space<vmem>>, vector<1x128xf32>
    %c54 = arith.constant 54 : index
    %c0_102 = arith.constant 0 : index
    %86 = vector.load %arg2[%c54, %c0_102] : memref<160x128xf32, #tpu.memory_space<vmem>>, vector<1x128xf32>
    %c55 = arith.constant 55 : index
    %c0_103 = arith.constant 0 : index
    %87 = vector.load %arg2[%c55, %c0_103] : memref<160x128xf32, #tpu.memory_space<vmem>>, vector<1x128xf32>
    %c56 = arith.constant 56 : index
    %c0_104 = arith.constant 0 : index
    %88 = vector.load %arg2[%c56, %c0_104] : memref<160x128xf32, #tpu.memory_space<vmem>>, vector<1x128xf32>
    %c57 = arith.constant 57 : index
    %c0_105 = arith.constant 0 : index
    %89 = vector.load %arg2[%c57, %c0_105] : memref<160x128xf32, #tpu.memory_space<vmem>>, vector<1x128xf32>
    %c58 = arith.constant 58 : index
    %c0_106 = arith.constant 0 : index
    %90 = vector.load %arg2[%c58, %c0_106] : memref<160x128xf32, #tpu.memory_space<vmem>>, vector<1x128xf32>
    %c59 = arith.constant 59 : index
    %c0_107 = arith.constant 0 : index
    %91 = vector.load %arg2[%c59, %c0_107] : memref<160x128xf32, #tpu.memory_space<vmem>>, vector<1x128xf32>
    %c60 = arith.constant 60 : index
    %c0_108 = arith.constant 0 : index
    %92 = vector.load %arg2[%c60, %c0_108] : memref<160x128xf32, #tpu.memory_space<vmem>>, vector<1x128xf32>
    %c61 = arith.constant 61 : index
    %c0_109 = arith.constant 0 : index
    %93 = vector.load %arg2[%c61, %c0_109] : memref<160x128xf32, #tpu.memory_space<vmem>>, vector<1x128xf32>
    %c62 = arith.constant 62 : index
    %c0_110 = arith.constant 0 : index
    %94 = vector.load %arg2[%c62, %c0_110] : memref<160x128xf32, #tpu.memory_space<vmem>>, vector<1x128xf32>
    %c63 = arith.constant 63 : index
    %c0_111 = arith.constant 0 : index
    %95 = vector.load %arg2[%c63, %c0_111] : memref<160x128xf32, #tpu.memory_space<vmem>>, vector<1x128xf32>
    %c64 = arith.constant 64 : index
    %c0_112 = arith.constant 0 : index
    %96 = vector.load %arg2[%c64, %c0_112] : memref<160x128xf32, #tpu.memory_space<vmem>>, vector<1x128xf32>
    %c65 = arith.constant 65 : index
    %c0_113 = arith.constant 0 : index
    %97 = vector.load %arg2[%c65, %c0_113] : memref<160x128xf32, #tpu.memory_space<vmem>>, vector<1x128xf32>
    %c66 = arith.constant 66 : index
    %c0_114 = arith.constant 0 : index
    %98 = vector.load %arg2[%c66, %c0_114] : memref<160x128xf32, #tpu.memory_space<vmem>>, vector<1x128xf32>
    %c67 = arith.constant 67 : index
    %c0_115 = arith.constant 0 : index
    %99 = vector.load %arg2[%c67, %c0_115] : memref<160x128xf32, #tpu.memory_space<vmem>>, vector<1x128xf32>
    %c68 = arith.constant 68 : index
    %c0_116 = arith.constant 0 : index
    %100 = vector.load %arg2[%c68, %c0_116] : memref<160x128xf32, #tpu.memory_space<vmem>>, vector<1x128xf32>
    %c69 = arith.constant 69 : index
    %c0_117 = arith.constant 0 : index
    %101 = vector.load %arg2[%c69, %c0_117] : memref<160x128xf32, #tpu.memory_space<vmem>>, vector<1x128xf32>
    %c70 = arith.constant 70 : index
    %c0_118 = arith.constant 0 : index
    %102 = vector.load %arg2[%c70, %c0_118] : memref<160x128xf32, #tpu.memory_space<vmem>>, vector<1x128xf32>
    %c71 = arith.constant 71 : index
    %c0_119 = arith.constant 0 : index
    %103 = vector.load %arg2[%c71, %c0_119] : memref<160x128xf32, #tpu.memory_space<vmem>>, vector<1x128xf32>
    %c72 = arith.constant 72 : index
    %c0_120 = arith.constant 0 : index
    %104 = vector.load %arg2[%c72, %c0_120] : memref<160x128xf32, #tpu.memory_space<vmem>>, vector<1x128xf32>
    %c73 = arith.constant 73 : index
    %c0_121 = arith.constant 0 : index
    %105 = vector.load %arg2[%c73, %c0_121] : memref<160x128xf32, #tpu.memory_space<vmem>>, vector<1x128xf32>
    %c74 = arith.constant 74 : index
    %c0_122 = arith.constant 0 : index
    %106 = vector.load %arg2[%c74, %c0_122] : memref<160x128xf32, #tpu.memory_space<vmem>>, vector<1x128xf32>
    %c75 = arith.constant 75 : index
    %c0_123 = arith.constant 0 : index
    %107 = vector.load %arg2[%c75, %c0_123] : memref<160x128xf32, #tpu.memory_space<vmem>>, vector<1x128xf32>
    %c76 = arith.constant 76 : index
    %c0_124 = arith.constant 0 : index
    %108 = vector.load %arg2[%c76, %c0_124] : memref<160x128xf32, #tpu.memory_space<vmem>>, vector<1x128xf32>
    %c77 = arith.constant 77 : index
    %c0_125 = arith.constant 0 : index
    %109 = vector.load %arg2[%c77, %c0_125] : memref<160x128xf32, #tpu.memory_space<vmem>>, vector<1x128xf32>
    %c78 = arith.constant 78 : index
    %c0_126 = arith.constant 0 : index
    %110 = vector.load %arg2[%c78, %c0_126] : memref<160x128xf32, #tpu.memory_space<vmem>>, vector<1x128xf32>
    %c79 = arith.constant 79 : index
    %c0_127 = arith.constant 0 : index
    %111 = vector.load %arg2[%c79, %c0_127] : memref<160x128xf32, #tpu.memory_space<vmem>>, vector<1x128xf32>
    %c80 = arith.constant 80 : index
    %c0_128 = arith.constant 0 : index
    %112 = vector.load %arg2[%c80, %c0_128] : memref<160x128xf32, #tpu.memory_space<vmem>>, vector<1x128xf32>
    %c81 = arith.constant 81 : index
    %c0_129 = arith.constant 0 : index
    %113 = vector.load %arg2[%c81, %c0_129] : memref<160x128xf32, #tpu.memory_space<vmem>>, vector<1x128xf32>
    %c82 = arith.constant 82 : index
    %c0_130 = arith.constant 0 : index
    %114 = vector.load %arg2[%c82, %c0_130] : memref<160x128xf32, #tpu.memory_space<vmem>>, vector<1x128xf32>
    %c83 = arith.constant 83 : index
    %c0_131 = arith.constant 0 : index
    %115 = vector.load %arg2[%c83, %c0_131] : memref<160x128xf32, #tpu.memory_space<vmem>>, vector<1x128xf32>
    %c84 = arith.constant 84 : index
    %c0_132 = arith.constant 0 : index
    %116 = vector.load %arg2[%c84, %c0_132] : memref<160x128xf32, #tpu.memory_space<vmem>>, vector<1x128xf32>
    %c85 = arith.constant 85 : index
    %c0_133 = arith.constant 0 : index
    %117 = vector.load %arg2[%c85, %c0_133] : memref<160x128xf32, #tpu.memory_space<vmem>>, vector<1x128xf32>
    %c86 = arith.constant 86 : index
    %c0_134 = arith.constant 0 : index
    %118 = vector.load %arg2[%c86, %c0_134] : memref<160x128xf32, #tpu.memory_space<vmem>>, vector<1x128xf32>
    %c87 = arith.constant 87 : index
    %c0_135 = arith.constant 0 : index
    %119 = vector.load %arg2[%c87, %c0_135] : memref<160x128xf32, #tpu.memory_space<vmem>>, vector<1x128xf32>
    %c88 = arith.constant 88 : index
    %c0_136 = arith.constant 0 : index
    %120 = vector.load %arg2[%c88, %c0_136] : memref<160x128xf32, #tpu.memory_space<vmem>>, vector<1x128xf32>
    %c89 = arith.constant 89 : index
    %c0_137 = arith.constant 0 : index
    %121 = vector.load %arg2[%c89, %c0_137] : memref<160x128xf32, #tpu.memory_space<vmem>>, vector<1x128xf32>
    %c90 = arith.constant 90 : index
    %c0_138 = arith.constant 0 : index
    %122 = vector.load %arg2[%c90, %c0_138] : memref<160x128xf32, #tpu.memory_space<vmem>>, vector<1x128xf32>
    %c91 = arith.constant 91 : index
    %c0_139 = arith.constant 0 : index
    %123 = vector.load %arg2[%c91, %c0_139] : memref<160x128xf32, #tpu.memory_space<vmem>>, vector<1x128xf32>
    %c92 = arith.constant 92 : index
    %c0_140 = arith.constant 0 : index
    %124 = vector.load %arg2[%c92, %c0_140] : memref<160x128xf32, #tpu.memory_space<vmem>>, vector<1x128xf32>
    %c93 = arith.constant 93 : index
    %c0_141 = arith.constant 0 : index
    %125 = vector.load %arg2[%c93, %c0_141] : memref<160x128xf32, #tpu.memory_space<vmem>>, vector<1x128xf32>
    %c94 = arith.constant 94 : index
    %c0_142 = arith.constant 0 : index
    %126 = vector.load %arg2[%c94, %c0_142] : memref<160x128xf32, #tpu.memory_space<vmem>>, vector<1x128xf32>
    %c95 = arith.constant 95 : index
    %c0_143 = arith.constant 0 : index
    %127 = vector.load %arg2[%c95, %c0_143] : memref<160x128xf32, #tpu.memory_space<vmem>>, vector<1x128xf32>
    %c96 = arith.constant 96 : index
    %c0_144 = arith.constant 0 : index
    %128 = vector.load %arg2[%c96, %c0_144] : memref<160x128xf32, #tpu.memory_space<vmem>>, vector<1x128xf32>
    %c97 = arith.constant 97 : index
    %c0_145 = arith.constant 0 : index
    %129 = vector.load %arg2[%c97, %c0_145] : memref<160x128xf32, #tpu.memory_space<vmem>>, vector<1x128xf32>
    %c98 = arith.constant 98 : index
    %c0_146 = arith.constant 0 : index
    %130 = vector.load %arg2[%c98, %c0_146] : memref<160x128xf32, #tpu.memory_space<vmem>>, vector<1x128xf32>
    %c99 = arith.constant 99 : index
    %c0_147 = arith.constant 0 : index
    %131 = vector.load %arg2[%c99, %c0_147] : memref<160x128xf32, #tpu.memory_space<vmem>>, vector<1x128xf32>
    %c100 = arith.constant 100 : index
    %c0_148 = arith.constant 0 : index
    %132 = vector.load %arg2[%c100, %c0_148] : memref<160x128xf32, #tpu.memory_space<vmem>>, vector<1x128xf32>
    %c101 = arith.constant 101 : index
    %c0_149 = arith.constant 0 : index
    %133 = vector.load %arg2[%c101, %c0_149] : memref<160x128xf32, #tpu.memory_space<vmem>>, vector<1x128xf32>
    %c102 = arith.constant 102 : index
    %c0_150 = arith.constant 0 : index
    %134 = vector.load %arg2[%c102, %c0_150] : memref<160x128xf32, #tpu.memory_space<vmem>>, vector<1x128xf32>
    %c103 = arith.constant 103 : index
    %c0_151 = arith.constant 0 : index
    %135 = vector.load %arg2[%c103, %c0_151] : memref<160x128xf32, #tpu.memory_space<vmem>>, vector<1x128xf32>
    %c104 = arith.constant 104 : index
    %c0_152 = arith.constant 0 : index
    %136 = vector.load %arg2[%c104, %c0_152] : memref<160x128xf32, #tpu.memory_space<vmem>>, vector<1x128xf32>
    %c105 = arith.constant 105 : index
    %c0_153 = arith.constant 0 : index
    %137 = vector.load %arg2[%c105, %c0_153] : memref<160x128xf32, #tpu.memory_space<vmem>>, vector<1x128xf32>
    %c106 = arith.constant 106 : index
    %c0_154 = arith.constant 0 : index
    %138 = vector.load %arg2[%c106, %c0_154] : memref<160x128xf32, #tpu.memory_space<vmem>>, vector<1x128xf32>
    %c107 = arith.constant 107 : index
    %c0_155 = arith.constant 0 : index
    %139 = vector.load %arg2[%c107, %c0_155] : memref<160x128xf32, #tpu.memory_space<vmem>>, vector<1x128xf32>
    %c108 = arith.constant 108 : index
    %c0_156 = arith.constant 0 : index
    %140 = vector.load %arg2[%c108, %c0_156] : memref<160x128xf32, #tpu.memory_space<vmem>>, vector<1x128xf32>
    %c109 = arith.constant 109 : index
    %c0_157 = arith.constant 0 : index
    %141 = vector.load %arg2[%c109, %c0_157] : memref<160x128xf32, #tpu.memory_space<vmem>>, vector<1x128xf32>
    %c110 = arith.constant 110 : index
    %c0_158 = arith.constant 0 : index
    %142 = vector.load %arg2[%c110, %c0_158] : memref<160x128xf32, #tpu.memory_space<vmem>>, vector<1x128xf32>
    %c111 = arith.constant 111 : index
    %c0_159 = arith.constant 0 : index
    %143 = vector.load %arg2[%c111, %c0_159] : memref<160x128xf32, #tpu.memory_space<vmem>>, vector<1x128xf32>
    %c112 = arith.constant 112 : index
    %c0_160 = arith.constant 0 : index
    %144 = vector.load %arg2[%c112, %c0_160] : memref<160x128xf32, #tpu.memory_space<vmem>>, vector<1x128xf32>
    %c113 = arith.constant 113 : index
    %c0_161 = arith.constant 0 : index
    %145 = vector.load %arg2[%c113, %c0_161] : memref<160x128xf32, #tpu.memory_space<vmem>>, vector<1x128xf32>
    %c114 = arith.constant 114 : index
    %c0_162 = arith.constant 0 : index
    %146 = vector.load %arg2[%c114, %c0_162] : memref<160x128xf32, #tpu.memory_space<vmem>>, vector<1x128xf32>
    %c115 = arith.constant 115 : index
    %c0_163 = arith.constant 0 : index
    %147 = vector.load %arg2[%c115, %c0_163] : memref<160x128xf32, #tpu.memory_space<vmem>>, vector<1x128xf32>
    %c116 = arith.constant 116 : index
    %c0_164 = arith.constant 0 : index
    %148 = vector.load %arg2[%c116, %c0_164] : memref<160x128xf32, #tpu.memory_space<vmem>>, vector<1x128xf32>
    %c117 = arith.constant 117 : index
    %c0_165 = arith.constant 0 : index
    %149 = vector.load %arg2[%c117, %c0_165] : memref<160x128xf32, #tpu.memory_space<vmem>>, vector<1x128xf32>
    %c118 = arith.constant 118 : index
    %c0_166 = arith.constant 0 : index
    %150 = vector.load %arg2[%c118, %c0_166] : memref<160x128xf32, #tpu.memory_space<vmem>>, vector<1x128xf32>
    %c119 = arith.constant 119 : index
    %c0_167 = arith.constant 0 : index
    %151 = vector.load %arg2[%c119, %c0_167] : memref<160x128xf32, #tpu.memory_space<vmem>>, vector<1x128xf32>
    %c120 = arith.constant 120 : index
    %c0_168 = arith.constant 0 : index
    %152 = vector.load %arg2[%c120, %c0_168] : memref<160x128xf32, #tpu.memory_space<vmem>>, vector<1x128xf32>
    %c121 = arith.constant 121 : index
    %c0_169 = arith.constant 0 : index
    %153 = vector.load %arg2[%c121, %c0_169] : memref<160x128xf32, #tpu.memory_space<vmem>>, vector<1x128xf32>
    %c122 = arith.constant 122 : index
    %c0_170 = arith.constant 0 : index
    %154 = vector.load %arg2[%c122, %c0_170] : memref<160x128xf32, #tpu.memory_space<vmem>>, vector<1x128xf32>
    %c123 = arith.constant 123 : index
    %c0_171 = arith.constant 0 : index
    %155 = vector.load %arg2[%c123, %c0_171] : memref<160x128xf32, #tpu.memory_space<vmem>>, vector<1x128xf32>
    %c124 = arith.constant 124 : index
    %c0_172 = arith.constant 0 : index
    %156 = vector.load %arg2[%c124, %c0_172] : memref<160x128xf32, #tpu.memory_space<vmem>>, vector<1x128xf32>
    %c125 = arith.constant 125 : index
    %c0_173 = arith.constant 0 : index
    %157 = vector.load %arg2[%c125, %c0_173] : memref<160x128xf32, #tpu.memory_space<vmem>>, vector<1x128xf32>
    %c126 = arith.constant 126 : index
    %c0_174 = arith.constant 0 : index
    %158 = vector.load %arg2[%c126, %c0_174] : memref<160x128xf32, #tpu.memory_space<vmem>>, vector<1x128xf32>
    %c127 = arith.constant 127 : index
    %c0_175 = arith.constant 0 : index
    %159 = vector.load %arg2[%c127, %c0_175] : memref<160x128xf32, #tpu.memory_space<vmem>>, vector<1x128xf32>
    %c128 = arith.constant 128 : index
    %c0_176 = arith.constant 0 : index
    %160 = vector.load %arg2[%c128, %c0_176] : memref<160x128xf32, #tpu.memory_space<vmem>>, vector<1x128xf32>
    %c129 = arith.constant 129 : index
    %c0_177 = arith.constant 0 : index
    %161 = vector.load %arg2[%c129, %c0_177] : memref<160x128xf32, #tpu.memory_space<vmem>>, vector<1x128xf32>
    %c130 = arith.constant 130 : index
    %c0_178 = arith.constant 0 : index
    %162 = vector.load %arg2[%c130, %c0_178] : memref<160x128xf32, #tpu.memory_space<vmem>>, vector<1x128xf32>
    %c131 = arith.constant 131 : index
    %c0_179 = arith.constant 0 : index
    %163 = vector.load %arg2[%c131, %c0_179] : memref<160x128xf32, #tpu.memory_space<vmem>>, vector<1x128xf32>
    %c132 = arith.constant 132 : index
    %c0_180 = arith.constant 0 : index
    %164 = vector.load %arg2[%c132, %c0_180] : memref<160x128xf32, #tpu.memory_space<vmem>>, vector<1x128xf32>
    %c133 = arith.constant 133 : index
    %c0_181 = arith.constant 0 : index
    %165 = vector.load %arg2[%c133, %c0_181] : memref<160x128xf32, #tpu.memory_space<vmem>>, vector<1x128xf32>
    %c134 = arith.constant 134 : index
    %c0_182 = arith.constant 0 : index
    %166 = vector.load %arg2[%c134, %c0_182] : memref<160x128xf32, #tpu.memory_space<vmem>>, vector<1x128xf32>
    %c135 = arith.constant 135 : index
    %c0_183 = arith.constant 0 : index
    %167 = vector.load %arg2[%c135, %c0_183] : memref<160x128xf32, #tpu.memory_space<vmem>>, vector<1x128xf32>
    %c136 = arith.constant 136 : index
    %c0_184 = arith.constant 0 : index
    %168 = vector.load %arg2[%c136, %c0_184] : memref<160x128xf32, #tpu.memory_space<vmem>>, vector<1x128xf32>
    %c137 = arith.constant 137 : index
    %c0_185 = arith.constant 0 : index
    %169 = vector.load %arg2[%c137, %c0_185] : memref<160x128xf32, #tpu.memory_space<vmem>>, vector<1x128xf32>
    %c138 = arith.constant 138 : index
    %c0_186 = arith.constant 0 : index
    %170 = vector.load %arg2[%c138, %c0_186] : memref<160x128xf32, #tpu.memory_space<vmem>>, vector<1x128xf32>
    %c139 = arith.constant 139 : index
    %c0_187 = arith.constant 0 : index
    %171 = vector.load %arg2[%c139, %c0_187] : memref<160x128xf32, #tpu.memory_space<vmem>>, vector<1x128xf32>
    %c140 = arith.constant 140 : index
    %c0_188 = arith.constant 0 : index
    %172 = vector.load %arg2[%c140, %c0_188] : memref<160x128xf32, #tpu.memory_space<vmem>>, vector<1x128xf32>
    %c141 = arith.constant 141 : index
    %c0_189 = arith.constant 0 : index
    %173 = vector.load %arg2[%c141, %c0_189] : memref<160x128xf32, #tpu.memory_space<vmem>>, vector<1x128xf32>
    %c142 = arith.constant 142 : index
    %c0_190 = arith.constant 0 : index
    %174 = vector.load %arg2[%c142, %c0_190] : memref<160x128xf32, #tpu.memory_space<vmem>>, vector<1x128xf32>
    %c143 = arith.constant 143 : index
    %c0_191 = arith.constant 0 : index
    %175 = vector.load %arg2[%c143, %c0_191] : memref<160x128xf32, #tpu.memory_space<vmem>>, vector<1x128xf32>
    %c144 = arith.constant 144 : index
    %c0_192 = arith.constant 0 : index
    %176 = vector.load %arg2[%c144, %c0_192] : memref<160x128xf32, #tpu.memory_space<vmem>>, vector<1x128xf32>
    %c145 = arith.constant 145 : index
    %c0_193 = arith.constant 0 : index
    %177 = vector.load %arg2[%c145, %c0_193] : memref<160x128xf32, #tpu.memory_space<vmem>>, vector<1x128xf32>
    %c146 = arith.constant 146 : index
    %c0_194 = arith.constant 0 : index
    %178 = vector.load %arg2[%c146, %c0_194] : memref<160x128xf32, #tpu.memory_space<vmem>>, vector<1x128xf32>
    %c147 = arith.constant 147 : index
    %c0_195 = arith.constant 0 : index
    %179 = vector.load %arg2[%c147, %c0_195] : memref<160x128xf32, #tpu.memory_space<vmem>>, vector<1x128xf32>
    %c148 = arith.constant 148 : index
    %c0_196 = arith.constant 0 : index
    %180 = vector.load %arg2[%c148, %c0_196] : memref<160x128xf32, #tpu.memory_space<vmem>>, vector<1x128xf32>
    %c149 = arith.constant 149 : index
    %c0_197 = arith.constant 0 : index
    %181 = vector.load %arg2[%c149, %c0_197] : memref<160x128xf32, #tpu.memory_space<vmem>>, vector<1x128xf32>
    %c150 = arith.constant 150 : index
    %c0_198 = arith.constant 0 : index
    %182 = vector.load %arg2[%c150, %c0_198] : memref<160x128xf32, #tpu.memory_space<vmem>>, vector<1x128xf32>
    %c151 = arith.constant 151 : index
    %c0_199 = arith.constant 0 : index
    %183 = vector.load %arg2[%c151, %c0_199] : memref<160x128xf32, #tpu.memory_space<vmem>>, vector<1x128xf32>
    %c152 = arith.constant 152 : index
    %c0_200 = arith.constant 0 : index
    %184 = vector.load %arg2[%c152, %c0_200] : memref<160x128xf32, #tpu.memory_space<vmem>>, vector<1x128xf32>
    %c153 = arith.constant 153 : index
    %c0_201 = arith.constant 0 : index
    %185 = vector.load %arg2[%c153, %c0_201] : memref<160x128xf32, #tpu.memory_space<vmem>>, vector<1x128xf32>
    %c154 = arith.constant 154 : index
    %c0_202 = arith.constant 0 : index
    %186 = vector.load %arg2[%c154, %c0_202] : memref<160x128xf32, #tpu.memory_space<vmem>>, vector<1x128xf32>
    %c155 = arith.constant 155 : index
    %c0_203 = arith.constant 0 : index
    %187 = vector.load %arg2[%c155, %c0_203] : memref<160x128xf32, #tpu.memory_space<vmem>>, vector<1x128xf32>
    %c156 = arith.constant 156 : index
    %c0_204 = arith.constant 0 : index
    %188 = vector.load %arg2[%c156, %c0_204] : memref<160x128xf32, #tpu.memory_space<vmem>>, vector<1x128xf32>
    %c157 = arith.constant 157 : index
    %c0_205 = arith.constant 0 : index
    %189 = vector.load %arg2[%c157, %c0_205] : memref<160x128xf32, #tpu.memory_space<vmem>>, vector<1x128xf32>
    %c158 = arith.constant 158 : index
    %c0_206 = arith.constant 0 : index
    %190 = vector.load %arg2[%c158, %c0_206] : memref<160x128xf32, #tpu.memory_space<vmem>>, vector<1x128xf32>
    %c159 = arith.constant 159 : index
    %c0_207 = arith.constant 0 : index
    %191 = vector.load %arg2[%c159, %c0_207] : memref<160x128xf32, #tpu.memory_space<vmem>>, vector<1x128xf32>
    %cst = arith.constant 0.000000e+00 : f32
    %192 = vector.broadcast %cst : f32 to vector<1x128xf32>
    %cst_208 = arith.constant 0.000000e+00 : f32
    %193 = vector.broadcast %cst_208 : f32 to vector<1x128xf32>
    %cst_209 = arith.constant 0.000000e+00 : f32
    %194 = vector.broadcast %cst_209 : f32 to vector<1x128xf32>
    %cst_210 = arith.constant 0.000000e+00 : f32
    %195 = vector.broadcast %cst_210 : f32 to vector<1x128xf32>
    %cst_211 = arith.constant 0.000000e+00 : f32
    %196 = vector.broadcast %cst_211 : f32 to vector<1x128xf32>
    %cst_212 = arith.constant 0.000000e+00 : f32
    %197 = vector.broadcast %cst_212 : f32 to vector<1x128xf32>
    %cst_213 = arith.constant 0.000000e+00 : f32
    %198 = vector.broadcast %cst_213 : f32 to vector<1x128xf32>
    %cst_214 = arith.constant 0.000000e+00 : f32
    %199 = vector.broadcast %cst_214 : f32 to vector<1x128xf32>
    %cst_215 = arith.constant 0.000000e+00 : f32
    %200 = vector.broadcast %cst_215 : f32 to vector<1x128xf32>
    %cst_216 = arith.constant 0.000000e+00 : f32
    %201 = vector.broadcast %cst_216 : f32 to vector<1x128xf32>
    %cst_217 = arith.constant 0.000000e+00 : f32
    %202 = vector.broadcast %cst_217 : f32 to vector<1x128xf32>
    %cst_218 = arith.constant 0.000000e+00 : f32
    %203 = vector.broadcast %cst_218 : f32 to vector<1x128xf32>
    %204 = vector.broadcast %32 : vector<1x128xf32> to vector<8x128xf32>
    %205 = arith.mulf %1, %204 : vector<8x128xf32>
    %206 = vector.broadcast %40 : vector<1x128xf32> to vector<8x128xf32>
    %207 = arith.mulf %3, %206 : vector<8x128xf32>
    %208 = arith.addf %205, %207 : vector<8x128xf32>
    %209 = vector.broadcast %48 : vector<1x128xf32> to vector<8x128xf32>
    %210 = arith.mulf %5, %209 : vector<8x128xf32>
    %211 = arith.addf %208, %210 : vector<8x128xf32>
    %212 = vector.broadcast %56 : vector<1x128xf32> to vector<8x128xf32>
    %213 = arith.mulf %7, %212 : vector<8x128xf32>
    %214 = arith.addf %211, %213 : vector<8x128xf32>
    %215 = vector.broadcast %64 : vector<1x128xf32> to vector<8x128xf32>
    %216 = arith.mulf %9, %215 : vector<8x128xf32>
    %217 = arith.addf %214, %216 : vector<8x128xf32>
    %218 = vector.broadcast %72 : vector<1x128xf32> to vector<8x128xf32>
    %219 = arith.mulf %11, %218 : vector<8x128xf32>
    %220 = arith.addf %217, %219 : vector<8x128xf32>
    %221 = vector.broadcast %80 : vector<1x128xf32> to vector<8x128xf32>
    %222 = arith.mulf %13, %221 : vector<8x128xf32>
    %223 = arith.addf %220, %222 : vector<8x128xf32>
    %224 = vector.broadcast %88 : vector<1x128xf32> to vector<8x128xf32>
    %225 = arith.mulf %15, %224 : vector<8x128xf32>
    %226 = arith.addf %223, %225 : vector<8x128xf32>
    %227 = vector.broadcast %96 : vector<1x128xf32> to vector<8x128xf32>
    %228 = arith.mulf %17, %227 : vector<8x128xf32>
    %229 = arith.addf %226, %228 : vector<8x128xf32>
    %230 = vector.broadcast %104 : vector<1x128xf32> to vector<8x128xf32>
    %231 = arith.mulf %19, %230 : vector<8x128xf32>
    %232 = arith.addf %229, %231 : vector<8x128xf32>
    %233 = vector.broadcast %112 : vector<1x128xf32> to vector<8x128xf32>
    %234 = arith.mulf %21, %233 : vector<8x128xf32>
    %235 = arith.addf %232, %234 : vector<8x128xf32>
    %236 = vector.broadcast %120 : vector<1x128xf32> to vector<8x128xf32>
    %237 = arith.mulf %23, %236 : vector<8x128xf32>
    %238 = arith.addf %235, %237 : vector<8x128xf32>
    %239 = vector.broadcast %128 : vector<1x128xf32> to vector<8x128xf32>
    %240 = arith.mulf %25, %239 : vector<8x128xf32>
    %241 = arith.addf %238, %240 : vector<8x128xf32>
    %242 = vector.broadcast %136 : vector<1x128xf32> to vector<8x128xf32>
    %243 = arith.mulf %27, %242 : vector<8x128xf32>
    %244 = arith.addf %241, %243 : vector<8x128xf32>
    %245 = vector.broadcast %144 : vector<1x128xf32> to vector<8x128xf32>
    %246 = arith.mulf %29, %245 : vector<8x128xf32>
    %247 = arith.addf %244, %246 : vector<8x128xf32>
    %248 = vector.broadcast %152 : vector<1x128xf32> to vector<8x128xf32>
    %249 = arith.mulf %31, %248 : vector<8x128xf32>
    %250 = arith.addf %247, %249 : vector<8x128xf32>
    %251 = math.tanh %250 : vector<8x128xf32>
    %cst_219 = arith.constant dense<0.000000e+00> : vector<128xf32>
    %252 = vector.multi_reduction <add>, %251, %cst_219 [0] : vector<8x128xf32> to vector<128xf32>
    %253 = vector.shape_cast %252 : vector<128xf32> to vector<1x128xf32>
    %254 = arith.addf %192, %253 : vector<1x128xf32>
    %255 = vector.broadcast %33 : vector<1x128xf32> to vector<8x128xf32>
    %256 = arith.mulf %1, %255 : vector<8x128xf32>
    %257 = vector.broadcast %41 : vector<1x128xf32> to vector<8x128xf32>
    %258 = arith.mulf %3, %257 : vector<8x128xf32>
    %259 = arith.addf %256, %258 : vector<8x128xf32>
    %260 = vector.broadcast %49 : vector<1x128xf32> to vector<8x128xf32>
    %261 = arith.mulf %5, %260 : vector<8x128xf32>
    %262 = arith.addf %259, %261 : vector<8x128xf32>
    %263 = vector.broadcast %57 : vector<1x128xf32> to vector<8x128xf32>
    %264 = arith.mulf %7, %263 : vector<8x128xf32>
    %265 = arith.addf %262, %264 : vector<8x128xf32>
    %266 = vector.broadcast %65 : vector<1x128xf32> to vector<8x128xf32>
    %267 = arith.mulf %9, %266 : vector<8x128xf32>
    %268 = arith.addf %265, %267 : vector<8x128xf32>
    %269 = vector.broadcast %73 : vector<1x128xf32> to vector<8x128xf32>
    %270 = arith.mulf %11, %269 : vector<8x128xf32>
    %271 = arith.addf %268, %270 : vector<8x128xf32>
    %272 = vector.broadcast %81 : vector<1x128xf32> to vector<8x128xf32>
    %273 = arith.mulf %13, %272 : vector<8x128xf32>
    %274 = arith.addf %271, %273 : vector<8x128xf32>
    %275 = vector.broadcast %89 : vector<1x128xf32> to vector<8x128xf32>
    %276 = arith.mulf %15, %275 : vector<8x128xf32>
    %277 = arith.addf %274, %276 : vector<8x128xf32>
    %278 = vector.broadcast %97 : vector<1x128xf32> to vector<8x128xf32>
    %279 = arith.mulf %17, %278 : vector<8x128xf32>
    %280 = arith.addf %277, %279 : vector<8x128xf32>
    %281 = vector.broadcast %105 : vector<1x128xf32> to vector<8x128xf32>
    %282 = arith.mulf %19, %281 : vector<8x128xf32>
    %283 = arith.addf %280, %282 : vector<8x128xf32>
    %284 = vector.broadcast %113 : vector<1x128xf32> to vector<8x128xf32>
    %285 = arith.mulf %21, %284 : vector<8x128xf32>
    %286 = arith.addf %283, %285 : vector<8x128xf32>
    %287 = vector.broadcast %121 : vector<1x128xf32> to vector<8x128xf32>
    %288 = arith.mulf %23, %287 : vector<8x128xf32>
    %289 = arith.addf %286, %288 : vector<8x128xf32>
    %290 = vector.broadcast %129 : vector<1x128xf32> to vector<8x128xf32>
    %291 = arith.mulf %25, %290 : vector<8x128xf32>
    %292 = arith.addf %289, %291 : vector<8x128xf32>
    %293 = vector.broadcast %137 : vector<1x128xf32> to vector<8x128xf32>
    %294 = arith.mulf %27, %293 : vector<8x128xf32>
    %295 = arith.addf %292, %294 : vector<8x128xf32>
    %296 = vector.broadcast %145 : vector<1x128xf32> to vector<8x128xf32>
    %297 = arith.mulf %29, %296 : vector<8x128xf32>
    %298 = arith.addf %295, %297 : vector<8x128xf32>
    %299 = vector.broadcast %153 : vector<1x128xf32> to vector<8x128xf32>
    %300 = arith.mulf %31, %299 : vector<8x128xf32>
    %301 = arith.addf %298, %300 : vector<8x128xf32>
    %302 = math.tanh %301 : vector<8x128xf32>
    %cst_220 = arith.constant dense<0.000000e+00> : vector<128xf32>
    %303 = vector.multi_reduction <add>, %302, %cst_220 [0] : vector<8x128xf32> to vector<128xf32>
    %304 = vector.shape_cast %303 : vector<128xf32> to vector<1x128xf32>
    %305 = arith.addf %193, %304 : vector<1x128xf32>
    %306 = vector.broadcast %34 : vector<1x128xf32> to vector<8x128xf32>
    %307 = arith.mulf %1, %306 : vector<8x128xf32>
    %308 = vector.broadcast %42 : vector<1x128xf32> to vector<8x128xf32>
    %309 = arith.mulf %3, %308 : vector<8x128xf32>
    %310 = arith.addf %307, %309 : vector<8x128xf32>
    %311 = vector.broadcast %50 : vector<1x128xf32> to vector<8x128xf32>
    %312 = arith.mulf %5, %311 : vector<8x128xf32>
    %313 = arith.addf %310, %312 : vector<8x128xf32>
    %314 = vector.broadcast %58 : vector<1x128xf32> to vector<8x128xf32>
    %315 = arith.mulf %7, %314 : vector<8x128xf32>
    %316 = arith.addf %313, %315 : vector<8x128xf32>
    %317 = vector.broadcast %66 : vector<1x128xf32> to vector<8x128xf32>
    %318 = arith.mulf %9, %317 : vector<8x128xf32>
    %319 = arith.addf %316, %318 : vector<8x128xf32>
    %320 = vector.broadcast %74 : vector<1x128xf32> to vector<8x128xf32>
    %321 = arith.mulf %11, %320 : vector<8x128xf32>
    %322 = arith.addf %319, %321 : vector<8x128xf32>
    %323 = vector.broadcast %82 : vector<1x128xf32> to vector<8x128xf32>
    %324 = arith.mulf %13, %323 : vector<8x128xf32>
    %325 = arith.addf %322, %324 : vector<8x128xf32>
    %326 = vector.broadcast %90 : vector<1x128xf32> to vector<8x128xf32>
    %327 = arith.mulf %15, %326 : vector<8x128xf32>
    %328 = arith.addf %325, %327 : vector<8x128xf32>
    %329 = vector.broadcast %98 : vector<1x128xf32> to vector<8x128xf32>
    %330 = arith.mulf %17, %329 : vector<8x128xf32>
    %331 = arith.addf %328, %330 : vector<8x128xf32>
    %332 = vector.broadcast %106 : vector<1x128xf32> to vector<8x128xf32>
    %333 = arith.mulf %19, %332 : vector<8x128xf32>
    %334 = arith.addf %331, %333 : vector<8x128xf32>
    %335 = vector.broadcast %114 : vector<1x128xf32> to vector<8x128xf32>
    %336 = arith.mulf %21, %335 : vector<8x128xf32>
    %337 = arith.addf %334, %336 : vector<8x128xf32>
    %338 = vector.broadcast %122 : vector<1x128xf32> to vector<8x128xf32>
    %339 = arith.mulf %23, %338 : vector<8x128xf32>
    %340 = arith.addf %337, %339 : vector<8x128xf32>
    %341 = vector.broadcast %130 : vector<1x128xf32> to vector<8x128xf32>
    %342 = arith.mulf %25, %341 : vector<8x128xf32>
    %343 = arith.addf %340, %342 : vector<8x128xf32>
    %344 = vector.broadcast %138 : vector<1x128xf32> to vector<8x128xf32>
    %345 = arith.mulf %27, %344 : vector<8x128xf32>
    %346 = arith.addf %343, %345 : vector<8x128xf32>
    %347 = vector.broadcast %146 : vector<1x128xf32> to vector<8x128xf32>
    %348 = arith.mulf %29, %347 : vector<8x128xf32>
    %349 = arith.addf %346, %348 : vector<8x128xf32>
    %350 = vector.broadcast %154 : vector<1x128xf32> to vector<8x128xf32>
    %351 = arith.mulf %31, %350 : vector<8x128xf32>
    %352 = arith.addf %349, %351 : vector<8x128xf32>
    %353 = math.tanh %352 : vector<8x128xf32>
    %cst_221 = arith.constant dense<0.000000e+00> : vector<128xf32>
    %354 = vector.multi_reduction <add>, %353, %cst_221 [0] : vector<8x128xf32> to vector<128xf32>
    %355 = vector.shape_cast %354 : vector<128xf32> to vector<1x128xf32>
    %356 = arith.addf %194, %355 : vector<1x128xf32>
    %357 = vector.broadcast %35 : vector<1x128xf32> to vector<8x128xf32>
    %358 = arith.mulf %1, %357 : vector<8x128xf32>
    %359 = vector.broadcast %43 : vector<1x128xf32> to vector<8x128xf32>
    %360 = arith.mulf %3, %359 : vector<8x128xf32>
    %361 = arith.addf %358, %360 : vector<8x128xf32>
    %362 = vector.broadcast %51 : vector<1x128xf32> to vector<8x128xf32>
    %363 = arith.mulf %5, %362 : vector<8x128xf32>
    %364 = arith.addf %361, %363 : vector<8x128xf32>
    %365 = vector.broadcast %59 : vector<1x128xf32> to vector<8x128xf32>
    %366 = arith.mulf %7, %365 : vector<8x128xf32>
    %367 = arith.addf %364, %366 : vector<8x128xf32>
    %368 = vector.broadcast %67 : vector<1x128xf32> to vector<8x128xf32>
    %369 = arith.mulf %9, %368 : vector<8x128xf32>
    %370 = arith.addf %367, %369 : vector<8x128xf32>
    %371 = vector.broadcast %75 : vector<1x128xf32> to vector<8x128xf32>
    %372 = arith.mulf %11, %371 : vector<8x128xf32>
    %373 = arith.addf %370, %372 : vector<8x128xf32>
    %374 = vector.broadcast %83 : vector<1x128xf32> to vector<8x128xf32>
    %375 = arith.mulf %13, %374 : vector<8x128xf32>
    %376 = arith.addf %373, %375 : vector<8x128xf32>
    %377 = vector.broadcast %91 : vector<1x128xf32> to vector<8x128xf32>
    %378 = arith.mulf %15, %377 : vector<8x128xf32>
    %379 = arith.addf %376, %378 : vector<8x128xf32>
    %380 = vector.broadcast %99 : vector<1x128xf32> to vector<8x128xf32>
    %381 = arith.mulf %17, %380 : vector<8x128xf32>
    %382 = arith.addf %379, %381 : vector<8x128xf32>
    %383 = vector.broadcast %107 : vector<1x128xf32> to vector<8x128xf32>
    %384 = arith.mulf %19, %383 : vector<8x128xf32>
    %385 = arith.addf %382, %384 : vector<8x128xf32>
    %386 = vector.broadcast %115 : vector<1x128xf32> to vector<8x128xf32>
    %387 = arith.mulf %21, %386 : vector<8x128xf32>
    %388 = arith.addf %385, %387 : vector<8x128xf32>
    %389 = vector.broadcast %123 : vector<1x128xf32> to vector<8x128xf32>
    %390 = arith.mulf %23, %389 : vector<8x128xf32>
    %391 = arith.addf %388, %390 : vector<8x128xf32>
    %392 = vector.broadcast %131 : vector<1x128xf32> to vector<8x128xf32>
    %393 = arith.mulf %25, %392 : vector<8x128xf32>
    %394 = arith.addf %391, %393 : vector<8x128xf32>
    %395 = vector.broadcast %139 : vector<1x128xf32> to vector<8x128xf32>
    %396 = arith.mulf %27, %395 : vector<8x128xf32>
    %397 = arith.addf %394, %396 : vector<8x128xf32>
    %398 = vector.broadcast %147 : vector<1x128xf32> to vector<8x128xf32>
    %399 = arith.mulf %29, %398 : vector<8x128xf32>
    %400 = arith.addf %397, %399 : vector<8x128xf32>
    %401 = vector.broadcast %155 : vector<1x128xf32> to vector<8x128xf32>
    %402 = arith.mulf %31, %401 : vector<8x128xf32>
    %403 = arith.addf %400, %402 : vector<8x128xf32>
    %404 = math.tanh %403 : vector<8x128xf32>
    %cst_222 = arith.constant dense<0.000000e+00> : vector<128xf32>
    %405 = vector.multi_reduction <add>, %404, %cst_222 [0] : vector<8x128xf32> to vector<128xf32>
    %406 = vector.shape_cast %405 : vector<128xf32> to vector<1x128xf32>
    %407 = arith.addf %195, %406 : vector<1x128xf32>
    %408 = vector.broadcast %36 : vector<1x128xf32> to vector<8x128xf32>
    %409 = arith.mulf %1, %408 : vector<8x128xf32>
    %410 = vector.broadcast %44 : vector<1x128xf32> to vector<8x128xf32>
    %411 = arith.mulf %3, %410 : vector<8x128xf32>
    %412 = arith.addf %409, %411 : vector<8x128xf32>
    %413 = vector.broadcast %52 : vector<1x128xf32> to vector<8x128xf32>
    %414 = arith.mulf %5, %413 : vector<8x128xf32>
    %415 = arith.addf %412, %414 : vector<8x128xf32>
    %416 = vector.broadcast %60 : vector<1x128xf32> to vector<8x128xf32>
    %417 = arith.mulf %7, %416 : vector<8x128xf32>
    %418 = arith.addf %415, %417 : vector<8x128xf32>
    %419 = vector.broadcast %68 : vector<1x128xf32> to vector<8x128xf32>
    %420 = arith.mulf %9, %419 : vector<8x128xf32>
    %421 = arith.addf %418, %420 : vector<8x128xf32>
    %422 = vector.broadcast %76 : vector<1x128xf32> to vector<8x128xf32>
    %423 = arith.mulf %11, %422 : vector<8x128xf32>
    %424 = arith.addf %421, %423 : vector<8x128xf32>
    %425 = vector.broadcast %84 : vector<1x128xf32> to vector<8x128xf32>
    %426 = arith.mulf %13, %425 : vector<8x128xf32>
    %427 = arith.addf %424, %426 : vector<8x128xf32>
    %428 = vector.broadcast %92 : vector<1x128xf32> to vector<8x128xf32>
    %429 = arith.mulf %15, %428 : vector<8x128xf32>
    %430 = arith.addf %427, %429 : vector<8x128xf32>
    %431 = vector.broadcast %100 : vector<1x128xf32> to vector<8x128xf32>
    %432 = arith.mulf %17, %431 : vector<8x128xf32>
    %433 = arith.addf %430, %432 : vector<8x128xf32>
    %434 = vector.broadcast %108 : vector<1x128xf32> to vector<8x128xf32>
    %435 = arith.mulf %19, %434 : vector<8x128xf32>
    %436 = arith.addf %433, %435 : vector<8x128xf32>
    %437 = vector.broadcast %116 : vector<1x128xf32> to vector<8x128xf32>
    %438 = arith.mulf %21, %437 : vector<8x128xf32>
    %439 = arith.addf %436, %438 : vector<8x128xf32>
    %440 = vector.broadcast %124 : vector<1x128xf32> to vector<8x128xf32>
    %441 = arith.mulf %23, %440 : vector<8x128xf32>
    %442 = arith.addf %439, %441 : vector<8x128xf32>
    %443 = vector.broadcast %132 : vector<1x128xf32> to vector<8x128xf32>
    %444 = arith.mulf %25, %443 : vector<8x128xf32>
    %445 = arith.addf %442, %444 : vector<8x128xf32>
    %446 = vector.broadcast %140 : vector<1x128xf32> to vector<8x128xf32>
    %447 = arith.mulf %27, %446 : vector<8x128xf32>
    %448 = arith.addf %445, %447 : vector<8x128xf32>
    %449 = vector.broadcast %148 : vector<1x128xf32> to vector<8x128xf32>
    %450 = arith.mulf %29, %449 : vector<8x128xf32>
    %451 = arith.addf %448, %450 : vector<8x128xf32>
    %452 = vector.broadcast %156 : vector<1x128xf32> to vector<8x128xf32>
    %453 = arith.mulf %31, %452 : vector<8x128xf32>
    %454 = arith.addf %451, %453 : vector<8x128xf32>
    %455 = math.tanh %454 : vector<8x128xf32>
    %cst_223 = arith.constant dense<0.000000e+00> : vector<128xf32>
    %456 = vector.multi_reduction <add>, %455, %cst_223 [0] : vector<8x128xf32> to vector<128xf32>
    %457 = vector.shape_cast %456 : vector<128xf32> to vector<1x128xf32>
    %458 = arith.addf %196, %457 : vector<1x128xf32>
    %459 = vector.broadcast %37 : vector<1x128xf32> to vector<8x128xf32>
    %460 = arith.mulf %1, %459 : vector<8x128xf32>
    %461 = vector.broadcast %45 : vector<1x128xf32> to vector<8x128xf32>
    %462 = arith.mulf %3, %461 : vector<8x128xf32>
    %463 = arith.addf %460, %462 : vector<8x128xf32>
    %464 = vector.broadcast %53 : vector<1x128xf32> to vector<8x128xf32>
    %465 = arith.mulf %5, %464 : vector<8x128xf32>
    %466 = arith.addf %463, %465 : vector<8x128xf32>
    %467 = vector.broadcast %61 : vector<1x128xf32> to vector<8x128xf32>
    %468 = arith.mulf %7, %467 : vector<8x128xf32>
    %469 = arith.addf %466, %468 : vector<8x128xf32>
    %470 = vector.broadcast %69 : vector<1x128xf32> to vector<8x128xf32>
    %471 = arith.mulf %9, %470 : vector<8x128xf32>
    %472 = arith.addf %469, %471 : vector<8x128xf32>
    %473 = vector.broadcast %77 : vector<1x128xf32> to vector<8x128xf32>
    %474 = arith.mulf %11, %473 : vector<8x128xf32>
    %475 = arith.addf %472, %474 : vector<8x128xf32>
    %476 = vector.broadcast %85 : vector<1x128xf32> to vector<8x128xf32>
    %477 = arith.mulf %13, %476 : vector<8x128xf32>
    %478 = arith.addf %475, %477 : vector<8x128xf32>
    %479 = vector.broadcast %93 : vector<1x128xf32> to vector<8x128xf32>
    %480 = arith.mulf %15, %479 : vector<8x128xf32>
    %481 = arith.addf %478, %480 : vector<8x128xf32>
    %482 = vector.broadcast %101 : vector<1x128xf32> to vector<8x128xf32>
    %483 = arith.mulf %17, %482 : vector<8x128xf32>
    %484 = arith.addf %481, %483 : vector<8x128xf32>
    %485 = vector.broadcast %109 : vector<1x128xf32> to vector<8x128xf32>
    %486 = arith.mulf %19, %485 : vector<8x128xf32>
    %487 = arith.addf %484, %486 : vector<8x128xf32>
    %488 = vector.broadcast %117 : vector<1x128xf32> to vector<8x128xf32>
    %489 = arith.mulf %21, %488 : vector<8x128xf32>
    %490 = arith.addf %487, %489 : vector<8x128xf32>
    %491 = vector.broadcast %125 : vector<1x128xf32> to vector<8x128xf32>
    %492 = arith.mulf %23, %491 : vector<8x128xf32>
    %493 = arith.addf %490, %492 : vector<8x128xf32>
    %494 = vector.broadcast %133 : vector<1x128xf32> to vector<8x128xf32>
    %495 = arith.mulf %25, %494 : vector<8x128xf32>
    %496 = arith.addf %493, %495 : vector<8x128xf32>
    %497 = vector.broadcast %141 : vector<1x128xf32> to vector<8x128xf32>
    %498 = arith.mulf %27, %497 : vector<8x128xf32>
    %499 = arith.addf %496, %498 : vector<8x128xf32>
    %500 = vector.broadcast %149 : vector<1x128xf32> to vector<8x128xf32>
    %501 = arith.mulf %29, %500 : vector<8x128xf32>
    %502 = arith.addf %499, %501 : vector<8x128xf32>
    %503 = vector.broadcast %157 : vector<1x128xf32> to vector<8x128xf32>
    %504 = arith.mulf %31, %503 : vector<8x128xf32>
    %505 = arith.addf %502, %504 : vector<8x128xf32>
    %506 = math.tanh %505 : vector<8x128xf32>
    %cst_224 = arith.constant dense<0.000000e+00> : vector<128xf32>
    %507 = vector.multi_reduction <add>, %506, %cst_224 [0] : vector<8x128xf32> to vector<128xf32>
    %508 = vector.shape_cast %507 : vector<128xf32> to vector<1x128xf32>
    %509 = arith.addf %197, %508 : vector<1x128xf32>
    %510 = vector.broadcast %38 : vector<1x128xf32> to vector<8x128xf32>
    %511 = arith.mulf %1, %510 : vector<8x128xf32>
    %512 = vector.broadcast %46 : vector<1x128xf32> to vector<8x128xf32>
    %513 = arith.mulf %3, %512 : vector<8x128xf32>
    %514 = arith.addf %511, %513 : vector<8x128xf32>
    %515 = vector.broadcast %54 : vector<1x128xf32> to vector<8x128xf32>
    %516 = arith.mulf %5, %515 : vector<8x128xf32>
    %517 = arith.addf %514, %516 : vector<8x128xf32>
    %518 = vector.broadcast %62 : vector<1x128xf32> to vector<8x128xf32>
    %519 = arith.mulf %7, %518 : vector<8x128xf32>
    %520 = arith.addf %517, %519 : vector<8x128xf32>
    %521 = vector.broadcast %70 : vector<1x128xf32> to vector<8x128xf32>
    %522 = arith.mulf %9, %521 : vector<8x128xf32>
    %523 = arith.addf %520, %522 : vector<8x128xf32>
    %524 = vector.broadcast %78 : vector<1x128xf32> to vector<8x128xf32>
    %525 = arith.mulf %11, %524 : vector<8x128xf32>
    %526 = arith.addf %523, %525 : vector<8x128xf32>
    %527 = vector.broadcast %86 : vector<1x128xf32> to vector<8x128xf32>
    %528 = arith.mulf %13, %527 : vector<8x128xf32>
    %529 = arith.addf %526, %528 : vector<8x128xf32>
    %530 = vector.broadcast %94 : vector<1x128xf32> to vector<8x128xf32>
    %531 = arith.mulf %15, %530 : vector<8x128xf32>
    %532 = arith.addf %529, %531 : vector<8x128xf32>
    %533 = vector.broadcast %102 : vector<1x128xf32> to vector<8x128xf32>
    %534 = arith.mulf %17, %533 : vector<8x128xf32>
    %535 = arith.addf %532, %534 : vector<8x128xf32>
    %536 = vector.broadcast %110 : vector<1x128xf32> to vector<8x128xf32>
    %537 = arith.mulf %19, %536 : vector<8x128xf32>
    %538 = arith.addf %535, %537 : vector<8x128xf32>
    %539 = vector.broadcast %118 : vector<1x128xf32> to vector<8x128xf32>
    %540 = arith.mulf %21, %539 : vector<8x128xf32>
    %541 = arith.addf %538, %540 : vector<8x128xf32>
    %542 = vector.broadcast %126 : vector<1x128xf32> to vector<8x128xf32>
    %543 = arith.mulf %23, %542 : vector<8x128xf32>
    %544 = arith.addf %541, %543 : vector<8x128xf32>
    %545 = vector.broadcast %134 : vector<1x128xf32> to vector<8x128xf32>
    %546 = arith.mulf %25, %545 : vector<8x128xf32>
    %547 = arith.addf %544, %546 : vector<8x128xf32>
    %548 = vector.broadcast %142 : vector<1x128xf32> to vector<8x128xf32>
    %549 = arith.mulf %27, %548 : vector<8x128xf32>
    %550 = arith.addf %547, %549 : vector<8x128xf32>
    %551 = vector.broadcast %150 : vector<1x128xf32> to vector<8x128xf32>
    %552 = arith.mulf %29, %551 : vector<8x128xf32>
    %553 = arith.addf %550, %552 : vector<8x128xf32>
    %554 = vector.broadcast %158 : vector<1x128xf32> to vector<8x128xf32>
    %555 = arith.mulf %31, %554 : vector<8x128xf32>
    %556 = arith.addf %553, %555 : vector<8x128xf32>
    %557 = math.tanh %556 : vector<8x128xf32>
    %cst_225 = arith.constant dense<0.000000e+00> : vector<128xf32>
    %558 = vector.multi_reduction <add>, %557, %cst_225 [0] : vector<8x128xf32> to vector<128xf32>
    %559 = vector.shape_cast %558 : vector<128xf32> to vector<1x128xf32>
    %560 = arith.addf %198, %559 : vector<1x128xf32>
    %561 = vector.broadcast %39 : vector<1x128xf32> to vector<8x128xf32>
    %562 = arith.mulf %1, %561 : vector<8x128xf32>
    %563 = vector.broadcast %47 : vector<1x128xf32> to vector<8x128xf32>
    %564 = arith.mulf %3, %563 : vector<8x128xf32>
    %565 = arith.addf %562, %564 : vector<8x128xf32>
    %566 = vector.broadcast %55 : vector<1x128xf32> to vector<8x128xf32>
    %567 = arith.mulf %5, %566 : vector<8x128xf32>
    %568 = arith.addf %565, %567 : vector<8x128xf32>
    %569 = vector.broadcast %63 : vector<1x128xf32> to vector<8x128xf32>
    %570 = arith.mulf %7, %569 : vector<8x128xf32>
    %571 = arith.addf %568, %570 : vector<8x128xf32>
    %572 = vector.broadcast %71 : vector<1x128xf32> to vector<8x128xf32>
    %573 = arith.mulf %9, %572 : vector<8x128xf32>
    %574 = arith.addf %571, %573 : vector<8x128xf32>
    %575 = vector.broadcast %79 : vector<1x128xf32> to vector<8x128xf32>
    %576 = arith.mulf %11, %575 : vector<8x128xf32>
    %577 = arith.addf %574, %576 : vector<8x128xf32>
    %578 = vector.broadcast %87 : vector<1x128xf32> to vector<8x128xf32>
    %579 = arith.mulf %13, %578 : vector<8x128xf32>
    %580 = arith.addf %577, %579 : vector<8x128xf32>
    %581 = vector.broadcast %95 : vector<1x128xf32> to vector<8x128xf32>
    %582 = arith.mulf %15, %581 : vector<8x128xf32>
    %583 = arith.addf %580, %582 : vector<8x128xf32>
    %584 = vector.broadcast %103 : vector<1x128xf32> to vector<8x128xf32>
    %585 = arith.mulf %17, %584 : vector<8x128xf32>
    %586 = arith.addf %583, %585 : vector<8x128xf32>
    %587 = vector.broadcast %111 : vector<1x128xf32> to vector<8x128xf32>
    %588 = arith.mulf %19, %587 : vector<8x128xf32>
    %589 = arith.addf %586, %588 : vector<8x128xf32>
    %590 = vector.broadcast %119 : vector<1x128xf32> to vector<8x128xf32>
    %591 = arith.mulf %21, %590 : vector<8x128xf32>
    %592 = arith.addf %589, %591 : vector<8x128xf32>
    %593 = vector.broadcast %127 : vector<1x128xf32> to vector<8x128xf32>
    %594 = arith.mulf %23, %593 : vector<8x128xf32>
    %595 = arith.addf %592, %594 : vector<8x128xf32>
    %596 = vector.broadcast %135 : vector<1x128xf32> to vector<8x128xf32>
    %597 = arith.mulf %25, %596 : vector<8x128xf32>
    %598 = arith.addf %595, %597 : vector<8x128xf32>
    %599 = vector.broadcast %143 : vector<1x128xf32> to vector<8x128xf32>
    %600 = arith.mulf %27, %599 : vector<8x128xf32>
    %601 = arith.addf %598, %600 : vector<8x128xf32>
    %602 = vector.broadcast %151 : vector<1x128xf32> to vector<8x128xf32>
    %603 = arith.mulf %29, %602 : vector<8x128xf32>
    %604 = arith.addf %601, %603 : vector<8x128xf32>
    %605 = vector.broadcast %159 : vector<1x128xf32> to vector<8x128xf32>
    %606 = arith.mulf %31, %605 : vector<8x128xf32>
    %607 = arith.addf %604, %606 : vector<8x128xf32>
    %608 = math.tanh %607 : vector<8x128xf32>
    %cst_226 = arith.constant dense<0.000000e+00> : vector<128xf32>
    %609 = vector.multi_reduction <add>, %608, %cst_226 [0] : vector<8x128xf32> to vector<128xf32>
    %610 = vector.shape_cast %609 : vector<128xf32> to vector<1x128xf32>
    %611 = arith.addf %199, %610 : vector<1x128xf32>
    %cst_227 = arith.constant dense<0.000000e+00> : vector<128xf32>
    %612 = vector.multi_reduction <add>, %251, %cst_227 [0] : vector<8x128xf32> to vector<128xf32>
    %613 = vector.shape_cast %612 : vector<128xf32> to vector<1x128xf32>
    %cst_228 = arith.constant dense<0.000000e+00> : vector<128xf32>
    %614 = vector.multi_reduction <add>, %302, %cst_228 [0] : vector<8x128xf32> to vector<128xf32>
    %615 = vector.shape_cast %614 : vector<128xf32> to vector<1x128xf32>
    %cst_229 = arith.constant dense<0.000000e+00> : vector<128xf32>
    %616 = vector.multi_reduction <add>, %353, %cst_229 [0] : vector<8x128xf32> to vector<128xf32>
    %617 = vector.shape_cast %616 : vector<128xf32> to vector<1x128xf32>
    %cst_230 = arith.constant dense<0.000000e+00> : vector<128xf32>
    %618 = vector.multi_reduction <add>, %404, %cst_230 [0] : vector<8x128xf32> to vector<128xf32>
    %619 = vector.shape_cast %618 : vector<128xf32> to vector<1x128xf32>
    %cst_231 = arith.constant dense<0.000000e+00> : vector<128xf32>
    %620 = vector.multi_reduction <add>, %455, %cst_231 [0] : vector<8x128xf32> to vector<128xf32>
    %621 = vector.shape_cast %620 : vector<128xf32> to vector<1x128xf32>
    %cst_232 = arith.constant dense<0.000000e+00> : vector<128xf32>
    %622 = vector.multi_reduction <add>, %506, %cst_232 [0] : vector<8x128xf32> to vector<128xf32>
    %623 = vector.shape_cast %622 : vector<128xf32> to vector<1x128xf32>
    %cst_233 = arith.constant dense<0.000000e+00> : vector<128xf32>
    %624 = vector.multi_reduction <add>, %557, %cst_233 [0] : vector<8x128xf32> to vector<128xf32>
    %625 = vector.shape_cast %624 : vector<128xf32> to vector<1x128xf32>
    %cst_234 = arith.constant dense<0.000000e+00> : vector<128xf32>
    %626 = vector.multi_reduction <add>, %608, %cst_234 [0] : vector<8x128xf32> to vector<128xf32>
    %627 = vector.shape_cast %626 : vector<128xf32> to vector<1x128xf32>
    %628 = arith.mulf %613, %160 : vector<1x128xf32>
    %629 = arith.mulf %615, %164 : vector<1x128xf32>
    %630 = arith.addf %628, %629 : vector<1x128xf32>
    %631 = arith.mulf %617, %168 : vector<1x128xf32>
    %632 = arith.addf %630, %631 : vector<1x128xf32>
    %633 = arith.mulf %619, %172 : vector<1x128xf32>
    %634 = arith.addf %632, %633 : vector<1x128xf32>
    %635 = arith.mulf %621, %176 : vector<1x128xf32>
    %636 = arith.addf %634, %635 : vector<1x128xf32>
    %637 = arith.mulf %623, %180 : vector<1x128xf32>
    %638 = arith.addf %636, %637 : vector<1x128xf32>
    %639 = arith.mulf %625, %184 : vector<1x128xf32>
    %640 = arith.addf %638, %639 : vector<1x128xf32>
    %641 = arith.mulf %627, %188 : vector<1x128xf32>
    %642 = arith.addf %640, %641 : vector<1x128xf32>
    %643 = arith.addf %200, %642 : vector<1x128xf32>
    %644 = arith.mulf %613, %161 : vector<1x128xf32>
    %645 = arith.mulf %615, %165 : vector<1x128xf32>
    %646 = arith.addf %644, %645 : vector<1x128xf32>
    %647 = arith.mulf %617, %169 : vector<1x128xf32>
    %648 = arith.addf %646, %647 : vector<1x128xf32>
    %649 = arith.mulf %619, %173 : vector<1x128xf32>
    %650 = arith.addf %648, %649 : vector<1x128xf32>
    %651 = arith.mulf %621, %177 : vector<1x128xf32>
    %652 = arith.addf %650, %651 : vector<1x128xf32>
    %653 = arith.mulf %623, %181 : vector<1x128xf32>
    %654 = arith.addf %652, %653 : vector<1x128xf32>
    %655 = arith.mulf %625, %185 : vector<1x128xf32>
    %656 = arith.addf %654, %655 : vector<1x128xf32>
    %657 = arith.mulf %627, %189 : vector<1x128xf32>
    %658 = arith.addf %656, %657 : vector<1x128xf32>
    %659 = arith.addf %201, %658 : vector<1x128xf32>
    %660 = arith.mulf %613, %162 : vector<1x128xf32>
    %661 = arith.mulf %615, %166 : vector<1x128xf32>
    %662 = arith.addf %660, %661 : vector<1x128xf32>
    %663 = arith.mulf %617, %170 : vector<1x128xf32>
    %664 = arith.addf %662, %663 : vector<1x128xf32>
    %665 = arith.mulf %619, %174 : vector<1x128xf32>
    %666 = arith.addf %664, %665 : vector<1x128xf32>
    %667 = arith.mulf %621, %178 : vector<1x128xf32>
    %668 = arith.addf %666, %667 : vector<1x128xf32>
    %669 = arith.mulf %623, %182 : vector<1x128xf32>
    %670 = arith.addf %668, %669 : vector<1x128xf32>
    %671 = arith.mulf %625, %186 : vector<1x128xf32>
    %672 = arith.addf %670, %671 : vector<1x128xf32>
    %673 = arith.mulf %627, %190 : vector<1x128xf32>
    %674 = arith.addf %672, %673 : vector<1x128xf32>
    %675 = arith.addf %202, %674 : vector<1x128xf32>
    %676 = arith.mulf %613, %163 : vector<1x128xf32>
    %677 = arith.mulf %615, %167 : vector<1x128xf32>
    %678 = arith.addf %676, %677 : vector<1x128xf32>
    %679 = arith.mulf %617, %171 : vector<1x128xf32>
    %680 = arith.addf %678, %679 : vector<1x128xf32>
    %681 = arith.mulf %619, %175 : vector<1x128xf32>
    %682 = arith.addf %680, %681 : vector<1x128xf32>
    %683 = arith.mulf %621, %179 : vector<1x128xf32>
    %684 = arith.addf %682, %683 : vector<1x128xf32>
    %685 = arith.mulf %623, %183 : vector<1x128xf32>
    %686 = arith.addf %684, %685 : vector<1x128xf32>
    %687 = arith.mulf %625, %187 : vector<1x128xf32>
    %688 = arith.addf %686, %687 : vector<1x128xf32>
    %689 = arith.mulf %627, %191 : vector<1x128xf32>
    %690 = arith.addf %688, %689 : vector<1x128xf32>
    %691 = arith.addf %203, %690 : vector<1x128xf32>
    %692 = arith.mulf %1, %1 : vector<8x128xf32>
    %693 = arith.mulf %3, %3 : vector<8x128xf32>
    %694 = arith.mulf %5, %5 : vector<8x128xf32>
    %695 = arith.mulf %7, %7 : vector<8x128xf32>
    %696 = arith.mulf %9, %9 : vector<8x128xf32>
    %697 = arith.mulf %11, %11 : vector<8x128xf32>
    %698 = arith.mulf %13, %13 : vector<8x128xf32>
    %699 = arith.mulf %15, %15 : vector<8x128xf32>
    %700 = arith.mulf %17, %17 : vector<8x128xf32>
    %701 = arith.mulf %19, %19 : vector<8x128xf32>
    %702 = arith.mulf %21, %21 : vector<8x128xf32>
    %703 = arith.mulf %23, %23 : vector<8x128xf32>
    %704 = arith.mulf %25, %25 : vector<8x128xf32>
    %705 = arith.mulf %27, %27 : vector<8x128xf32>
    %706 = arith.mulf %29, %29 : vector<8x128xf32>
    %707 = arith.mulf %31, %31 : vector<8x128xf32>
    %708 = vector.broadcast %32 : vector<1x128xf32> to vector<8x128xf32>
    %709 = arith.mulf %692, %708 : vector<8x128xf32>
    %710 = vector.broadcast %40 : vector<1x128xf32> to vector<8x128xf32>
    %711 = arith.mulf %693, %710 : vector<8x128xf32>
    %712 = arith.addf %709, %711 : vector<8x128xf32>
    %713 = vector.broadcast %48 : vector<1x128xf32> to vector<8x128xf32>
    %714 = arith.mulf %694, %713 : vector<8x128xf32>
    %715 = arith.addf %712, %714 : vector<8x128xf32>
    %716 = vector.broadcast %56 : vector<1x128xf32> to vector<8x128xf32>
    %717 = arith.mulf %695, %716 : vector<8x128xf32>
    %718 = arith.addf %715, %717 : vector<8x128xf32>
    %719 = vector.broadcast %64 : vector<1x128xf32> to vector<8x128xf32>
    %720 = arith.mulf %696, %719 : vector<8x128xf32>
    %721 = arith.addf %718, %720 : vector<8x128xf32>
    %722 = vector.broadcast %72 : vector<1x128xf32> to vector<8x128xf32>
    %723 = arith.mulf %697, %722 : vector<8x128xf32>
    %724 = arith.addf %721, %723 : vector<8x128xf32>
    %725 = vector.broadcast %80 : vector<1x128xf32> to vector<8x128xf32>
    %726 = arith.mulf %698, %725 : vector<8x128xf32>
    %727 = arith.addf %724, %726 : vector<8x128xf32>
    %728 = vector.broadcast %88 : vector<1x128xf32> to vector<8x128xf32>
    %729 = arith.mulf %699, %728 : vector<8x128xf32>
    %730 = arith.addf %727, %729 : vector<8x128xf32>
    %731 = vector.broadcast %96 : vector<1x128xf32> to vector<8x128xf32>
    %732 = arith.mulf %700, %731 : vector<8x128xf32>
    %733 = arith.addf %730, %732 : vector<8x128xf32>
    %734 = vector.broadcast %104 : vector<1x128xf32> to vector<8x128xf32>
    %735 = arith.mulf %701, %734 : vector<8x128xf32>
    %736 = arith.addf %733, %735 : vector<8x128xf32>
    %737 = vector.broadcast %112 : vector<1x128xf32> to vector<8x128xf32>
    %738 = arith.mulf %702, %737 : vector<8x128xf32>
    %739 = arith.addf %736, %738 : vector<8x128xf32>
    %740 = vector.broadcast %120 : vector<1x128xf32> to vector<8x128xf32>
    %741 = arith.mulf %703, %740 : vector<8x128xf32>
    %742 = arith.addf %739, %741 : vector<8x128xf32>
    %743 = vector.broadcast %128 : vector<1x128xf32> to vector<8x128xf32>
    %744 = arith.mulf %704, %743 : vector<8x128xf32>
    %745 = arith.addf %742, %744 : vector<8x128xf32>
    %746 = vector.broadcast %136 : vector<1x128xf32> to vector<8x128xf32>
    %747 = arith.mulf %705, %746 : vector<8x128xf32>
    %748 = arith.addf %745, %747 : vector<8x128xf32>
    %749 = vector.broadcast %144 : vector<1x128xf32> to vector<8x128xf32>
    %750 = arith.mulf %706, %749 : vector<8x128xf32>
    %751 = arith.addf %748, %750 : vector<8x128xf32>
    %752 = vector.broadcast %152 : vector<1x128xf32> to vector<8x128xf32>
    %753 = arith.mulf %707, %752 : vector<8x128xf32>
    %754 = arith.addf %751, %753 : vector<8x128xf32>
    %755 = math.tanh %754 : vector<8x128xf32>
    %cst_235 = arith.constant dense<0.000000e+00> : vector<128xf32>
    %756 = vector.multi_reduction <add>, %755, %cst_235 [0] : vector<8x128xf32> to vector<128xf32>
    %757 = vector.shape_cast %756 : vector<128xf32> to vector<1x128xf32>
    %758 = arith.addf %254, %757 : vector<1x128xf32>
    %759 = vector.broadcast %33 : vector<1x128xf32> to vector<8x128xf32>
    %760 = arith.mulf %692, %759 : vector<8x128xf32>
    %761 = vector.broadcast %41 : vector<1x128xf32> to vector<8x128xf32>
    %762 = arith.mulf %693, %761 : vector<8x128xf32>
    %763 = arith.addf %760, %762 : vector<8x128xf32>
    %764 = vector.broadcast %49 : vector<1x128xf32> to vector<8x128xf32>
    %765 = arith.mulf %694, %764 : vector<8x128xf32>
    %766 = arith.addf %763, %765 : vector<8x128xf32>
    %767 = vector.broadcast %57 : vector<1x128xf32> to vector<8x128xf32>
    %768 = arith.mulf %695, %767 : vector<8x128xf32>
    %769 = arith.addf %766, %768 : vector<8x128xf32>
    %770 = vector.broadcast %65 : vector<1x128xf32> to vector<8x128xf32>
    %771 = arith.mulf %696, %770 : vector<8x128xf32>
    %772 = arith.addf %769, %771 : vector<8x128xf32>
    %773 = vector.broadcast %73 : vector<1x128xf32> to vector<8x128xf32>
    %774 = arith.mulf %697, %773 : vector<8x128xf32>
    %775 = arith.addf %772, %774 : vector<8x128xf32>
    %776 = vector.broadcast %81 : vector<1x128xf32> to vector<8x128xf32>
    %777 = arith.mulf %698, %776 : vector<8x128xf32>
    %778 = arith.addf %775, %777 : vector<8x128xf32>
    %779 = vector.broadcast %89 : vector<1x128xf32> to vector<8x128xf32>
    %780 = arith.mulf %699, %779 : vector<8x128xf32>
    %781 = arith.addf %778, %780 : vector<8x128xf32>
    %782 = vector.broadcast %97 : vector<1x128xf32> to vector<8x128xf32>
    %783 = arith.mulf %700, %782 : vector<8x128xf32>
    %784 = arith.addf %781, %783 : vector<8x128xf32>
    %785 = vector.broadcast %105 : vector<1x128xf32> to vector<8x128xf32>
    %786 = arith.mulf %701, %785 : vector<8x128xf32>
    %787 = arith.addf %784, %786 : vector<8x128xf32>
    %788 = vector.broadcast %113 : vector<1x128xf32> to vector<8x128xf32>
    %789 = arith.mulf %702, %788 : vector<8x128xf32>
    %790 = arith.addf %787, %789 : vector<8x128xf32>
    %791 = vector.broadcast %121 : vector<1x128xf32> to vector<8x128xf32>
    %792 = arith.mulf %703, %791 : vector<8x128xf32>
    %793 = arith.addf %790, %792 : vector<8x128xf32>
    %794 = vector.broadcast %129 : vector<1x128xf32> to vector<8x128xf32>
    %795 = arith.mulf %704, %794 : vector<8x128xf32>
    %796 = arith.addf %793, %795 : vector<8x128xf32>
    %797 = vector.broadcast %137 : vector<1x128xf32> to vector<8x128xf32>
    %798 = arith.mulf %705, %797 : vector<8x128xf32>
    %799 = arith.addf %796, %798 : vector<8x128xf32>
    %800 = vector.broadcast %145 : vector<1x128xf32> to vector<8x128xf32>
    %801 = arith.mulf %706, %800 : vector<8x128xf32>
    %802 = arith.addf %799, %801 : vector<8x128xf32>
    %803 = vector.broadcast %153 : vector<1x128xf32> to vector<8x128xf32>
    %804 = arith.mulf %707, %803 : vector<8x128xf32>
    %805 = arith.addf %802, %804 : vector<8x128xf32>
    %806 = math.tanh %805 : vector<8x128xf32>
    %cst_236 = arith.constant dense<0.000000e+00> : vector<128xf32>
    %807 = vector.multi_reduction <add>, %806, %cst_236 [0] : vector<8x128xf32> to vector<128xf32>
    %808 = vector.shape_cast %807 : vector<128xf32> to vector<1x128xf32>
    %809 = arith.addf %305, %808 : vector<1x128xf32>
    %810 = vector.broadcast %34 : vector<1x128xf32> to vector<8x128xf32>
    %811 = arith.mulf %692, %810 : vector<8x128xf32>
    %812 = vector.broadcast %42 : vector<1x128xf32> to vector<8x128xf32>
    %813 = arith.mulf %693, %812 : vector<8x128xf32>
    %814 = arith.addf %811, %813 : vector<8x128xf32>
    %815 = vector.broadcast %50 : vector<1x128xf32> to vector<8x128xf32>
    %816 = arith.mulf %694, %815 : vector<8x128xf32>
    %817 = arith.addf %814, %816 : vector<8x128xf32>
    %818 = vector.broadcast %58 : vector<1x128xf32> to vector<8x128xf32>
    %819 = arith.mulf %695, %818 : vector<8x128xf32>
    %820 = arith.addf %817, %819 : vector<8x128xf32>
    %821 = vector.broadcast %66 : vector<1x128xf32> to vector<8x128xf32>
    %822 = arith.mulf %696, %821 : vector<8x128xf32>
    %823 = arith.addf %820, %822 : vector<8x128xf32>
    %824 = vector.broadcast %74 : vector<1x128xf32> to vector<8x128xf32>
    %825 = arith.mulf %697, %824 : vector<8x128xf32>
    %826 = arith.addf %823, %825 : vector<8x128xf32>
    %827 = vector.broadcast %82 : vector<1x128xf32> to vector<8x128xf32>
    %828 = arith.mulf %698, %827 : vector<8x128xf32>
    %829 = arith.addf %826, %828 : vector<8x128xf32>
    %830 = vector.broadcast %90 : vector<1x128xf32> to vector<8x128xf32>
    %831 = arith.mulf %699, %830 : vector<8x128xf32>
    %832 = arith.addf %829, %831 : vector<8x128xf32>
    %833 = vector.broadcast %98 : vector<1x128xf32> to vector<8x128xf32>
    %834 = arith.mulf %700, %833 : vector<8x128xf32>
    %835 = arith.addf %832, %834 : vector<8x128xf32>
    %836 = vector.broadcast %106 : vector<1x128xf32> to vector<8x128xf32>
    %837 = arith.mulf %701, %836 : vector<8x128xf32>
    %838 = arith.addf %835, %837 : vector<8x128xf32>
    %839 = vector.broadcast %114 : vector<1x128xf32> to vector<8x128xf32>
    %840 = arith.mulf %702, %839 : vector<8x128xf32>
    %841 = arith.addf %838, %840 : vector<8x128xf32>
    %842 = vector.broadcast %122 : vector<1x128xf32> to vector<8x128xf32>
    %843 = arith.mulf %703, %842 : vector<8x128xf32>
    %844 = arith.addf %841, %843 : vector<8x128xf32>
    %845 = vector.broadcast %130 : vector<1x128xf32> to vector<8x128xf32>
    %846 = arith.mulf %704, %845 : vector<8x128xf32>
    %847 = arith.addf %844, %846 : vector<8x128xf32>
    %848 = vector.broadcast %138 : vector<1x128xf32> to vector<8x128xf32>
    %849 = arith.mulf %705, %848 : vector<8x128xf32>
    %850 = arith.addf %847, %849 : vector<8x128xf32>
    %851 = vector.broadcast %146 : vector<1x128xf32> to vector<8x128xf32>
    %852 = arith.mulf %706, %851 : vector<8x128xf32>
    %853 = arith.addf %850, %852 : vector<8x128xf32>
    %854 = vector.broadcast %154 : vector<1x128xf32> to vector<8x128xf32>
    %855 = arith.mulf %707, %854 : vector<8x128xf32>
    %856 = arith.addf %853, %855 : vector<8x128xf32>
    %857 = math.tanh %856 : vector<8x128xf32>
    %cst_237 = arith.constant dense<0.000000e+00> : vector<128xf32>
    %858 = vector.multi_reduction <add>, %857, %cst_237 [0] : vector<8x128xf32> to vector<128xf32>
    %859 = vector.shape_cast %858 : vector<128xf32> to vector<1x128xf32>
    %860 = arith.addf %356, %859 : vector<1x128xf32>
    %861 = vector.broadcast %35 : vector<1x128xf32> to vector<8x128xf32>
    %862 = arith.mulf %692, %861 : vector<8x128xf32>
    %863 = vector.broadcast %43 : vector<1x128xf32> to vector<8x128xf32>
    %864 = arith.mulf %693, %863 : vector<8x128xf32>
    %865 = arith.addf %862, %864 : vector<8x128xf32>
    %866 = vector.broadcast %51 : vector<1x128xf32> to vector<8x128xf32>
    %867 = arith.mulf %694, %866 : vector<8x128xf32>
    %868 = arith.addf %865, %867 : vector<8x128xf32>
    %869 = vector.broadcast %59 : vector<1x128xf32> to vector<8x128xf32>
    %870 = arith.mulf %695, %869 : vector<8x128xf32>
    %871 = arith.addf %868, %870 : vector<8x128xf32>
    %872 = vector.broadcast %67 : vector<1x128xf32> to vector<8x128xf32>
    %873 = arith.mulf %696, %872 : vector<8x128xf32>
    %874 = arith.addf %871, %873 : vector<8x128xf32>
    %875 = vector.broadcast %75 : vector<1x128xf32> to vector<8x128xf32>
    %876 = arith.mulf %697, %875 : vector<8x128xf32>
    %877 = arith.addf %874, %876 : vector<8x128xf32>
    %878 = vector.broadcast %83 : vector<1x128xf32> to vector<8x128xf32>
    %879 = arith.mulf %698, %878 : vector<8x128xf32>
    %880 = arith.addf %877, %879 : vector<8x128xf32>
    %881 = vector.broadcast %91 : vector<1x128xf32> to vector<8x128xf32>
    %882 = arith.mulf %699, %881 : vector<8x128xf32>
    %883 = arith.addf %880, %882 : vector<8x128xf32>
    %884 = vector.broadcast %99 : vector<1x128xf32> to vector<8x128xf32>
    %885 = arith.mulf %700, %884 : vector<8x128xf32>
    %886 = arith.addf %883, %885 : vector<8x128xf32>
    %887 = vector.broadcast %107 : vector<1x128xf32> to vector<8x128xf32>
    %888 = arith.mulf %701, %887 : vector<8x128xf32>
    %889 = arith.addf %886, %888 : vector<8x128xf32>
    %890 = vector.broadcast %115 : vector<1x128xf32> to vector<8x128xf32>
    %891 = arith.mulf %702, %890 : vector<8x128xf32>
    %892 = arith.addf %889, %891 : vector<8x128xf32>
    %893 = vector.broadcast %123 : vector<1x128xf32> to vector<8x128xf32>
    %894 = arith.mulf %703, %893 : vector<8x128xf32>
    %895 = arith.addf %892, %894 : vector<8x128xf32>
    %896 = vector.broadcast %131 : vector<1x128xf32> to vector<8x128xf32>
    %897 = arith.mulf %704, %896 : vector<8x128xf32>
    %898 = arith.addf %895, %897 : vector<8x128xf32>
    %899 = vector.broadcast %139 : vector<1x128xf32> to vector<8x128xf32>
    %900 = arith.mulf %705, %899 : vector<8x128xf32>
    %901 = arith.addf %898, %900 : vector<8x128xf32>
    %902 = vector.broadcast %147 : vector<1x128xf32> to vector<8x128xf32>
    %903 = arith.mulf %706, %902 : vector<8x128xf32>
    %904 = arith.addf %901, %903 : vector<8x128xf32>
    %905 = vector.broadcast %155 : vector<1x128xf32> to vector<8x128xf32>
    %906 = arith.mulf %707, %905 : vector<8x128xf32>
    %907 = arith.addf %904, %906 : vector<8x128xf32>
    %908 = math.tanh %907 : vector<8x128xf32>
    %cst_238 = arith.constant dense<0.000000e+00> : vector<128xf32>
    %909 = vector.multi_reduction <add>, %908, %cst_238 [0] : vector<8x128xf32> to vector<128xf32>
    %910 = vector.shape_cast %909 : vector<128xf32> to vector<1x128xf32>
    %911 = arith.addf %407, %910 : vector<1x128xf32>
    %912 = vector.broadcast %36 : vector<1x128xf32> to vector<8x128xf32>
    %913 = arith.mulf %692, %912 : vector<8x128xf32>
    %914 = vector.broadcast %44 : vector<1x128xf32> to vector<8x128xf32>
    %915 = arith.mulf %693, %914 : vector<8x128xf32>
    %916 = arith.addf %913, %915 : vector<8x128xf32>
    %917 = vector.broadcast %52 : vector<1x128xf32> to vector<8x128xf32>
    %918 = arith.mulf %694, %917 : vector<8x128xf32>
    %919 = arith.addf %916, %918 : vector<8x128xf32>
    %920 = vector.broadcast %60 : vector<1x128xf32> to vector<8x128xf32>
    %921 = arith.mulf %695, %920 : vector<8x128xf32>
    %922 = arith.addf %919, %921 : vector<8x128xf32>
    %923 = vector.broadcast %68 : vector<1x128xf32> to vector<8x128xf32>
    %924 = arith.mulf %696, %923 : vector<8x128xf32>
    %925 = arith.addf %922, %924 : vector<8x128xf32>
    %926 = vector.broadcast %76 : vector<1x128xf32> to vector<8x128xf32>
    %927 = arith.mulf %697, %926 : vector<8x128xf32>
    %928 = arith.addf %925, %927 : vector<8x128xf32>
    %929 = vector.broadcast %84 : vector<1x128xf32> to vector<8x128xf32>
    %930 = arith.mulf %698, %929 : vector<8x128xf32>
    %931 = arith.addf %928, %930 : vector<8x128xf32>
    %932 = vector.broadcast %92 : vector<1x128xf32> to vector<8x128xf32>
    %933 = arith.mulf %699, %932 : vector<8x128xf32>
    %934 = arith.addf %931, %933 : vector<8x128xf32>
    %935 = vector.broadcast %100 : vector<1x128xf32> to vector<8x128xf32>
    %936 = arith.mulf %700, %935 : vector<8x128xf32>
    %937 = arith.addf %934, %936 : vector<8x128xf32>
    %938 = vector.broadcast %108 : vector<1x128xf32> to vector<8x128xf32>
    %939 = arith.mulf %701, %938 : vector<8x128xf32>
    %940 = arith.addf %937, %939 : vector<8x128xf32>
    %941 = vector.broadcast %116 : vector<1x128xf32> to vector<8x128xf32>
    %942 = arith.mulf %702, %941 : vector<8x128xf32>
    %943 = arith.addf %940, %942 : vector<8x128xf32>
    %944 = vector.broadcast %124 : vector<1x128xf32> to vector<8x128xf32>
    %945 = arith.mulf %703, %944 : vector<8x128xf32>
    %946 = arith.addf %943, %945 : vector<8x128xf32>
    %947 = vector.broadcast %132 : vector<1x128xf32> to vector<8x128xf32>
    %948 = arith.mulf %704, %947 : vector<8x128xf32>
    %949 = arith.addf %946, %948 : vector<8x128xf32>
    %950 = vector.broadcast %140 : vector<1x128xf32> to vector<8x128xf32>
    %951 = arith.mulf %705, %950 : vector<8x128xf32>
    %952 = arith.addf %949, %951 : vector<8x128xf32>
    %953 = vector.broadcast %148 : vector<1x128xf32> to vector<8x128xf32>
    %954 = arith.mulf %706, %953 : vector<8x128xf32>
    %955 = arith.addf %952, %954 : vector<8x128xf32>
    %956 = vector.broadcast %156 : vector<1x128xf32> to vector<8x128xf32>
    %957 = arith.mulf %707, %956 : vector<8x128xf32>
    %958 = arith.addf %955, %957 : vector<8x128xf32>
    %959 = math.tanh %958 : vector<8x128xf32>
    %cst_239 = arith.constant dense<0.000000e+00> : vector<128xf32>
    %960 = vector.multi_reduction <add>, %959, %cst_239 [0] : vector<8x128xf32> to vector<128xf32>
    %961 = vector.shape_cast %960 : vector<128xf32> to vector<1x128xf32>
    %962 = arith.addf %458, %961 : vector<1x128xf32>
    %963 = vector.broadcast %37 : vector<1x128xf32> to vector<8x128xf32>
    %964 = arith.mulf %692, %963 : vector<8x128xf32>
    %965 = vector.broadcast %45 : vector<1x128xf32> to vector<8x128xf32>
    %966 = arith.mulf %693, %965 : vector<8x128xf32>
    %967 = arith.addf %964, %966 : vector<8x128xf32>
    %968 = vector.broadcast %53 : vector<1x128xf32> to vector<8x128xf32>
    %969 = arith.mulf %694, %968 : vector<8x128xf32>
    %970 = arith.addf %967, %969 : vector<8x128xf32>
    %971 = vector.broadcast %61 : vector<1x128xf32> to vector<8x128xf32>
    %972 = arith.mulf %695, %971 : vector<8x128xf32>
    %973 = arith.addf %970, %972 : vector<8x128xf32>
    %974 = vector.broadcast %69 : vector<1x128xf32> to vector<8x128xf32>
    %975 = arith.mulf %696, %974 : vector<8x128xf32>
    %976 = arith.addf %973, %975 : vector<8x128xf32>
    %977 = vector.broadcast %77 : vector<1x128xf32> to vector<8x128xf32>
    %978 = arith.mulf %697, %977 : vector<8x128xf32>
    %979 = arith.addf %976, %978 : vector<8x128xf32>
    %980 = vector.broadcast %85 : vector<1x128xf32> to vector<8x128xf32>
    %981 = arith.mulf %698, %980 : vector<8x128xf32>
    %982 = arith.addf %979, %981 : vector<8x128xf32>
    %983 = vector.broadcast %93 : vector<1x128xf32> to vector<8x128xf32>
    %984 = arith.mulf %699, %983 : vector<8x128xf32>
    %985 = arith.addf %982, %984 : vector<8x128xf32>
    %986 = vector.broadcast %101 : vector<1x128xf32> to vector<8x128xf32>
    %987 = arith.mulf %700, %986 : vector<8x128xf32>
    %988 = arith.addf %985, %987 : vector<8x128xf32>
    %989 = vector.broadcast %109 : vector<1x128xf32> to vector<8x128xf32>
    %990 = arith.mulf %701, %989 : vector<8x128xf32>
    %991 = arith.addf %988, %990 : vector<8x128xf32>
    %992 = vector.broadcast %117 : vector<1x128xf32> to vector<8x128xf32>
    %993 = arith.mulf %702, %992 : vector<8x128xf32>
    %994 = arith.addf %991, %993 : vector<8x128xf32>
    %995 = vector.broadcast %125 : vector<1x128xf32> to vector<8x128xf32>
    %996 = arith.mulf %703, %995 : vector<8x128xf32>
    %997 = arith.addf %994, %996 : vector<8x128xf32>
    %998 = vector.broadcast %133 : vector<1x128xf32> to vector<8x128xf32>
    %999 = arith.mulf %704, %998 : vector<8x128xf32>
    %1000 = arith.addf %997, %999 : vector<8x128xf32>
    %1001 = vector.broadcast %141 : vector<1x128xf32> to vector<8x128xf32>
    %1002 = arith.mulf %705, %1001 : vector<8x128xf32>
    %1003 = arith.addf %1000, %1002 : vector<8x128xf32>
    %1004 = vector.broadcast %149 : vector<1x128xf32> to vector<8x128xf32>
    %1005 = arith.mulf %706, %1004 : vector<8x128xf32>
    %1006 = arith.addf %1003, %1005 : vector<8x128xf32>
    %1007 = vector.broadcast %157 : vector<1x128xf32> to vector<8x128xf32>
    %1008 = arith.mulf %707, %1007 : vector<8x128xf32>
    %1009 = arith.addf %1006, %1008 : vector<8x128xf32>
    %1010 = math.tanh %1009 : vector<8x128xf32>
    %cst_240 = arith.constant dense<0.000000e+00> : vector<128xf32>
    %1011 = vector.multi_reduction <add>, %1010, %cst_240 [0] : vector<8x128xf32> to vector<128xf32>
    %1012 = vector.shape_cast %1011 : vector<128xf32> to vector<1x128xf32>
    %1013 = arith.addf %509, %1012 : vector<1x128xf32>
    %1014 = vector.broadcast %38 : vector<1x128xf32> to vector<8x128xf32>
    %1015 = arith.mulf %692, %1014 : vector<8x128xf32>
    %1016 = vector.broadcast %46 : vector<1x128xf32> to vector<8x128xf32>
    %1017 = arith.mulf %693, %1016 : vector<8x128xf32>
    %1018 = arith.addf %1015, %1017 : vector<8x128xf32>
    %1019 = vector.broadcast %54 : vector<1x128xf32> to vector<8x128xf32>
    %1020 = arith.mulf %694, %1019 : vector<8x128xf32>
    %1021 = arith.addf %1018, %1020 : vector<8x128xf32>
    %1022 = vector.broadcast %62 : vector<1x128xf32> to vector<8x128xf32>
    %1023 = arith.mulf %695, %1022 : vector<8x128xf32>
    %1024 = arith.addf %1021, %1023 : vector<8x128xf32>
    %1025 = vector.broadcast %70 : vector<1x128xf32> to vector<8x128xf32>
    %1026 = arith.mulf %696, %1025 : vector<8x128xf32>
    %1027 = arith.addf %1024, %1026 : vector<8x128xf32>
    %1028 = vector.broadcast %78 : vector<1x128xf32> to vector<8x128xf32>
    %1029 = arith.mulf %697, %1028 : vector<8x128xf32>
    %1030 = arith.addf %1027, %1029 : vector<8x128xf32>
    %1031 = vector.broadcast %86 : vector<1x128xf32> to vector<8x128xf32>
    %1032 = arith.mulf %698, %1031 : vector<8x128xf32>
    %1033 = arith.addf %1030, %1032 : vector<8x128xf32>
    %1034 = vector.broadcast %94 : vector<1x128xf32> to vector<8x128xf32>
    %1035 = arith.mulf %699, %1034 : vector<8x128xf32>
    %1036 = arith.addf %1033, %1035 : vector<8x128xf32>
    %1037 = vector.broadcast %102 : vector<1x128xf32> to vector<8x128xf32>
    %1038 = arith.mulf %700, %1037 : vector<8x128xf32>
    %1039 = arith.addf %1036, %1038 : vector<8x128xf32>
    %1040 = vector.broadcast %110 : vector<1x128xf32> to vector<8x128xf32>
    %1041 = arith.mulf %701, %1040 : vector<8x128xf32>
    %1042 = arith.addf %1039, %1041 : vector<8x128xf32>
    %1043 = vector.broadcast %118 : vector<1x128xf32> to vector<8x128xf32>
    %1044 = arith.mulf %702, %1043 : vector<8x128xf32>
    %1045 = arith.addf %1042, %1044 : vector<8x128xf32>
    %1046 = vector.broadcast %126 : vector<1x128xf32> to vector<8x128xf32>
    %1047 = arith.mulf %703, %1046 : vector<8x128xf32>
    %1048 = arith.addf %1045, %1047 : vector<8x128xf32>
    %1049 = vector.broadcast %134 : vector<1x128xf32> to vector<8x128xf32>
    %1050 = arith.mulf %704, %1049 : vector<8x128xf32>
    %1051 = arith.addf %1048, %1050 : vector<8x128xf32>
    %1052 = vector.broadcast %142 : vector<1x128xf32> to vector<8x128xf32>
    %1053 = arith.mulf %705, %1052 : vector<8x128xf32>
    %1054 = arith.addf %1051, %1053 : vector<8x128xf32>
    %1055 = vector.broadcast %150 : vector<1x128xf32> to vector<8x128xf32>
    %1056 = arith.mulf %706, %1055 : vector<8x128xf32>
    %1057 = arith.addf %1054, %1056 : vector<8x128xf32>
    %1058 = vector.broadcast %158 : vector<1x128xf32> to vector<8x128xf32>
    %1059 = arith.mulf %707, %1058 : vector<8x128xf32>
    %1060 = arith.addf %1057, %1059 : vector<8x128xf32>
    %1061 = math.tanh %1060 : vector<8x128xf32>
    %cst_241 = arith.constant dense<0.000000e+00> : vector<128xf32>
    %1062 = vector.multi_reduction <add>, %1061, %cst_241 [0] : vector<8x128xf32> to vector<128xf32>
    %1063 = vector.shape_cast %1062 : vector<128xf32> to vector<1x128xf32>
    %1064 = arith.addf %560, %1063 : vector<1x128xf32>
    %1065 = vector.broadcast %39 : vector<1x128xf32> to vector<8x128xf32>
    %1066 = arith.mulf %692, %1065 : vector<8x128xf32>
    %1067 = vector.broadcast %47 : vector<1x128xf32> to vector<8x128xf32>
    %1068 = arith.mulf %693, %1067 : vector<8x128xf32>
    %1069 = arith.addf %1066, %1068 : vector<8x128xf32>
    %1070 = vector.broadcast %55 : vector<1x128xf32> to vector<8x128xf32>
    %1071 = arith.mulf %694, %1070 : vector<8x128xf32>
    %1072 = arith.addf %1069, %1071 : vector<8x128xf32>
    %1073 = vector.broadcast %63 : vector<1x128xf32> to vector<8x128xf32>
    %1074 = arith.mulf %695, %1073 : vector<8x128xf32>
    %1075 = arith.addf %1072, %1074 : vector<8x128xf32>
    %1076 = vector.broadcast %71 : vector<1x128xf32> to vector<8x128xf32>
    %1077 = arith.mulf %696, %1076 : vector<8x128xf32>
    %1078 = arith.addf %1075, %1077 : vector<8x128xf32>
    %1079 = vector.broadcast %79 : vector<1x128xf32> to vector<8x128xf32>
    %1080 = arith.mulf %697, %1079 : vector<8x128xf32>
    %1081 = arith.addf %1078, %1080 : vector<8x128xf32>
    %1082 = vector.broadcast %87 : vector<1x128xf32> to vector<8x128xf32>
    %1083 = arith.mulf %698, %1082 : vector<8x128xf32>
    %1084 = arith.addf %1081, %1083 : vector<8x128xf32>
    %1085 = vector.broadcast %95 : vector<1x128xf32> to vector<8x128xf32>
    %1086 = arith.mulf %699, %1085 : vector<8x128xf32>
    %1087 = arith.addf %1084, %1086 : vector<8x128xf32>
    %1088 = vector.broadcast %103 : vector<1x128xf32> to vector<8x128xf32>
    %1089 = arith.mulf %700, %1088 : vector<8x128xf32>
    %1090 = arith.addf %1087, %1089 : vector<8x128xf32>
    %1091 = vector.broadcast %111 : vector<1x128xf32> to vector<8x128xf32>
    %1092 = arith.mulf %701, %1091 : vector<8x128xf32>
    %1093 = arith.addf %1090, %1092 : vector<8x128xf32>
    %1094 = vector.broadcast %119 : vector<1x128xf32> to vector<8x128xf32>
    %1095 = arith.mulf %702, %1094 : vector<8x128xf32>
    %1096 = arith.addf %1093, %1095 : vector<8x128xf32>
    %1097 = vector.broadcast %127 : vector<1x128xf32> to vector<8x128xf32>
    %1098 = arith.mulf %703, %1097 : vector<8x128xf32>
    %1099 = arith.addf %1096, %1098 : vector<8x128xf32>
    %1100 = vector.broadcast %135 : vector<1x128xf32> to vector<8x128xf32>
    %1101 = arith.mulf %704, %1100 : vector<8x128xf32>
    %1102 = arith.addf %1099, %1101 : vector<8x128xf32>
    %1103 = vector.broadcast %143 : vector<1x128xf32> to vector<8x128xf32>
    %1104 = arith.mulf %705, %1103 : vector<8x128xf32>
    %1105 = arith.addf %1102, %1104 : vector<8x128xf32>
    %1106 = vector.broadcast %151 : vector<1x128xf32> to vector<8x128xf32>
    %1107 = arith.mulf %706, %1106 : vector<8x128xf32>
    %1108 = arith.addf %1105, %1107 : vector<8x128xf32>
    %1109 = vector.broadcast %159 : vector<1x128xf32> to vector<8x128xf32>
    %1110 = arith.mulf %707, %1109 : vector<8x128xf32>
    %1111 = arith.addf %1108, %1110 : vector<8x128xf32>
    %1112 = math.tanh %1111 : vector<8x128xf32>
    %cst_242 = arith.constant dense<0.000000e+00> : vector<128xf32>
    %1113 = vector.multi_reduction <add>, %1112, %cst_242 [0] : vector<8x128xf32> to vector<128xf32>
    %1114 = vector.shape_cast %1113 : vector<128xf32> to vector<1x128xf32>
    %1115 = arith.addf %611, %1114 : vector<1x128xf32>
    %cst_243 = arith.constant dense<0.000000e+00> : vector<128xf32>
    %1116 = vector.multi_reduction <add>, %755, %cst_243 [0] : vector<8x128xf32> to vector<128xf32>
    %1117 = vector.shape_cast %1116 : vector<128xf32> to vector<1x128xf32>
    %cst_244 = arith.constant dense<0.000000e+00> : vector<128xf32>
    %1118 = vector.multi_reduction <add>, %806, %cst_244 [0] : vector<8x128xf32> to vector<128xf32>
    %1119 = vector.shape_cast %1118 : vector<128xf32> to vector<1x128xf32>
    %cst_245 = arith.constant dense<0.000000e+00> : vector<128xf32>
    %1120 = vector.multi_reduction <add>, %857, %cst_245 [0] : vector<8x128xf32> to vector<128xf32>
    %1121 = vector.shape_cast %1120 : vector<128xf32> to vector<1x128xf32>
    %cst_246 = arith.constant dense<0.000000e+00> : vector<128xf32>
    %1122 = vector.multi_reduction <add>, %908, %cst_246 [0] : vector<8x128xf32> to vector<128xf32>
    %1123 = vector.shape_cast %1122 : vector<128xf32> to vector<1x128xf32>
    %cst_247 = arith.constant dense<0.000000e+00> : vector<128xf32>
    %1124 = vector.multi_reduction <add>, %959, %cst_247 [0] : vector<8x128xf32> to vector<128xf32>
    %1125 = vector.shape_cast %1124 : vector<128xf32> to vector<1x128xf32>
    %cst_248 = arith.constant dense<0.000000e+00> : vector<128xf32>
    %1126 = vector.multi_reduction <add>, %1010, %cst_248 [0] : vector<8x128xf32> to vector<128xf32>
    %1127 = vector.shape_cast %1126 : vector<128xf32> to vector<1x128xf32>
    %cst_249 = arith.constant dense<0.000000e+00> : vector<128xf32>
    %1128 = vector.multi_reduction <add>, %1061, %cst_249 [0] : vector<8x128xf32> to vector<128xf32>
    %1129 = vector.shape_cast %1128 : vector<128xf32> to vector<1x128xf32>
    %cst_250 = arith.constant dense<0.000000e+00> : vector<128xf32>
    %1130 = vector.multi_reduction <add>, %1112, %cst_250 [0] : vector<8x128xf32> to vector<128xf32>
    %1131 = vector.shape_cast %1130 : vector<128xf32> to vector<1x128xf32>
    %1132 = arith.mulf %1117, %160 : vector<1x128xf32>
    %1133 = arith.mulf %1119, %164 : vector<1x128xf32>
    %1134 = arith.addf %1132, %1133 : vector<1x128xf32>
    %1135 = arith.mulf %1121, %168 : vector<1x128xf32>
    %1136 = arith.addf %1134, %1135 : vector<1x128xf32>
    %1137 = arith.mulf %1123, %172 : vector<1x128xf32>
    %1138 = arith.addf %1136, %1137 : vector<1x128xf32>
    %1139 = arith.mulf %1125, %176 : vector<1x128xf32>
    %1140 = arith.addf %1138, %1139 : vector<1x128xf32>
    %1141 = arith.mulf %1127, %180 : vector<1x128xf32>
    %1142 = arith.addf %1140, %1141 : vector<1x128xf32>
    %1143 = arith.mulf %1129, %184 : vector<1x128xf32>
    %1144 = arith.addf %1142, %1143 : vector<1x128xf32>
    %1145 = arith.mulf %1131, %188 : vector<1x128xf32>
    %1146 = arith.addf %1144, %1145 : vector<1x128xf32>
    %1147 = arith.addf %643, %1146 : vector<1x128xf32>
    %1148 = arith.mulf %1117, %161 : vector<1x128xf32>
    %1149 = arith.mulf %1119, %165 : vector<1x128xf32>
    %1150 = arith.addf %1148, %1149 : vector<1x128xf32>
    %1151 = arith.mulf %1121, %169 : vector<1x128xf32>
    %1152 = arith.addf %1150, %1151 : vector<1x128xf32>
    %1153 = arith.mulf %1123, %173 : vector<1x128xf32>
    %1154 = arith.addf %1152, %1153 : vector<1x128xf32>
    %1155 = arith.mulf %1125, %177 : vector<1x128xf32>
    %1156 = arith.addf %1154, %1155 : vector<1x128xf32>
    %1157 = arith.mulf %1127, %181 : vector<1x128xf32>
    %1158 = arith.addf %1156, %1157 : vector<1x128xf32>
    %1159 = arith.mulf %1129, %185 : vector<1x128xf32>
    %1160 = arith.addf %1158, %1159 : vector<1x128xf32>
    %1161 = arith.mulf %1131, %189 : vector<1x128xf32>
    %1162 = arith.addf %1160, %1161 : vector<1x128xf32>
    %1163 = arith.addf %659, %1162 : vector<1x128xf32>
    %1164 = arith.mulf %1117, %162 : vector<1x128xf32>
    %1165 = arith.mulf %1119, %166 : vector<1x128xf32>
    %1166 = arith.addf %1164, %1165 : vector<1x128xf32>
    %1167 = arith.mulf %1121, %170 : vector<1x128xf32>
    %1168 = arith.addf %1166, %1167 : vector<1x128xf32>
    %1169 = arith.mulf %1123, %174 : vector<1x128xf32>
    %1170 = arith.addf %1168, %1169 : vector<1x128xf32>
    %1171 = arith.mulf %1125, %178 : vector<1x128xf32>
    %1172 = arith.addf %1170, %1171 : vector<1x128xf32>
    %1173 = arith.mulf %1127, %182 : vector<1x128xf32>
    %1174 = arith.addf %1172, %1173 : vector<1x128xf32>
    %1175 = arith.mulf %1129, %186 : vector<1x128xf32>
    %1176 = arith.addf %1174, %1175 : vector<1x128xf32>
    %1177 = arith.mulf %1131, %190 : vector<1x128xf32>
    %1178 = arith.addf %1176, %1177 : vector<1x128xf32>
    %1179 = arith.addf %675, %1178 : vector<1x128xf32>
    %1180 = arith.mulf %1117, %163 : vector<1x128xf32>
    %1181 = arith.mulf %1119, %167 : vector<1x128xf32>
    %1182 = arith.addf %1180, %1181 : vector<1x128xf32>
    %1183 = arith.mulf %1121, %171 : vector<1x128xf32>
    %1184 = arith.addf %1182, %1183 : vector<1x128xf32>
    %1185 = arith.mulf %1123, %175 : vector<1x128xf32>
    %1186 = arith.addf %1184, %1185 : vector<1x128xf32>
    %1187 = arith.mulf %1125, %179 : vector<1x128xf32>
    %1188 = arith.addf %1186, %1187 : vector<1x128xf32>
    %1189 = arith.mulf %1127, %183 : vector<1x128xf32>
    %1190 = arith.addf %1188, %1189 : vector<1x128xf32>
    %1191 = arith.mulf %1129, %187 : vector<1x128xf32>
    %1192 = arith.addf %1190, %1191 : vector<1x128xf32>
    %1193 = arith.mulf %1131, %191 : vector<1x128xf32>
    %1194 = arith.addf %1192, %1193 : vector<1x128xf32>
    %1195 = arith.addf %691, %1194 : vector<1x128xf32>
    %cst_251 = arith.constant 0.000000e+00 : f32
    %1196 = vector.broadcast %cst_251 : f32 to vector<4x128xf32>
    %1197 = tpu.concatenate %758, %809, %860, %911, %962, %1013, %1064, %1115, %1147, %1163, %1179, %1195, %1196 in 0 : vector<1x128xf32>, vector<1x128xf32>, vector<1x128xf32>, vector<1x128xf32>, vector<1x128xf32>, vector<1x128xf32>, vector<1x128xf32>, vector<1x128xf32>, vector<1x128xf32>, vector<1x128xf32>, vector<1x128xf32>, vector<1x128xf32>, vector<4x128xf32> -> vector<16x128xf32>
    %c0_252 = arith.constant 0 : index
    %c0_253 = arith.constant 0 : index
    %1198 = vector.load %arg3[%c0_252, %c0_253] : memref<16x128xf32, #tpu.memory_space<vmem>>, vector<16x128xf32>
    tpu.vector_store %arg3[%c0_252, %c0_253], %1197 {strides = array<i32>} : memref<16x128xf32, #tpu.memory_space<vmem>>, vector<16x128xf32>,
    return
  }
  func.func @transform_0(%arg0: i32) -> (i32, i32, i32) {
    %c0_i32 = arith.constant 0 : i32
    %c0_i32_0 = arith.constant 0 : i32
    %c0_i32_1 = arith.constant 0 : i32
    return %c0_i32, %c0_i32_0, %arg0 : i32, i32, i32
  }
  func.func @transform_1(%arg0: i32) -> (i32, i32) {
    %c0_i32 = arith.constant 0 : i32
    %c0_i32_0 = arith.constant 0 : i32
    return %c0_i32, %arg0 : i32, i32
  }
  func.func @transform_2(%arg0: i32) -> (i32, i32) {
    %c0_i32 = arith.constant 0 : i32
    %c0_i32_0 = arith.constant 0 : i32
    return %c0_i32, %arg0 : i32, i32
  }
}

</mosaic_0001>

<llo_original>
// kernel: tpu_custom_call.1
$region0: #{tpu_custom_call.1}
  #allocation0 [shape = 'u32[]', space=smem, size = 0x4, offset = 0x4, fixed_abs, tag = 'smem constant byte address 0x4 - core index']
  #allocation1 [shape = 'u32[72,128]{1,0:T(1,128)}', space=vmem, size = 0x9000, scoped, tag = 'internal scratch']
  %s0 = inlined_call_operand.hbm [shape: f32[16,8,128], index: 0, kind: input, shape index: {}]
  %s1 = inlined_call_operand.hbm [shape: f32[160,128], index: 1, kind: input, shape index: {}]
  %s2 = inlined_call_operand.hbm [shape: f32[16,128], index: 2, kind: output, shape index: {}]
  %s3 = sld [smem:[#allocation0]]
  $region26: #{tpu_custom_call.1} parent=0
    _
  %s5 = ssub.s32 1, %s3
  %s6 = scalar_select 0, %s5, %s3
  $region1: #{tpu_custom_call.1} parent=0
    #allocation2 [shape = 'u8[65536]{0}', space=vmem, size = 0x10000, scoped, tag = 'input window, operand 0, single buffered']
    #allocation3 [shape = 's32[1]{0}', space=sflag, size = 0x4, scoped, tag = 'scoped memory for tpu_custom_call.1']
    #allocation4 [shape = 's32[1]{0}', space=sflag, size = 0x4, scoped, tag = 'scoped memory for tpu_custom_call.1']
    #allocation5 [shape = 'u8[81920]{0}', space=vmem, size = 0x14000, scoped, tag = 'input window, operand 1, single buffered']
    #allocation6 [shape = 's32[1]{0}', space=sflag, size = 0x4, scoped, tag = 'scoped memory for tpu_custom_call.1']
    #allocation7 [shape = 'u8[8192]{0}', space=vmem, size = 0x2000, scoped, tag = 'output window, operand 0, single buffered']
    %7 = vsyncpa [#allocation3], 0
    %8 = vsyncpa [#allocation6], 0
    %9 = vsyncpa [#allocation4], 0
    // Predicated region
    $region2: #{tpu_custom_call.1} parent=1 // pred_check
      _
    $region3: #{tpu_custom_call.1} parent=1 // pred_check_branch
      %11 = sbr.rel (0) target = $region5
    $region4: #{tpu_custom_call.1} parent=1 // pred_region
      %13 = vsyncadd [#allocation3], 0
      %s14 = sshll.u32 %s0, 4
      %s15 = int_to_ptr.hbm [resolvable:$true] %s14
      %s16 = sshll.u32 [#allocation2], 4
      %s17 = int_to_ptr.vmem [resolvable:$true] %s16
      %22 = dma.hbm_to_vmem [thread:$0]  %s15, 2048, %s17, [#allocation3], 128, 128, 8
    $region5: #{tpu_custom_call.1} parent=1 // pred_fallthru
      _
    // Predicated region
    $region6: #{tpu_custom_call.1} parent=1 // pred_check
      _
    $region7: #{tpu_custom_call.1} parent=1 // pred_check_branch
      %24 = sbr.rel (0) target = $region9
    $region8: #{tpu_custom_call.1} parent=1 // pred_region
      %26 = vsyncadd [#allocation6], 0
      %s27 = sshll.u32 %s1, 4
      %s28 = int_to_ptr.hbm [resolvable:$true] %s27
      %s29 = sshll.u32 [#allocation5], 4
      %s30 = int_to_ptr.vmem [resolvable:$true] %s29
      %35 = dma.hbm_to_vmem [thread:$0]  %s28, 2560, %s30, [#allocation6], 128, 128, 8
    $region9: #{tpu_custom_call.1} parent=1 // pred_fallthru
      _
    // Predicated region
    $region10: #{tpu_custom_call.1} parent=1 // pred_check
      _
    $region11: #{tpu_custom_call.1} parent=1 // pred_check_branch
      %37 = sbr.rel (0) target = $region13
    $region12: #{tpu_custom_call.1} parent=1 // pred_region
      %39 = dma.done [#allocation3], 2048
    $region13: #{tpu_custom_call.1} parent=1 // pred_fallthru
      _
    // Predicated region
    $region14: #{tpu_custom_call.1} parent=1 // pred_check
      _
    $region15: #{tpu_custom_call.1} parent=1 // pred_check_branch
      %41 = sbr.rel (0) target = $region17
    $region16: #{tpu_custom_call.1} parent=1 // pred_region
      %43 = dma.done [#allocation6], 2560
    $region17: #{tpu_custom_call.1} parent=1 // pred_fallthru
      _
    %v44 = vld [vmem:[#allocation2] sm:$0xff]
    %s45 = scalar_lea.vmem [#allocation2], 8
    %v46 = vld [vmem:[%s45] sm:$0xff]
    %s47 = scalar_lea.vmem [#allocation2], 16
    %v48 = vld [vmem:[%s47] sm:$0xff]
    %s49 = scalar_lea.vmem [#allocation2], 24
    %v50 = vld [vmem:[%s49] sm:$0xff]
    %s51 = scalar_lea.vmem [#allocation2], 32
    %v52 = vld [vmem:[%s51] sm:$0xff]
    %s53 = scalar_lea.vmem [#allocation2], 40
    %v54 = vld [vmem:[%s53] sm:$0xff]
    %s55 = scalar_lea.vmem [#allocation2], 48
    %v56 = vld [vmem:[%s55] sm:$0xff]
    %s57 = scalar_lea.vmem [#allocation2], 56
    %v58 = vld [vmem:[%s57] sm:$0xff]
    %s59 = scalar_lea.vmem [#allocation2], 64
    %v60 = vld [vmem:[%s59] sm:$0xff]
    %s61 = scalar_lea.vmem [#allocation2], 72
    %v62 = vld [vmem:[%s61] sm:$0xff]
    %s63 = scalar_lea.vmem [#allocation2], 80
    %v64 = vld [vmem:[%s63] sm:$0xff]
    %s65 = scalar_lea.vmem [#allocation2], 88
    %v66 = vld [vmem:[%s65] sm:$0xff]
    %s67 = scalar_lea.vmem [#allocation2], 96
    %v68 = vld [vmem:[%s67] sm:$0xff]
    %s69 = scalar_lea.vmem [#allocation2], 104
    %v70 = vld [vmem:[%s69] sm:$0xff]
    %s71 = scalar_lea.vmem [#allocation2], 112
    %v72 = vld [vmem:[%s71] sm:$0xff]
    %s73 = scalar_lea.vmem [#allocation2], 120
    %v74 = vld [vmem:[%s73] sm:$0xff]
    %v75 = vld [vmem:[#allocation5] sm:$0x1]
    %v76 = vld [vmem:[#allocation5 + $0x1] sm:$0x1]
    %v77 = vld [vmem:[#allocation5 + $0x2] sm:$0x1]
    %v78 = vld [vmem:[#allocation5 + $0x3] sm:$0x1]
    %v79 = vld [vmem:[#allocation5 + $0x4] sm:$0x1]
    %v80 = vld [vmem:[#allocation5 + $0x5] sm:$0x1]
    %v81 = vld [vmem:[#allocation5 + $0x6] sm:$0x1]
    %v82 = vld [vmem:[#allocation5 + $0x7] sm:$0x1]
    %v83 = vld [vmem:[#allocation5 + $0x8] sm:$0x1]
    %v84 = vld [vmem:[#allocation5 + $0x9] sm:$0x1]
    %v85 = vld [vmem:[#allocation5 + $0xa] sm:$0x1]
    %v86 = vld [vmem:[#allocation5 + $0xb] sm:$0x1]
    %v87 = vld [vmem:[#allocation5 + $0xc] sm:$0x1]
    %v88 = vld [vmem:[#allocation5 + $0xd] sm:$0x1]
    %v89 = vld [vmem:[#allocation5 + $0xe] sm:$0x1]
    %v90 = vld [vmem:[#allocation5 + $0xf] sm:$0x1]
    %v91 = vld [vmem:[#allocation5 + $0x10] sm:$0x1]
    %v92 = vld [vmem:[#allocation5 + $0x11] sm:$0x1]
    %v93 = vld [vmem:[#allocation5 + $0x12] sm:$0x1]
    %v94 = vld [vmem:[#allocation5 + $0x13] sm:$0x1]
    %v95 = vld [vmem:[#allocation5 + $0x14] sm:$0x1]
    %v96 = vld [vmem:[#allocation5 + $0x15] sm:$0x1]
    %v97 = vld [vmem:[#allocation5 + $0x16] sm:$0x1]
    %v98 = vld [vmem:[#allocation5 + $0x17] sm:$0x1]
    %v99 = vld [vmem:[#allocation5 + $0x18] sm:$0x1]
    %v100 = vld [vmem:[#allocation5 + $0x19] sm:$0x1]
    %v101 = vld [vmem:[#allocation5 + $0x1a] sm:$0x1]
    %v102 = vld [vmem:[#allocation5 + $0x1b] sm:$0x1]
    %v103 = vld [vmem:[#allocation5 + $0x1c] sm:$0x1]
    %v104 = vld [vmem:[#allocation5 + $0x1d] sm:$0x1]
    %v105 = vld [vmem:[#allocation5 + $0x1e] sm:$0x1]
    %v106 = vld [vmem:[#allocation5 + $0x1f] sm:$0x1]
    %v107 = vld [vmem:[#allocation5 + $0x20] sm:$0x1]
    %v108 = vld [vmem:[#allocation5 + $0x21] sm:$0x1]
    %v109 = vld [vmem:[#allocation5 + $0x22] sm:$0x1]
    %v110 = vld [vmem:[#allocation5 + $0x23] sm:$0x1]
    %v111 = vld [vmem:[#allocation5 + $0x24] sm:$0x1]
    %v112 = vld [vmem:[#allocation5 + $0x25] sm:$0x1]
    %v113 = vld [vmem:[#allocation5 + $0x26] sm:$0x1]
    %v114 = vld [vmem:[#allocation5 + $0x27] sm:$0x1]
    %v115 = vld [vmem:[#allocation5 + $0x28] sm:$0x1]
    %v116 = vld [vmem:[#allocation5 + $0x29] sm:$0x1]
    %v117 = vld [vmem:[#allocation5 + $0x2a] sm:$0x1]
    %v118 = vld [vmem:[#allocation5 + $0x2b] sm:$0x1]
    %v119 = vld [vmem:[#allocation5 + $0x2c] sm:$0x1]
    %v120 = vld [vmem:[#allocation5 + $0x2d] sm:$0x1]
    %v121 = vld [vmem:[#allocation5 + $0x2e] sm:$0x1]
    %v122 = vld [vmem:[#allocation5 + $0x2f] sm:$0x1]
    %v123 = vld [vmem:[#allocation5 + $0x30] sm:$0x1]
    %v124 = vld [vmem:[#allocation5 + $0x31] sm:$0x1]
    %v125 = vld [vmem:[#allocation5 + $0x32] sm:$0x1]
    %v126 = vld [vmem:[#allocation5 + $0x33] sm:$0x1]
    %v127 = vld [vmem:[#allocation5 + $0x34] sm:$0x1]
    %v128 = vld [vmem:[#allocation5 + $0x35] sm:$0x1]
    %v129 = vld [vmem:[#allocation5 + $0x36] sm:$0x1]
    %v130 = vld [vmem:[#allocation5 + $0x37] sm:$0x1]
    %v131 = vld [vmem:[#allocation5 + $0x38] sm:$0x1]
    %v132 = vld [vmem:[#allocation5 + $0x39] sm:$0x1]
    %v133 = vld [vmem:[#allocation5 + $0x3a] sm:$0x1]
    %v134 = vld [vmem:[#allocation5 + $0x3b] sm:$0x1]
    %v135 = vld [vmem:[#allocation5 + $0x3c] sm:$0x1]
    %v136 = vld [vmem:[#allocation5 + $0x3d] sm:$0x1]
    %v137 = vld [vmem:[#allocation5 + $0x3e] sm:$0x1]
    %v138 = vld [vmem:[#allocation5 + $0x3f] sm:$0x1]
    %v139 = vld [vmem:[#allocation5 + $0x40] sm:$0x1]
    %v140 = vld [vmem:[#allocation5 + $0x41] sm:$0x1]
    %v141 = vld [vmem:[#allocation5 + $0x42] sm:$0x1]
    %v142 = vld [vmem:[#allocation5 + $0x43] sm:$0x1]
    %v143 = vld [vmem:[#allocation5 + $0x44] sm:$0x1]
    %v144 = vld [vmem:[#allocation5 + $0x45] sm:$0x1]
    %v145 = vld [vmem:[#allocation5 + $0x46] sm:$0x1]
    %v146 = vld [vmem:[#allocation5 + $0x47] sm:$0x1]
    %v147 = vld [vmem:[#allocation5 + $0x48] sm:$0x1]
    %v148 = vld [vmem:[#allocation5 + $0x49] sm:$0x1]
    %v149 = vld [vmem:[#allocation5 + $0x4a] sm:$0x1]
    %v150 = vld [vmem:[#allocation5 + $0x4b] sm:$0x1]
    %v151 = vld [vmem:[#allocation5 + $0x4c] sm:$0x1]
    %v152 = vld [vmem:[#allocation5 + $0x4d] sm:$0x1]
    %v153 = vld [vmem:[#allocation5 + $0x4e] sm:$0x1]
    %v154 = vld [vmem:[#allocation5 + $0x4f] sm:$0x1]
    %v155 = vld [vmem:[#allocation5 + $0x50] sm:$0x1]
    %v156 = vld [vmem:[#allocation5 + $0x51] sm:$0x1]
    %v157 = vld [vmem:[#allocation5 + $0x52] sm:$0x1]
    %v158 = vld [vmem:[#allocation5 + $0x53] sm:$0x1]
    %v159 = vld [vmem:[#allocation5 + $0x54] sm:$0x1]
    %v160 = vld [vmem:[#allocation5 + $0x55] sm:$0x1]
    %v161 = vld [vmem:[#allocation5 + $0x56] sm:$0x1]
    %v162 = vld [vmem:[#allocation5 + $0x57] sm:$0x1]
    %v163 = vld [vmem:[#allocation5 + $0x58] sm:$0x1]
    %v164 = vld [vmem:[#allocation5 + $0x59] sm:$0x1]
    %v165 = vld [vmem:[#allocation5 + $0x5a] sm:$0x1]
    %v166 = vld [vmem:[#allocation5 + $0x5b] sm:$0x1]
    %v167 = vld [vmem:[#allocation5 + $0x5c] sm:$0x1]
    %v168 = vld [vmem:[#allocation5 + $0x5d] sm:$0x1]
    %v169 = vld [vmem:[#allocation5 + $0x5e] sm:$0x1]
    %v170 = vld [vmem:[#allocation5 + $0x5f] sm:$0x1]
    %v171 = vld [vmem:[#allocation5 + $0x60] sm:$0x1]
    %v172 = vld [vmem:[#allocation5 + $0x61] sm:$0x1]
    %v173 = vld [vmem:[#allocation5 + $0x62] sm:$0x1]
    %v174 = vld [vmem:[#allocation5 + $0x63] sm:$0x1]
    %v175 = vld [vmem:[#allocation5 + $0x64] sm:$0x1]
    %v176 = vld [vmem:[#allocation5 + $0x65] sm:$0x1]
    %v177 = vld [vmem:[#allocation5 + $0x66] sm:$0x1]
    %v178 = vld [vmem:[#allocation5 + $0x67] sm:$0x1]
    %v179 = vld [vmem:[#allocation5 + $0x68] sm:$0x1]
    %v180 = vld [vmem:[#allocation5 + $0x69] sm:$0x1]
    %v181 = vld [vmem:[#allocation5 + $0x6a] sm:$0x1]
    %v182 = vld [vmem:[#allocation5 + $0x6b] sm:$0x1]
    %v183 = vld [vmem:[#allocation5 + $0x6c] sm:$0x1]
    %v184 = vld [vmem:[#allocation5 + $0x6d] sm:$0x1]
    %v185 = vld [vmem:[#allocation5 + $0x6e] sm:$0x1]
    %v186 = vld [vmem:[#allocation5 + $0x6f] sm:$0x1]
    %v187 = vld [vmem:[#allocation5 + $0x70] sm:$0x1]
    %v188 = vld [vmem:[#allocation5 + $0x71] sm:$0x1]
    %v189 = vld [vmem:[#allocation5 + $0x72] sm:$0x1]
    %v190 = vld [vmem:[#allocation5 + $0x73] sm:$0x1]
    %v191 = vld [vmem:[#allocation5 + $0x74] sm:$0x1]
    %v192 = vld [vmem:[#allocation5 + $0x75] sm:$0x1]
    %v193 = vld [vmem:[#allocation5 + $0x76] sm:$0x1]
    %v194 = vld [vmem:[#allocation5 + $0x77] sm:$0x1]
    %v195 = vld [vmem:[#allocation5 + $0x78] sm:$0x1]
    %v196 = vld [vmem:[#allocation5 + $0x79] sm:$0x1]
    %v197 = vld [vmem:[#allocation5 + $0x7a] sm:$0x1]
    %v198 = vld [vmem:[#allocation5 + $0x7b] sm:$0x1]
    %v199 = vld [vmem:[#allocation5 + $0x7c] sm:$0x1]
    %v200 = vld [vmem:[#allocation5 + $0x7d] sm:$0x1]
    %v201 = vld [vmem:[#allocation5 + $0x7e] sm:$0x1]
    %v202 = vld [vmem:[#allocation5 + $0x7f] sm:$0x1]
    %v203 = vld [vmem:[#allocation5 + $0x80] sm:$0x1]
    %v204 = vld [vmem:[#allocation5 + $0x81] sm:$0x1]
    %v205 = vld [vmem:[#allocation5 + $0x82] sm:$0x1]
    %v206 = vld [vmem:[#allocation5 + $0x83] sm:$0x1]
    %v207 = vld [vmem:[#allocation5 + $0x84] sm:$0x1]
    %v208 = vld [vmem:[#allocation5 + $0x85] sm:$0x1]
    %v209 = vld [vmem:[#allocation5 + $0x86] sm:$0x1]
    %v210 = vld [vmem:[#allocation5 + $0x87] sm:$0x1]
    %v211 = vld [vmem:[#allocation5 + $0x88] sm:$0x1]
    %v212 = vld [vmem:[#allocation5 + $0x89] sm:$0x1]
    %v213 = vld [vmem:[#allocation5 + $0x8a] sm:$0x1]
    %v214 = vld [vmem:[#allocation5 + $0x8b] sm:$0x1]
    %v215 = vld [vmem:[#allocation5 + $0x8c] sm:$0x1]
    %v216 = vld [vmem:[#allocation5 + $0x8d] sm:$0x1]
    %v217 = vld [vmem:[#allocation5 + $0x8e] sm:$0x1]
    %v218 = vld [vmem:[#allocation5 + $0x8f] sm:$0x1]
    %v219 = vld [vmem:[#allocation5 + $0x90] sm:$0x1]
    %v220 = vld [vmem:[#allocation5 + $0x91] sm:$0x1]
    %v221 = vld [vmem:[#allocation5 + $0x92] sm:$0x1]
    %v222 = vld [vmem:[#allocation5 + $0x93] sm:$0x1]
    %v223 = vld [vmem:[#allocation5 + $0x94] sm:$0x1]
    %v224 = vld [vmem:[#allocation5 + $0x95] sm:$0x1]
    %v225 = vld [vmem:[#allocation5 + $0x96] sm:$0x1]
    %v226 = vld [vmem:[#allocation5 + $0x97] sm:$0x1]
    %v227 = vld [vmem:[#allocation5 + $0x98] sm:$0x1]
    %v228 = vld [vmem:[#allocation5 + $0x99] sm:$0x1]
    %v229 = vld [vmem:[#allocation5 + $0x9a] sm:$0x1]
    %v230 = vld [vmem:[#allocation5 + $0x9b] sm:$0x1]
    %v231 = vld [vmem:[#allocation5 + $0x9c] sm:$0x1]
    %v232 = vld [vmem:[#allocation5 + $0x9d] sm:$0x1]
    %v233 = vld [vmem:[#allocation5 + $0x9e] sm:$0x1]
    %v234 = vld [vmem:[#allocation5 + $0x9f] sm:$0x1]
    %v235 = vperm.slane %v75, 0
    %v236 = vmul.f32 %v44, %v235
    %v237 = vperm.slane %v83, 0
    %v238 = vmul.f32 %v46, %v237
    %v239 = vadd.f32 %v236, %v238
    %v240 = vperm.slane %v91, 0
    %v241 = vmul.f32 %v48, %v240
    %v242 = vadd.f32 %v239, %v241
    %v243 = vperm.slane %v99, 0
    %v244 = vmul.f32 %v50, %v243
    %v245 = vadd.f32 %v242, %v244
    %v246 = vperm.slane %v107, 0
    %v247 = vmul.f32 %v52, %v246
    %v248 = vadd.f32 %v245, %v247
    %v249 = vperm.slane %v115, 0
    %v250 = vmul.f32 %v54, %v249
    %v251 = vadd.f32 %v248, %v250
    %v252 = vperm.slane %v123, 0
    %v253 = vmul.f32 %v56, %v252
    %v254 = vadd.f32 %v251, %v253
    %v255 = vperm.slane %v131, 0
    %v256 = vmul.f32 %v58, %v255
    %v257 = vadd.f32 %v254, %v256
    %v258 = vperm.slane %v139, 0
    %v259 = vmul.f32 %v60, %v258
    %v260 = vadd.f32 %v257, %v259
    %v261 = vperm.slane %v147, 0
    %v262 = vmul.f32 %v62, %v261
    %v263 = vadd.f32 %v260, %v262
    %v264 = vperm.slane %v155, 0
    %v265 = vmul.f32 %v64, %v264
    %v266 = vadd.f32 %v263, %v265
    %v267 = vperm.slane %v163, 0
    %v268 = vmul.f32 %v66, %v267
    %v269 = vadd.f32 %v266, %v268
    %v270 = vperm.slane %v171, 0
    %v271 = vmul.f32 %v68, %v270
    %v272 = vadd.f32 %v269, %v271
    %v273 = vperm.slane %v179, 0
    %v274 = vmul.f32 %v70, %v273
    %v275 = vadd.f32 %v272, %v274
    %v276 = vperm.slane %v187, 0
    %v277 = vmul.f32 %v72, %v276
    %v278 = vadd.f32 %v275, %v277
    %v279 = vperm.slane %v195, 0
    %v280 = vmul.f32 %v74, %v279
    %v281 = vadd.f32 %v278, %v280
    %v282 = vtanh.pop %v281
    %v283 = vrot.slane %v282, 4
    %v284 = vadd.f32 %v282, %v283
    %v285 = vrot.slane %v284, 2
    %v286 = vadd.f32 %v284, %v285
    %v287 = vrot.slane %v286, 1
    %v288 = vadd.f32 %v286, %v287
    %v289 = vadd.f32 %v288, 0.0
    %v290 = vperm.slane %v76, 0
    %v291 = vmul.f32 %v44, %v290
    %v292 = vperm.slane %v84, 0
    %v293 = vmul.f32 %v46, %v292
    %v294 = vadd.f32 %v291, %v293
    %v295 = vperm.slane %v92, 0
    %v296 = vmul.f32 %v48, %v295
    %v297 = vadd.f32 %v294, %v296
    %v298 = vperm.slane %v100, 0
    %v299 = vmul.f32 %v50, %v298
    %v300 = vadd.f32 %v297, %v299
    %v301 = vperm.slane %v108, 0
    %v302 = vmul.f32 %v52, %v301
    %v303 = vadd.f32 %v300, %v302
    %v304 = vperm.slane %v116, 0
    %v305 = vmul.f32 %v54, %v304
    %v306 = vadd.f32 %v303, %v305
    %v307 = vperm.slane %v124, 0
    %v308 = vmul.f32 %v56, %v307
    %v309 = vadd.f32 %v306, %v308
    %v310 = vperm.slane %v132, 0
    %v311 = vmul.f32 %v58, %v310
    %v312 = vadd.f32 %v309, %v311
    %v313 = vperm.slane %v140, 0
    %v314 = vmul.f32 %v60, %v313
    %v315 = vadd.f32 %v312, %v314
    %v316 = vperm.slane %v148, 0
    %v317 = vmul.f32 %v62, %v316
    %v318 = vadd.f32 %v315, %v317
    %v319 = vperm.slane %v156, 0
    %v320 = vmul.f32 %v64, %v319
    %v321 = vadd.f32 %v318, %v320
    %v322 = vperm.slane %v164, 0
    %v323 = vmul.f32 %v66, %v322
    %v324 = vadd.f32 %v321, %v323
    %v325 = vperm.slane %v172, 0
    %v326 = vmul.f32 %v68, %v325
    %v327 = vadd.f32 %v324, %v326
    %v328 = vperm.slane %v180, 0
    %v329 = vmul.f32 %v70, %v328
    %v330 = vadd.f32 %v327, %v329
    %v331 = vperm.slane %v188, 0
    %v332 = vmul.f32 %v72, %v331
    %v333 = vadd.f32 %v330, %v332
    %v334 = vperm.slane %v196, 0
    %v335 = vmul.f32 %v74, %v334
    %v336 = vadd.f32 %v333, %v335
    %v337 = vtanh.pop %v336
    %v338 = vrot.slane %v337, 4
    %v339 = vadd.f32 %v337, %v338
    %v340 = vrot.slane %v339, 2
    %v341 = vadd.f32 %v339, %v340
    %v342 = vrot.slane %v341, 1
    %v343 = vadd.f32 %v341, %v342
    %v344 = vadd.f32 %v343, 0.0
    %v345 = vperm.slane %v77, 0
    %v346 = vmul.f32 %v44, %v345
    %v347 = vperm.slane %v85, 0
    %v348 = vmul.f32 %v46, %v347
    %v349 = vadd.f32 %v346, %v348
    %v350 = vperm.slane %v93, 0
    %v351 = vmul.f32 %v48, %v350
    %v352 = vadd.f32 %v349, %v351
    %v353 = vperm.slane %v101, 0
    %v354 = vmul.f32 %v50, %v353
    %v355 = vadd.f32 %v352, %v354
    %v356 = vperm.slane %v109, 0
    %v357 = vmul.f32 %v52, %v356
    %v358 = vadd.f32 %v355, %v357
    %v359 = vperm.slane %v117, 0
    %v360 = vmul.f32 %v54, %v359
    %v361 = vadd.f32 %v358, %v360
    %v362 = vperm.slane %v125, 0
    %v363 = vmul.f32 %v56, %v362
    %v364 = vadd.f32 %v361, %v363
    %v365 = vperm.slane %v133, 0
    %v366 = vmul.f32 %v58, %v365
    %v367 = vadd.f32 %v364, %v366
    %v368 = vperm.slane %v141, 0
    %v369 = vmul.f32 %v60, %v368
    %v370 = vadd.f32 %v367, %v369
    %v371 = vperm.slane %v149, 0
    %v372 = vmul.f32 %v62, %v371
    %v373 = vadd.f32 %v370, %v372
    %v374 = vperm.slane %v157, 0
    %v375 = vmul.f32 %v64, %v374
    %v376 = vadd.f32 %v373, %v375
    %v377 = vperm.slane %v165, 0
    %v378 = vmul.f32 %v66, %v377
    %v379 = vadd.f32 %v376, %v378
    %v380 = vperm.slane %v173, 0
    %v381 = vmul.f32 %v68, %v380
    %v382 = vadd.f32 %v379, %v381
    %v383 = vperm.slane %v181, 0
    %v384 = vmul.f32 %v70, %v383
    %v385 = vadd.f32 %v382, %v384
    %v386 = vperm.slane %v189, 0
    %v387 = vmul.f32 %v72, %v386
    %v388 = vadd.f32 %v385, %v387
    %v389 = vperm.slane %v197, 0
    %v390 = vmul.f32 %v74, %v389
    %v391 = vadd.f32 %v388, %v390
    %v392 = vtanh.pop %v391
    %v393 = vrot.slane %v392, 4
    %v394 = vadd.f32 %v392, %v393
    %v395 = vrot.slane %v394, 2
    %v396 = vadd.f32 %v394, %v395
    %v397 = vrot.slane %v396, 1
    %v398 = vadd.f32 %v396, %v397
    %v399 = vadd.f32 %v398, 0.0
    %v400 = vperm.slane %v78, 0
    %v401 = vmul.f32 %v44, %v400
    %v402 = vperm.slane %v86, 0
    %v403 = vmul.f32 %v46, %v402
    %v404 = vadd.f32 %v401, %v403
    %v405 = vperm.slane %v94, 0
    %v406 = vmul.f32 %v48, %v405
    %v407 = vadd.f32 %v404, %v406
    %v408 = vperm.slane %v102, 0
    %v409 = vmul.f32 %v50, %v408
    %v410 = vadd.f32 %v407, %v409
    %v411 = vperm.slane %v110, 0
    %v412 = vmul.f32 %v52, %v411
    %v413 = vadd.f32 %v410, %v412
    %v414 = vperm.slane %v118, 0
    %v415 = vmul.f32 %v54, %v414
    %v416 = vadd.f32 %v413, %v415
    %v417 = vperm.slane %v126, 0
    %v418 = vmul.f32 %v56, %v417
    %v419 = vadd.f32 %v416, %v418
    %v420 = vperm.slane %v134, 0
    %v421 = vmul.f32 %v58, %v420
    %v422 = vadd.f32 %v419, %v421
    %v423 = vperm.slane %v142, 0
    %v424 = vmul.f32 %v60, %v423
    %v425 = vadd.f32 %v422, %v424
    %v426 = vperm.slane %v150, 0
    %v427 = vmul.f32 %v62, %v426
    %v428 = vadd.f32 %v425, %v427
    %v429 = vperm.slane %v158, 0
    %v430 = vmul.f32 %v64, %v429
    %v431 = vadd.f32 %v428, %v430
    %v432 = vperm.slane %v166, 0
    %v433 = vmul.f32 %v66, %v432
    %v434 = vadd.f32 %v431, %v433
    %v435 = vperm.slane %v174, 0
    %v436 = vmul.f32 %v68, %v435
    %v437 = vadd.f32 %v434, %v436
    %v438 = vperm.slane %v182, 0
    %v439 = vmul.f32 %v70, %v438
    %v440 = vadd.f32 %v437, %v439
    %v441 = vperm.slane %v190, 0
    %v442 = vmul.f32 %v72, %v441
    %v443 = vadd.f32 %v440, %v442
    %v444 = vperm.slane %v198, 0
    %v445 = vmul.f32 %v74, %v444
    %v446 = vadd.f32 %v443, %v445
    %v447 = vtanh.pop %v446
    %v448 = vrot.slane %v447, 4
    %v449 = vadd.f32 %v447, %v448
    %v450 = vrot.slane %v449, 2
    %v451 = vadd.f32 %v449, %v450
    %v452 = vrot.slane %v451, 1
    %v453 = vadd.f32 %v451, %v452
    %v454 = vadd.f32 %v453, 0.0
    %v455 = vperm.slane %v79, 0
    %v456 = vmul.f32 %v44, %v455
    %v457 = vperm.slane %v87, 0
    %v458 = vmul.f32 %v46, %v457
    %v459 = vadd.f32 %v456, %v458
    %v460 = vperm.slane %v95, 0
    %v461 = vmul.f32 %v48, %v460
    %v462 = vadd.f32 %v459, %v461
    %v463 = vperm.slane %v103, 0
    %v464 = vmul.f32 %v50, %v463
    %v465 = vadd.f32 %v462, %v464
    %v466 = vperm.slane %v111, 0
    %v467 = vmul.f32 %v52, %v466
    %v468 = vadd.f32 %v465, %v467
    %v469 = vperm.slane %v119, 0
    %v470 = vmul.f32 %v54, %v469
    %v471 = vadd.f32 %v468, %v470
    %v472 = vperm.slane %v127, 0
    %v473 = vmul.f32 %v56, %v472
    %v474 = vadd.f32 %v471, %v473
    %v475 = vperm.slane %v135, 0
    %v476 = vmul.f32 %v58, %v475
    %v477 = vadd.f32 %v474, %v476
    %v478 = vperm.slane %v143, 0
    %v479 = vmul.f32 %v60, %v478
    %v480 = vadd.f32 %v477, %v479
    %v481 = vperm.slane %v151, 0
    %v482 = vmul.f32 %v62, %v481
    %v483 = vadd.f32 %v480, %v482
    %v484 = vperm.slane %v159, 0
    %v485 = vmul.f32 %v64, %v484
    %v486 = vadd.f32 %v483, %v485
    %v487 = vperm.slane %v167, 0
    %v488 = vmul.f32 %v66, %v487
    %v489 = vadd.f32 %v486, %v488
    %v490 = vperm.slane %v175, 0
    %v491 = vmul.f32 %v68, %v490
    %v492 = vadd.f32 %v489, %v491
    %v493 = vperm.slane %v183, 0
    %v494 = vmul.f32 %v70, %v493
    %v495 = vadd.f32 %v492, %v494
    %v496 = vperm.slane %v191, 0
    %v497 = vmul.f32 %v72, %v496
    %v498 = vadd.f32 %v495, %v497
    %v499 = vperm.slane %v199, 0
    %v500 = vmul.f32 %v74, %v499
    %v501 = vadd.f32 %v498, %v500
    %v502 = vtanh.pop %v501
    %v503 = vrot.slane %v502, 4
    %v504 = vadd.f32 %v502, %v503
    %v505 = vrot.slane %v504, 2
    %v506 = vadd.f32 %v504, %v505
    %v507 = vrot.slane %v506, 1
    %v508 = vadd.f32 %v506, %v507
    %v509 = vadd.f32 %v508, 0.0
    %v510 = vperm.slane %v80, 0
    %v511 = vmul.f32 %v44, %v510
    %v512 = vperm.slane %v88, 0
    %v513 = vmul.f32 %v46, %v512
    %v514 = vadd.f32 %v511, %v513
    %v515 = vperm.slane %v96, 0
    %v516 = vmul.f32 %v48, %v515
    %v517 = vadd.f32 %v514, %v516
    %v518 = vperm.slane %v104, 0
    %v519 = vmul.f32 %v50, %v518
    %v520 = vadd.f32 %v517, %v519
    %v521 = vperm.slane %v112, 0
    %v522 = vmul.f32 %v52, %v521
    %v523 = vadd.f32 %v520, %v522
    %v524 = vperm.slane %v120, 0
    %v525 = vmul.f32 %v54, %v524
    %v526 = vadd.f32 %v523, %v525
    %v527 = vperm.slane %v128, 0
    %v528 = vmul.f32 %v56, %v527
    %v529 = vadd.f32 %v526, %v528
    %v530 = vperm.slane %v136, 0
    %v531 = vmul.f32 %v58, %v530
    %v532 = vadd.f32 %v529, %v531
    %v533 = vperm.slane %v144, 0
    %v534 = vmul.f32 %v60, %v533
    %v535 = vadd.f32 %v532, %v534
    %v536 = vperm.slane %v152, 0
    %v537 = vmul.f32 %v62, %v536
    %v538 = vadd.f32 %v535, %v537
    %v539 = vperm.slane %v160, 0
    %v540 = vmul.f32 %v64, %v539
    %v541 = vadd.f32 %v538, %v540
    %v542 = vperm.slane %v168, 0
    %v543 = vmul.f32 %v66, %v542
    %v544 = vadd.f32 %v541, %v543
    %v545 = vperm.slane %v176, 0
    %v546 = vmul.f32 %v68, %v545
    %v547 = vadd.f32 %v544, %v546
    %v548 = vperm.slane %v184, 0
    %v549 = vmul.f32 %v70, %v548
    %v550 = vadd.f32 %v547, %v549
    %v551 = vperm.slane %v192, 0
    %v552 = vmul.f32 %v72, %v551
    %v553 = vadd.f32 %v550, %v552
    %v554 = vperm.slane %v200, 0
    %v555 = vmul.f32 %v74, %v554
    %v556 = vadd.f32 %v553, %v555
    %v557 = vtanh.pop %v556
    %v558 = vrot.slane %v557, 4
    %v559 = vadd.f32 %v557, %v558
    %v560 = vrot.slane %v559, 2
    %v561 = vadd.f32 %v559, %v560
    %v562 = vrot.slane %v561, 1
    %v563 = vadd.f32 %v561, %v562
    %v564 = vadd.f32 %v563, 0.0
    %v565 = vperm.slane %v81, 0
    %v566 = vmul.f32 %v44, %v565
    %v567 = vperm.slane %v89, 0
    %v568 = vmul.f32 %v46, %v567
    %v569 = vadd.f32 %v566, %v568
    %v570 = vperm.slane %v97, 0
    %v571 = vmul.f32 %v48, %v570
    %v572 = vadd.f32 %v569, %v571
    %v573 = vperm.slane %v105, 0
    %v574 = vmul.f32 %v50, %v573
    %v575 = vadd.f32 %v572, %v574
    %v576 = vperm.slane %v113, 0
    %v577 = vmul.f32 %v52, %v576
    %v578 = vadd.f32 %v575, %v577
    %v579 = vperm.slane %v121, 0
    %v580 = vmul.f32 %v54, %v579
    %v581 = vadd.f32 %v578, %v580
    %v582 = vperm.slane %v129, 0
    %v583 = vmul.f32 %v56, %v582
    %v584 = vadd.f32 %v581, %v583
    %v585 = vperm.slane %v137, 0
    %v586 = vmul.f32 %v58, %v585
    %v587 = vadd.f32 %v584, %v586
    %v588 = vperm.slane %v145, 0
    %v589 = vmul.f32 %v60, %v588
    %v590 = vadd.f32 %v587, %v589
    %v591 = vperm.slane %v153, 0
    %v592 = vmul.f32 %v62, %v591
    %v593 = vadd.f32 %v590, %v592
    %v594 = vperm.slane %v161, 0
    %v595 = vmul.f32 %v64, %v594
    %v596 = vadd.f32 %v593, %v595
    %v597 = vperm.slane %v169, 0
    %v598 = vmul.f32 %v66, %v597
    %v599 = vadd.f32 %v596, %v598
    %v600 = vperm.slane %v177, 0
    %v601 = vmul.f32 %v68, %v600
    %v602 = vadd.f32 %v599, %v601
    %v603 = vperm.slane %v185, 0
    %v604 = vmul.f32 %v70, %v603
    %v605 = vadd.f32 %v602, %v604
    %v606 = vperm.slane %v193, 0
    %v607 = vmul.f32 %v72, %v606
    %v608 = vadd.f32 %v605, %v607
    %v609 = vperm.slane %v201, 0
    %v610 = vmul.f32 %v74, %v609
    %v611 = vadd.f32 %v608, %v610
    %v612 = vtanh.pop %v611
    %v613 = vrot.slane %v612, 4
    %v614 = vadd.f32 %v612, %v613
    %v615 = vrot.slane %v614, 2
    %v616 = vadd.f32 %v614, %v615
    %v617 = vrot.slane %v616, 1
    %v618 = vadd.f32 %v616, %v617
    %v619 = vadd.f32 %v618, 0.0
    %v620 = vperm.slane %v82, 0
    %v621 = vmul.f32 %v44, %v620
    %v622 = vperm.slane %v90, 0
    %v623 = vmul.f32 %v46, %v622
    %v624 = vadd.f32 %v621, %v623
    %v625 = vperm.slane %v98, 0
    %v626 = vmul.f32 %v48, %v625
    %v627 = vadd.f32 %v624, %v626
    %v628 = vperm.slane %v106, 0
    %v629 = vmul.f32 %v50, %v628
    %v630 = vadd.f32 %v627, %v629
    %v631 = vperm.slane %v114, 0
    %v632 = vmul.f32 %v52, %v631
    %v633 = vadd.f32 %v630, %v632
    %v634 = vperm.slane %v122, 0
    %v635 = vmul.f32 %v54, %v634
    %v636 = vadd.f32 %v633, %v635
    %v637 = vperm.slane %v130, 0
    %v638 = vmul.f32 %v56, %v637
    %v639 = vadd.f32 %v636, %v638
    %v640 = vperm.slane %v138, 0
    %v641 = vmul.f32 %v58, %v640
    %v642 = vadd.f32 %v639, %v641
    %v643 = vperm.slane %v146, 0
    %v644 = vmul.f32 %v60, %v643
    %v645 = vadd.f32 %v642, %v644
    %v646 = vperm.slane %v154, 0
    %v647 = vmul.f32 %v62, %v646
    %v648 = vadd.f32 %v645, %v647
    %v649 = vperm.slane %v162, 0
    %v650 = vmul.f32 %v64, %v649
    %v651 = vadd.f32 %v648, %v650
    %v652 = vperm.slane %v170, 0
    %v653 = vmul.f32 %v66, %v652
    %v654 = vadd.f32 %v651, %v653
    %v655 = vperm.slane %v178, 0
    %v656 = vmul.f32 %v68, %v655
    %v657 = vadd.f32 %v654, %v656
    %v658 = vperm.slane %v186, 0
    %v659 = vmul.f32 %v70, %v658
    %v660 = vadd.f32 %v657, %v659
    %v661 = vperm.slane %v194, 0
    %v662 = vmul.f32 %v72, %v661
    %v663 = vadd.f32 %v660, %v662
    %v664 = vperm.slane %v202, 0
    %v665 = vmul.f32 %v74, %v664
    %v666 = vadd.f32 %v663, %v665
    %v667 = vtanh.pop %v666
    %v668 = vrot.slane %v667, 4
    %v669 = vadd.f32 %v667, %v668
    %v670 = vrot.slane %v669, 2
    %v671 = vadd.f32 %v669, %v670
    %v672 = vrot.slane %v671, 1
    %v673 = vadd.f32 %v671, %v672
    %v674 = vadd.f32 %v673, 0.0
    %v675 = vmul.f32 %v288, %v203
    %v676 = vmul.f32 %v343, %v207
    %v677 = vadd.f32 %v675, %v676
    %v678 = vmul.f32 %v398, %v211
    %v679 = vadd.f32 %v677, %v678
    %v680 = vmul.f32 %v453, %v215
    %v681 = vadd.f32 %v679, %v680
    %v682 = vmul.f32 %v508, %v219
    %v683 = vadd.f32 %v681, %v682
    %v684 = vmul.f32 %v563, %v223
    %v685 = vadd.f32 %v683, %v684
    %v686 = vmul.f32 %v618, %v227
    %v687 = vadd.f32 %v685, %v686
    %v688 = vmul.f32 %v673, %v231
    %v689 = vadd.f32 %v687, %v688
    %v690 = vadd.f32 %v689, 0.0
    %v691 = vmul.f32 %v288, %v204
    %v692 = vmul.f32 %v343, %v208
    %v693 = vadd.f32 %v691, %v692
    %v694 = vmul.f32 %v398, %v212
    %v695 = vadd.f32 %v693, %v694
    %v696 = vmul.f32 %v453, %v216
    %v697 = vadd.f32 %v695, %v696
    %v698 = vmul.f32 %v508, %v220
    %v699 = vadd.f32 %v697, %v698
    %v700 = vmul.f32 %v563, %v224
    %v701 = vadd.f32 %v699, %v700
    %v702 = vmul.f32 %v618, %v228
    %v703 = vadd.f32 %v701, %v702
    %v704 = vmul.f32 %v673, %v232
    %v705 = vadd.f32 %v703, %v704
    %v706 = vadd.f32 %v705, 0.0
    %v707 = vmul.f32 %v288, %v205
    %v708 = vmul.f32 %v343, %v209
    %v709 = vadd.f32 %v707, %v708
    %v710 = vmul.f32 %v398, %v213
    %v711 = vadd.f32 %v709, %v710
    %v712 = vmul.f32 %v453, %v217
    %v713 = vadd.f32 %v711, %v712
    %v714 = vmul.f32 %v508, %v221
    %v715 = vadd.f32 %v713, %v714
    %v716 = vmul.f32 %v563, %v225
    %v717 = vadd.f32 %v715, %v716
    %v718 = vmul.f32 %v618, %v229
    %v719 = vadd.f32 %v717, %v718
    %v720 = vmul.f32 %v673, %v233
    %v721 = vadd.f32 %v719, %v720
    %v722 = vadd.f32 %v721, 0.0
    %v723 = vmul.f32 %v288, %v206
    %v724 = vmul.f32 %v343, %v210
    %v725 = vadd.f32 %v723, %v724
    %v726 = vmul.f32 %v398, %v214
    %v727 = vadd.f32 %v725, %v726
    %v728 = vmul.f32 %v453, %v218
    %v729 = vadd.f32 %v727, %v728
    %v730 = vmul.f32 %v508, %v222
    %v731 = vadd.f32 %v729, %v730
    %v732 = vmul.f32 %v563, %v226
    %v733 = vadd.f32 %v731, %v732
    %v734 = vmul.f32 %v618, %v230
    %v735 = vadd.f32 %v733, %v734
    %v736 = vmul.f32 %v673, %v234
    %v737 = vadd.f32 %v735, %v736
    %v738 = vadd.f32 %v737, 0.0
    %v739 = vmul.f32 %v44, %v44
    %v740 = vmul.f32 %v46, %v46
    %v741 = vmul.f32 %v48, %v48
    %v742 = vmul.f32 %v50, %v50
    %v743 = vmul.f32 %v52, %v52
    %v744 = vmul.f32 %v54, %v54
    %v745 = vmul.f32 %v56, %v56
    %v746 = vmul.f32 %v58, %v58
    %v747 = vmul.f32 %v60, %v60
    %v748 = vmul.f32 %v62, %v62
    %v749 = vmul.f32 %v64, %v64
    %v750 = vmul.f32 %v66, %v66
    %v751 = vmul.f32 %v68, %v68
    %v752 = vmul.f32 %v70, %v70
    %v753 = vmul.f32 %v72, %v72
    %v754 = vmul.f32 %v74, %v74
    %v755 = vmul.f32 %v739, %v235
    %v756 = vmul.f32 %v740, %v237
    %v757 = vadd.f32 %v755, %v756
    %v758 = vmul.f32 %v741, %v240
    %v759 = vadd.f32 %v757, %v758
    %v760 = vmul.f32 %v742, %v243
    %v761 = vadd.f32 %v759, %v760
    %v762 = vmul.f32 %v743, %v246
    %v763 = vadd.f32 %v761, %v762
    %v764 = vmul.f32 %v744, %v249
    %v765 = vadd.f32 %v763, %v764
    %v766 = vmul.f32 %v745, %v252
    %v767 = vadd.f32 %v765, %v766
    %v768 = vmul.f32 %v746, %v255
    %v769 = vadd.f32 %v767, %v768
    %v770 = vmul.f32 %v747, %v258
    %v771 = vadd.f32 %v769, %v770
    %v772 = vmul.f32 %v748, %v261
    %v773 = vadd.f32 %v771, %v772
    %v774 = vmul.f32 %v749, %v264
    %v775 = vadd.f32 %v773, %v774
    %v776 = vmul.f32 %v750, %v267
    %v777 = vadd.f32 %v775, %v776
    %v778 = vmul.f32 %v751, %v270
    %v779 = vadd.f32 %v777, %v778
    %v780 = vmul.f32 %v752, %v273
    %v781 = vadd.f32 %v779, %v780
    %v782 = vmul.f32 %v753, %v276
    %v783 = vadd.f32 %v781, %v782
    %v784 = vmul.f32 %v754, %v279
    %v785 = vadd.f32 %v783, %v784
    %v786 = vtanh.pop %v785
    %v787 = vrot.slane %v786, 4
    %v788 = vadd.f32 %v786, %v787
    %v789 = vrot.slane %v788, 2
    %v790 = vadd.f32 %v788, %v789
    %v791 = vrot.slane %v790, 1
    %v792 = vadd.f32 %v790, %v791
    %v793 = vadd.f32 %v289, %v792
    %v794 = vmul.f32 %v739, %v290
    %v795 = vmul.f32 %v740, %v292
    %v796 = vadd.f32 %v794, %v795
    %v797 = vmul.f32 %v741, %v295
    %v798 = vadd.f32 %v796, %v797
    %v799 = vmul.f32 %v742, %v298
    %v800 = vadd.f32 %v798, %v799
    %v801 = vmul.f32 %v743, %v301
    %v802 = vadd.f32 %v800, %v801
    %v803 = vmul.f32 %v744, %v304
    %v804 = vadd.f32 %v802, %v803
    %v805 = vmul.f32 %v745, %v307
    %v806 = vadd.f32 %v804, %v805
    %v807 = vmul.f32 %v746, %v310
    %v808 = vadd.f32 %v806, %v807
    %v809 = vmul.f32 %v747, %v313
    %v810 = vadd.f32 %v808, %v809
    %v811 = vmul.f32 %v748, %v316
    %v812 = vadd.f32 %v810, %v811
    %v813 = vmul.f32 %v749, %v319
    %v814 = vadd.f32 %v812, %v813
    %v815 = vmul.f32 %v750, %v322
    %v816 = vadd.f32 %v814, %v815
    %v817 = vmul.f32 %v751, %v325
    %v818 = vadd.f32 %v816, %v817
    %v819 = vmul.f32 %v752, %v328
    %v820 = vadd.f32 %v818, %v819
    %v821 = vmul.f32 %v753, %v331
    %v822 = vadd.f32 %v820, %v821
    %v823 = vmul.f32 %v754, %v334
    %v824 = vadd.f32 %v822, %v823
    %v825 = vtanh.pop %v824
    %v826 = vrot.slane %v825, 4
    %v827 = vadd.f32 %v825, %v826
    %v828 = vrot.slane %v827, 2
    %v829 = vadd.f32 %v827, %v828
    %v830 = vrot.slane %v829, 1
    %v831 = vadd.f32 %v829, %v830
    %v832 = vadd.f32 %v344, %v831
    %v833 = vmul.f32 %v739, %v345
    %v834 = vmul.f32 %v740, %v347
    %v835 = vadd.f32 %v833, %v834
    %v836 = vmul.f32 %v741, %v350
    %v837 = vadd.f32 %v835, %v836
    %v838 = vmul.f32 %v742, %v353
    %v839 = vadd.f32 %v837, %v838
    %v840 = vmul.f32 %v743, %v356
    %v841 = vadd.f32 %v839, %v840
    %v842 = vmul.f32 %v744, %v359
    %v843 = vadd.f32 %v841, %v842
    %v844 = vmul.f32 %v745, %v362
    %v845 = vadd.f32 %v843, %v844
    %v846 = vmul.f32 %v746, %v365
    %v847 = vadd.f32 %v845, %v846
    %v848 = vmul.f32 %v747, %v368
    %v849 = vadd.f32 %v847, %v848
    %v850 = vmul.f32 %v748, %v371
    %v851 = vadd.f32 %v849, %v850
    %v852 = vmul.f32 %v749, %v374
    %v853 = vadd.f32 %v851, %v852
    %v854 = vmul.f32 %v750, %v377
    %v855 = vadd.f32 %v853, %v854
    %v856 = vmul.f32 %v751, %v380
    %v857 = vadd.f32 %v855, %v856
    %v858 = vmul.f32 %v752, %v383
    %v859 = vadd.f32 %v857, %v858
    %v860 = vmul.f32 %v753, %v386
    %v861 = vadd.f32 %v859, %v860
    %v862 = vmul.f32 %v754, %v389
    %v863 = vadd.f32 %v861, %v862
    %v864 = vtanh.pop %v863
    %v865 = vrot.slane %v864, 4
    %v866 = vadd.f32 %v864, %v865
    %v867 = vrot.slane %v866, 2
    %v868 = vadd.f32 %v866, %v867
    %v869 = vrot.slane %v868, 1
    %v870 = vadd.f32 %v868, %v869
    %v871 = vadd.f32 %v399, %v870
    %v872 = vmul.f32 %v739, %v400
    %v873 = vmul.f32 %v740, %v402
    %v874 = vadd.f32 %v872, %v873
    %v875 = vmul.f32 %v741, %v405
    %v876 = vadd.f32 %v874, %v875
    %v877 = vmul.f32 %v742, %v408
    %v878 = vadd.f32 %v876, %v877
    %v879 = vmul.f32 %v743, %v411
    %v880 = vadd.f32 %v878, %v879
    %v881 = vmul.f32 %v744, %v414
    %v882 = vadd.f32 %v880, %v881
    %v883 = vmul.f32 %v745, %v417
    %v884 = vadd.f32 %v882, %v883
    %v885 = vmul.f32 %v746, %v420
    %v886 = vadd.f32 %v884, %v885
    %v887 = vmul.f32 %v747, %v423
    %v888 = vadd.f32 %v886, %v887
    %v889 = vmul.f32 %v748, %v426
    %v890 = vadd.f32 %v888, %v889
    %v891 = vmul.f32 %v749, %v429
    %v892 = vadd.f32 %v890, %v891
    %v893 = vmul.f32 %v750, %v432
    %v894 = vadd.f32 %v892, %v893
    %v895 = vmul.f32 %v751, %v435
    %v896 = vadd.f32 %v894, %v895
    %v897 = vmul.f32 %v752, %v438
    %v898 = vadd.f32 %v896, %v897
    %v899 = vmul.f32 %v753, %v441
    %v900 = vadd.f32 %v898, %v899
    %v901 = vmul.f32 %v754, %v444
    %v902 = vadd.f32 %v900, %v901
    %v903 = vtanh.pop %v902
    %v904 = vrot.slane %v903, 4
    %v905 = vadd.f32 %v903, %v904
    %v906 = vrot.slane %v905, 2
    %v907 = vadd.f32 %v905, %v906
    %v908 = vrot.slane %v907, 1
    %v909 = vadd.f32 %v907, %v908
    %v910 = vadd.f32 %v454, %v909
    %v911 = vmul.f32 %v739, %v455
    %v912 = vmul.f32 %v740, %v457
    %v913 = vadd.f32 %v911, %v912
    %v914 = vmul.f32 %v741, %v460
    %v915 = vadd.f32 %v913, %v914
    %v916 = vmul.f32 %v742, %v463
    %v917 = vadd.f32 %v915, %v916
    %v918 = vmul.f32 %v743, %v466
    %v919 = vadd.f32 %v917, %v918
    %v920 = vmul.f32 %v744, %v469
    %v921 = vadd.f32 %v919, %v920
    %v922 = vmul.f32 %v745, %v472
    %v923 = vadd.f32 %v921, %v922
    %v924 = vmul.f32 %v746, %v475
    %v925 = vadd.f32 %v923, %v924
    %v926 = vmul.f32 %v747, %v478
    %v927 = vadd.f32 %v925, %v926
    %v928 = vmul.f32 %v748, %v481
    %v929 = vadd.f32 %v927, %v928
    %v930 = vmul.f32 %v749, %v484
    %v931 = vadd.f32 %v929, %v930
    %v932 = vmul.f32 %v750, %v487
    %v933 = vadd.f32 %v931, %v932
    %v934 = vmul.f32 %v751, %v490
    %v935 = vadd.f32 %v933, %v934
    %v936 = vmul.f32 %v752, %v493
    %v937 = vadd.f32 %v935, %v936
    %v938 = vmul.f32 %v753, %v496
    %v939 = vadd.f32 %v937, %v938
    %v940 = vmul.f32 %v754, %v499
    %v941 = vadd.f32 %v939, %v940
    %v942 = vtanh.pop %v941
    %v943 = vrot.slane %v942, 4
    %v944 = vadd.f32 %v942, %v943
    %v945 = vrot.slane %v944, 2
    %v946 = vadd.f32 %v944, %v945
    %v947 = vrot.slane %v946, 1
    %v948 = vadd.f32 %v946, %v947
    %v949 = vadd.f32 %v509, %v948
    %v950 = vmul.f32 %v739, %v510
    %v951 = vmul.f32 %v740, %v512
    %v952 = vadd.f32 %v950, %v951
    %v953 = vmul.f32 %v741, %v515
    %v954 = vadd.f32 %v952, %v953
    %v955 = vmul.f32 %v742, %v518
    %v956 = vadd.f32 %v954, %v955
    %v957 = vmul.f32 %v743, %v521
    %v958 = vadd.f32 %v956, %v957
    %v959 = vmul.f32 %v744, %v524
    %v960 = vadd.f32 %v958, %v959
    %v961 = vmul.f32 %v745, %v527
    %v962 = vadd.f32 %v960, %v961
    %v963 = vmul.f32 %v746, %v530
    %v964 = vadd.f32 %v962, %v963
    %v965 = vmul.f32 %v747, %v533
    %v966 = vadd.f32 %v964, %v965
    %v967 = vmul.f32 %v748, %v536
    %v968 = vadd.f32 %v966, %v967
    %v969 = vmul.f32 %v749, %v539
    %v970 = vadd.f32 %v968, %v969
    %v971 = vmul.f32 %v750, %v542
    %v972 = vadd.f32 %v970, %v971
    %v973 = vmul.f32 %v751, %v545
    %v974 = vadd.f32 %v972, %v973
    %v975 = vmul.f32 %v752, %v548
    %v976 = vadd.f32 %v974, %v975
    %v977 = vmul.f32 %v753, %v551
    %v978 = vadd.f32 %v976, %v977
    %v979 = vmul.f32 %v754, %v554
    %v980 = vadd.f32 %v978, %v979
    %v981 = vtanh.pop %v980
    %v982 = vrot.slane %v981, 4
    %v983 = vadd.f32 %v981, %v982
    %v984 = vrot.slane %v983, 2
    %v985 = vadd.f32 %v983, %v984
    %v986 = vrot.slane %v985, 1
    %v987 = vadd.f32 %v985, %v986
    %v988 = vadd.f32 %v564, %v987
    %v989 = vmul.f32 %v739, %v565
    %v990 = vmul.f32 %v740, %v567
    %v991 = vadd.f32 %v989, %v990
    %v992 = vmul.f32 %v741, %v570
    %v993 = vadd.f32 %v991, %v992
    %v994 = vmul.f32 %v742, %v573
    %v995 = vadd.f32 %v993, %v994
    %v996 = vmul.f32 %v743, %v576
    %v997 = vadd.f32 %v995, %v996
    %v998 = vmul.f32 %v744, %v579
    %v999 = vadd.f32 %v997, %v998
    %v1000 = vmul.f32 %v745, %v582
    %v1001 = vadd.f32 %v999, %v1000
    %v1002 = vmul.f32 %v746, %v585
    %v1003 = vadd.f32 %v1001, %v1002
    %v1004 = vmul.f32 %v747, %v588
    %v1005 = vadd.f32 %v1003, %v1004
    %v1006 = vmul.f32 %v748, %v591
    %v1007 = vadd.f32 %v1005, %v1006
    %v1008 = vmul.f32 %v749, %v594
    %v1009 = vadd.f32 %v1007, %v1008
    %v1010 = vmul.f32 %v750, %v597
    %v1011 = vadd.f32 %v1009, %v1010
    %v1012 = vmul.f32 %v751, %v600
    %v1013 = vadd.f32 %v1011, %v1012
    %v1014 = vmul.f32 %v752, %v603
    %v1015 = vadd.f32 %v1013, %v1014
    %v1016 = vmul.f32 %v753, %v606
    %v1017 = vadd.f32 %v1015, %v1016
    %v1018 = vmul.f32 %v754, %v609
    %v1019 = vadd.f32 %v1017, %v1018
    %v1020 = vtanh.pop %v1019
    %v1021 = vrot.slane %v1020, 4
    %v1022 = vadd.f32 %v1020, %v1021
    %v1023 = vrot.slane %v1022, 2
    %v1024 = vadd.f32 %v1022, %v1023
    %v1025 = vrot.slane %v1024, 1
    %v1026 = vadd.f32 %v1024, %v1025
    %v1027 = vadd.f32 %v619, %v1026
    %v1028 = vmul.f32 %v739, %v620
    %v1029 = vmul.f32 %v740, %v622
    %v1030 = vadd.f32 %v1028, %v1029
    %v1031 = vmul.f32 %v741, %v625
    %v1032 = vadd.f32 %v1030, %v1031
    %v1033 = vmul.f32 %v742, %v628
    %v1034 = vadd.f32 %v1032, %v1033
    %v1035 = vmul.f32 %v743, %v631
    %v1036 = vadd.f32 %v1034, %v1035
    %v1037 = vmul.f32 %v744, %v634
    %v1038 = vadd.f32 %v1036, %v1037
    %v1039 = vmul.f32 %v745, %v637
    %v1040 = vadd.f32 %v1038, %v1039
    %v1041 = vmul.f32 %v746, %v640
    %v1042 = vadd.f32 %v1040, %v1041
    %v1043 = vmul.f32 %v747, %v643
    %v1044 = vadd.f32 %v1042, %v1043
    %v1045 = vmul.f32 %v748, %v646
    %v1046 = vadd.f32 %v1044, %v1045
    %v1047 = vmul.f32 %v749, %v649
    %v1048 = vadd.f32 %v1046, %v1047
    %v1049 = vmul.f32 %v750, %v652
    %v1050 = vadd.f32 %v1048, %v1049
    %v1051 = vmul.f32 %v751, %v655
    %v1052 = vadd.f32 %v1050, %v1051
    %v1053 = vmul.f32 %v752, %v658
    %v1054 = vadd.f32 %v1052, %v1053
    %v1055 = vmul.f32 %v753, %v661
    %v1056 = vadd.f32 %v1054, %v1055
    %v1057 = vmul.f32 %v754, %v664
    %v1058 = vadd.f32 %v1056, %v1057
    %v1059 = vtanh.pop %v1058
    %v1060 = vrot.slane %v1059, 4
    %v1061 = vadd.f32 %v1059, %v1060
    %v1062 = vrot.slane %v1061, 2
    %v1063 = vadd.f32 %v1061, %v1062
    %v1064 = vrot.slane %v1063, 1
    %v1065 = vadd.f32 %v1063, %v1064
    %v1066 = vadd.f32 %v674, %v1065
    %v1067 = vmul.f32 %v792, %v203
    %v1068 = vmul.f32 %v831, %v207
    %v1069 = vadd.f32 %v1067, %v1068
    %v1070 = vmul.f32 %v870, %v211
    %v1071 = vadd.f32 %v1069, %v1070
    %v1072 = vmul.f32 %v909, %v215
    %v1073 = vadd.f32 %v1071, %v1072
    %v1074 = vmul.f32 %v948, %v219
    %v1075 = vadd.f32 %v1073, %v1074
    %v1076 = vmul.f32 %v987, %v223
    %v1077 = vadd.f32 %v1075, %v1076
    %v1078 = vmul.f32 %v1026, %v227
    %v1079 = vadd.f32 %v1077, %v1078
    %v1080 = vmul.f32 %v1065, %v231
    %v1081 = vadd.f32 %v1079, %v1080
    %v1082 = vadd.f32 %v690, %v1081
    %v1083 = vmul.f32 %v792, %v204
    %v1084 = vmul.f32 %v831, %v208
    %v1085 = vadd.f32 %v1083, %v1084
    %v1086 = vmul.f32 %v870, %v212
    %v1087 = vadd.f32 %v1085, %v1086
    %v1088 = vmul.f32 %v909, %v216
    %v1089 = vadd.f32 %v1087, %v1088
    %v1090 = vmul.f32 %v948, %v220
    %v1091 = vadd.f32 %v1089, %v1090
    %v1092 = vmul.f32 %v987, %v224
    %v1093 = vadd.f32 %v1091, %v1092
    %v1094 = vmul.f32 %v1026, %v228
    %v1095 = vadd.f32 %v1093, %v1094
    %v1096 = vmul.f32 %v1065, %v232
    %v1097 = vadd.f32 %v1095, %v1096
    %v1098 = vadd.f32 %v706, %v1097
    %v1099 = vmul.f32 %v792, %v205
    %v1100 = vmul.f32 %v831, %v209
    %v1101 = vadd.f32 %v1099, %v1100
    %v1102 = vmul.f32 %v870, %v213
    %v1103 = vadd.f32 %v1101, %v1102
    %v1104 = vmul.f32 %v909, %v217
    %v1105 = vadd.f32 %v1103, %v1104
    %v1106 = vmul.f32 %v948, %v221
    %v1107 = vadd.f32 %v1105, %v1106
    %v1108 = vmul.f32 %v987, %v225
    %v1109 = vadd.f32 %v1107, %v1108
    %v1110 = vmul.f32 %v1026, %v229
    %v1111 = vadd.f32 %v1109, %v1110
    %v1112 = vmul.f32 %v1065, %v233
    %v1113 = vadd.f32 %v1111, %v1112
    %v1114 = vadd.f32 %v722, %v1113
    %v1115 = vmul.f32 %v792, %v206
    %v1116 = vmul.f32 %v831, %v210
    %v1117 = vadd.f32 %v1115, %v1116
    %v1118 = vmul.f32 %v870, %v214
    %v1119 = vadd.f32 %v1117, %v1118
    %v1120 = vmul.f32 %v909, %v218
    %v1121 = vadd.f32 %v1119, %v1120
    %v1122 = vmul.f32 %v948, %v222
    %v1123 = vadd.f32 %v1121, %v1122
    %v1124 = vmul.f32 %v987, %v226
    %v1125 = vadd.f32 %v1123, %v1124
    %v1126 = vmul.f32 %v1026, %v230
    %v1127 = vadd.f32 %v1125, %v1126
    %v1128 = vmul.f32 %v1065, %v234
    %v1129 = vadd.f32 %v1127, %v1128
    %v1130 = vadd.f32 %v738, %v1129
    %v1132 = vrot.slane %v1098, 7
    %v1135 = vrot.slane %v1114, 6
    %v1138 = vrot.slane %v1130, 5
    %vm1140 = vcmask 1040384
    %v1141 = vsel %vm1140, %v793, %v832
    %vm1142 = vcmask 1041408
    %v1143 = vsel %vm1142, %v1141, %v871
    %vm1144 = vcmask 1042432
    %v1145 = vsel %vm1144, %v1143, %v910
    %vm1146 = vcmask 1043456
    %v1147 = vsel %vm1146, %v1145, %v949
    %vm1148 = vcmask 1044480
    %v1149 = vsel %vm1148, %v1147, %v988
    %vm1150 = vcmask 1045504
    %v1151 = vsel %vm1150, %v1149, %v1027
    %vm1152 = vcmask 1046528
    %v1153 = vsel %vm1152, %v1151, %v1066
    %v1154 = vsel %vm1140, %v1082, %v1132
    %v1155 = vsel %vm1142, %v1154, %v1135
    %v1156 = vsel %vm1144, %v1155, %v1138
    %v1157 = vsel %vm1146, %v1156, 0.0
    %1158 = vst [vmem:[#allocation7] sm:$0xff] %v1153
    %1159 = vst [vmem:[#allocation7 + $0x8] sm:$0xff] %v1157
    // Predicated region
    $region18: #{tpu_custom_call.1} parent=1 // pred_check
      _
    $region19: #{tpu_custom_call.1} parent=1 // pred_check_branch
      %1161 = sbr.rel (0) target = $region21
    $region20: #{tpu_custom_call.1} parent=1 // pred_region
      %1163 = vsyncadd [#allocation4], 0
      %s1164 = sshll.u32 [#allocation7], 4
      %s1165 = int_to_ptr.vmem [resolvable:$true] %s1164
      %s1166 = sshll.u32 %s2, 4
      %s1167 = int_to_ptr.hbm [resolvable:$true] %s1166
      %1172 = dma.vmem_to_hbm [thread:$0]  %s1165, 256, %s1167, [#allocation4], 128, 128, 8
    $region21: #{tpu_custom_call.1} parent=1 // pred_fallthru
      _
    // Predicated region
    $region22: #{tpu_custom_call.1} parent=1 // pred_check
      _
    $region23: #{tpu_custom_call.1} parent=1 // pred_check_branch
      %1174 = sbr.rel (0) target = $region25
    $region24: #{tpu_custom_call.1} parent=1 // pred_region
      %1176 = dma.done [#allocation4], 256
    $region25: #{tpu_custom_call.1} parent=1 // pred_fallthru
      _
    %1177 = vsyncpa [#allocation3], 1
    %1178 = vsyncpa [#allocation6], 1
    %1179 = vsyncpa [#allocation4], 1

</llo_original>
